<compile_context>
chip_gen: v5e
topology: v5e:2x2
jax: 0.10.0
libtpu: 0.0.40
codegen_flags: <defaults>
</compile_context>

<pallas_src>
import functools
import math

import jax
import jax.numpy as jnp
from jax.experimental import pallas as pl
from jax.experimental.pallas import tpu as pltpu

LANE = 128
SUBLANE = 8
_VMEM_LIMIT_BYTES = 16 * 1024 * 1024


def _ceil_to(x, m):
    return ((x + m - 1) // m) * m


# ----------------------------------------------------------------------------
# Fused forward kernel
# ----------------------------------------------------------------------------
def _encoder_fused_kernel(xin_ref, xg_ref, ht_ref,
                          wt_ref, bt_ref, wv_ref, bv_ref,
                          wf_ref, z_ref,
                          wih_ref, bih_ref, whh_ref, bhh_ref,
                          watt_ref, o_ref, hs_ref, *, seq_len, hp):
    """Everything after the embedding gather, in one kernel.

    xin : (NP, KP) bf16   [X_G | personal_TE], zero padded
    xg  : (NP, FP) f32    X_G, zero padded
    ht  : (TP, NP) bf16   H^T, zero padded
    wt/bt, wv/bv, wf/z, wih/bih, whh/bhh, watt : prepared (padded, bf16) params
    o   : (1, HP) f32     pooled hidden state
    hs  : (TP, HP) f32    VMEM scratch for per-step hidden states
    """
    # ---- personal gate: X_0 = sigmoid([X_G | TE] @ W_t^T + b_t) -------------
    x0 = jax.nn.sigmoid(
        jnp.dot(xin_ref[...], wt_ref[...], preferred_element_type=jnp.float32)
        + bt_ref[...])                                            # (NP, FP)

    # ---- X_P = X_0 @ W_v^T + b_v  (hyperG_gate=False dense path) ------------
    xp = jnp.dot(x0.astype(jnp.bfloat16), wv_ref[...],
                 preferred_element_type=jnp.float32) + bv_ref[...]  # (NP, FP)

    # ---- PG-attention fusion:
    #   alpha = e^{z(sig(W_F X_P))} / (e^{z(sig(W_F X_P))} + e^{z(sig(W_F X_G))})
    #         = sigmoid(s_P - s_G)
    #   X = alpha * X_P + (1 - alpha) * X_G
    xg = xg_ref[...]
    wf = wf_ref[...]
    zr = z_ref[...]
    a_p = jax.nn.sigmoid(jnp.dot(xp.astype(jnp.bfloat16), wf,
                                 preferred_element_type=jnp.float32))
    a_g = jax.nn.sigmoid(jnp.dot(xg.astype(jnp.bfloat16), wf,
                                 preferred_element_type=jnp.float32))
    s_p = jnp.sum(a_p * zr, axis=-1, keepdims=True)               # (NP, 1)
    s_g = jnp.sum(a_g * zr, axis=-1, keepdims=True)
    alpha = jax.nn.sigmoid(s_p - s_g)
    x = alpha * xp + (1.0 - alpha) * xg                           # (NP, FP) f32

    # ---- visit_emb = H^T @ X fused with GRU input projection ---------------
    ve = jnp.dot(ht_ref[...], x.astype(jnp.bfloat16),
                 preferred_element_type=jnp.float32)              # (TP, FP)
    gx_all = jnp.dot(ve.astype(jnp.bfloat16), wih_ref[...],
                     preferred_element_type=jnp.float32) + bih_ref[...]  # (TP, 3*HP)

    # ---- GRU recurrence (PyTorch gate order r|z|n), fully unrolled,
    #      hidden state carried as a value (no VMEM round trip per step) ------
    whh = whh_ref[...]                                            # (HP, 3*HP) bf16
    bhh = bhh_ref[...]                                            # (1, 3*HP)  f32
    h = jnp.zeros((1, hp), jnp.float32)
    for t in range(seq_len):                                      # static unroll
        gx = gx_all[t:t + 1, :]                                   # (1, 3*HP)
        gh = jnp.dot(h.astype(jnp.bfloat16), whh,
                     preferred_element_type=jnp.float32) + bhh    # (1, 3*HP)
        r = jax.nn.sigmoid(gx[:, :hp] + gh[:, :hp])
        z = jax.nn.sigmoid(gx[:, hp:2 * hp] + gh[:, hp:2 * hp])
        n = jnp.tanh(gx[:, 2 * hp:] + r * gh[:, 2 * hp:])
        h = (1.0 - z) * n + z * h
        hs_ref[pl.ds(t, 1), :] = h

    # ---- attention pooling: alpha1 = softmax(hs @ w_att^T); out = sum_t -----
    hs = hs_ref[pl.ds(0, seq_len), :]                             # (T, HP)
    scores = jnp.sum(hs * watt_ref[...], axis=-1, keepdims=True)  # (T, 1)
    m = jnp.max(scores, axis=0, keepdims=True)
    e = jnp.exp(scores - m)
    p = e * pl.reciprocal(jnp.sum(e, axis=0, keepdims=True), approx=True)
    o_ref[...] = jnp.sum(p * hs, axis=0, keepdims=True)           # (1, HP)


# ----------------------------------------------------------------------------
# One-time parameter preparation (hoisted out of the per-forward path):
# transpose to (in, out), zero-pad to (8,128) multiples, cast MXU weights bf16.
# ----------------------------------------------------------------------------
def _prep_linear(w, b=None):
    out_dim, in_dim = w.shape
    kp, np_ = _ceil_to(in_dim, LANE), _ceil_to(out_dim, LANE)
    w_t = jnp.zeros((kp, np_), jnp.float32).at[:in_dim, :out_dim].set(w.T)
    b_p = jnp.zeros((1, np_), jnp.float32)
    if b is not None:
        b_p = b_p.at[0, :out_dim].set(b)
    return w_t.astype(jnp.bfloat16), b_p


def _prep_gru(w_ih, b_ih, w_hh, b_hh, hdim):
    in_dim = w_ih.shape[1]
    fp = _ceil_to(in_dim, LANE)
    hp = _ceil_to(hdim, LANE)
    wih_t = jnp.zeros((fp, 3 * hp), jnp.float32)
    whh_t = jnp.zeros((hp, 3 * hp), jnp.float32)
    bih_p = jnp.zeros((1, 3 * hp), jnp.float32)
    bhh_p = jnp.zeros((1, 3 * hp), jnp.float32)
    for g in range(3):  # PyTorch gate order r | z | n, each gate padded to hp
        wih_t = wih_t.at[:in_dim, g * hp:g * hp + hdim].set(
            w_ih[g * hdim:(g + 1) * hdim, :].T)
        whh_t = whh_t.at[:hdim, g * hp:g * hp + hdim].set(
            w_hh[g * hdim:(g + 1) * hdim, :].T)
        bih_p = bih_p.at[0, g * hp:g * hp + hdim].set(b_ih[g * hdim:(g + 1) * hdim])
        bhh_p = bhh_p.at[0, g * hp:g * hp + hdim].set(b_hh[g * hdim:(g + 1) * hdim])
    return wih_t.astype(jnp.bfloat16), bih_p, whh_t.astype(jnp.bfloat16), bhh_p


def prepare_params(raw, hdim):
    wt_t, bt = _prep_linear(raw["W_t"], raw["b_t"])
    wv_t, bv = _prep_linear(raw["W_v"], raw["b_v"])
    wf_t, _ = _prep_linear(raw["W_F"], None)
    ap = wf_t.shape[1]
    z_row = jnp.zeros((1, ap), jnp.float32).at[:, :raw["z_w"].shape[1]].set(raw["z_w"])
    wih_t, bih, whh_t, bhh = _prep_gru(raw["W_ih"], raw["b_ih"],
                                       raw["W_hh"], raw["b_hh"], hdim)
    hp = whh_t.shape[0]
    w_att = jnp.zeros((1, hp), jnp.float32).at[:, :hdim].set(raw["w_att"])
    return dict(wt=wt_t, bt=bt, wv=wv_t, bv=bv, wf=wf_t, z=z_row,
                wih=wih_t, bih=bih, whh=whh_t, bhh=bhh, watt=w_att)


# ----------------------------------------------------------------------------
# Encoder forward (personal_gate=True, PGatt_gate=True, hyperG_gate=False)
# ----------------------------------------------------------------------------
def encoder_forward(prep, tables, code_levels, H, TE, feat_dim, visit_dim, hdim):
    num_codes, num_visits = H.shape

    # Hierarchical embedding: per-level table gather + concat (plain JAX glue —
    # dynamic gathers have no clean Pallas equivalent at this scale).
    X_G = jnp.concatenate(
        [tables[l][code_levels[:, l] - 1] for l in range(len(tables))], axis=1)

    # personal_TE[code_idx] = TE[:len(code_idx)]  (data-dependent scatter,
    # expressed with fixed shapes via mask + running rank).
    mask = jnp.any(H != 0, axis=1)
    rank = jnp.clip(jnp.cumsum(mask) - 1, 0, TE.shape[0] - 1)
    personal_TE = jnp.where(mask[:, None], TE[rank], 0.0)

    x0_in = jnp.concatenate([X_G, personal_TE], axis=1)

    # Pad once to lane/sublane-dense shapes; cast matmul-only operands to bf16.
    KP, FP = prep["wt"].shape           # 128, 128
    AP = prep["wf"].shape[1]
    HP, G3 = prep["whh"].shape          # 128, 384
    NP = _ceil_to(num_codes, LANE)      # code dim (rows of X, lanes of H^T)
    TP = _ceil_to(num_visits, SUBLANE)

    xin = jnp.zeros((NP, KP), jnp.bfloat16).at[
        :num_codes, :x0_in.shape[1]].set(x0_in.astype(jnp.bfloat16))
    xg = jnp.zeros((NP, FP), jnp.float32).at[:num_codes, :feat_dim].set(X_G)
    ht = jnp.zeros((TP, NP), jnp.bfloat16).at[
        :num_visits, :num_codes].set(H.T.astype(jnp.bfloat16))

    full = lambda i: (0, 0)
    out = pl.pallas_call(
        functools.partial(_encoder_fused_kernel, seq_len=num_visits, hp=HP),
        out_shape=jax.ShapeDtypeStruct((1, HP), jnp.float32),
        grid_spec=pltpu.PrefetchScalarGridSpec(
            num_scalar_prefetch=0,
            grid=(1,),
            in_specs=[
                pl.BlockSpec((NP, KP), full),     # xin
                pl.BlockSpec((NP, FP), full),     # xg
                pl.BlockSpec((TP, NP), full),     # H^T
                pl.BlockSpec((KP, FP), full),     # W_t^T
                pl.BlockSpec((1, FP), full),      # b_t
                pl.BlockSpec((FP, FP), full),     # W_v^T
                pl.BlockSpec((1, FP), full),      # b_v
                pl.BlockSpec((FP, AP), full),     # W_F^T
                pl.BlockSpec((1, AP), full),      # z
                pl.BlockSpec((FP, G3), full),     # W_ih^T
                pl.BlockSpec((1, G3), full),      # b_ih
                pl.BlockSpec((HP, G3), full),     # W_hh^T
                pl.BlockSpec((1, G3), full),      # b_hh
                pl.BlockSpec((1, HP), full),      # w_att
            ],
            out_specs=pl.BlockSpec((1, HP), full),
            scratch_shapes=[pltpu.VMEM((TP, HP), jnp.float32)],   # hidden states
        ),
        compiler_params=pltpu.CompilerParams(
            dimension_semantics=("arbitrary",),
            vmem_limit_bytes=_VMEM_LIMIT_BYTES),
    )(xin, xg, ht, prep["wt"], prep["bt"], prep["wv"], prep["bv"],
      prep["wf"], prep["z"], prep["wih"], prep["bih"], prep["whh"],
      prep["bhh"], prep["watt"])

    # TODO(synk): hyperG_gate=True branch (UniGNN hypergraph attention with
    # dynamic scatter/softmax over hyperedges) is not translated to Pallas.
    return out[0, :hdim]


# ----------------------------------------------------------------------------
# Pure-JAX reference mirroring the PyTorch forward (same bf16-MXU precision)
# ----------------------------------------------------------------------------
def _mmbf(a, b):
    return jnp.dot(a.astype(jnp.bfloat16), b.astype(jnp.bfloat16),
                   preferred_element_type=jnp.float32)


def encoder_ref(raw, tables, code_levels, H, TE):
    X_G = jnp.concatenate(
        [tables[l][code_levels[:, l] - 1] for l in range(len(tables))], axis=1)
    mask = jnp.any(H != 0, axis=1)
    rank = jnp.clip(jnp.cumsum(mask) - 1, 0, TE.shape[0] - 1)
    personal_TE = jnp.where(mask[:, None], TE[rank], 0.0)

    x0_in = jnp.concatenate([X_G, personal_TE], axis=1)
    X_0 = jax.nn.sigmoid(_mmbf(x0_in, raw["W_t"].T) + raw["b_t"])
    X_P = _mmbf(X_0, raw["W_v"].T) + raw["b_v"]

    s_p = jnp.sum(jax.nn.sigmoid(_mmbf(X_P, raw["W_F"].T)) * raw["z_w"], axis=-1)
    s_g = jnp.sum(jax.nn.sigmoid(_mmbf(X_G, raw["W_F"].T)) * raw["z_w"], axis=-1)
    nom = jnp.exp(s_p)
    alpha0 = nom / (nom + jnp.exp(s_g))
    X = alpha0[:, None] * X_P + (1.0 - alpha0)[:, None] * X_G

    ve = _mmbf(H.T, X)
    gates_x = _mmbf(ve, raw["W_ih"].T) + raw["b_ih"]

    hdim = raw["W_hh"].shape[1]

    def step(h, gx):
        gh = _mmbf(h[None, :], raw["W_hh"].T)[0] + raw["b_hh"]
        r = jax.nn.sigmoid(gx[:hdim] + gh[:hdim])
        z = jax.nn.sigmoid(gx[hdim:2 * hdim] + gh[hdim:2 * hdim])
        n = jnp.tanh(gx[2 * hdim:] + r * gh[2 * hdim:])
        h_new = (1.0 - z) * n + z * h
        return h_new, h_new

    _, hs = jax.lax.scan(step, jnp.zeros((hdim,), jnp.float32), gates_x)

    scores = jnp.sum(hs * raw["w_att"], axis=-1)          # (T,)
    e = jnp.exp(scores - jnp.max(scores))
    alpha1 = e / jnp.sum(e)
    return alpha1 @ hs                                    # (hdim,)


# ----------------------------------------------------------------------------
if __name__ == "__main__":
    num_codes, num_visits = 16, 8
    num_levels, single_dim = 3, 8
    feat_dim = num_levels * single_dim       # sum(code_dims) = 24
    Dv = 4
    visit_dim = feat_dim                     # required for X_P + X_G fusion
    alpha_dim = 16
    hdim = 32
    level_sizes = [4, 6, 10]

    key = jax.random.PRNGKey(0)
    keys = jax.random.split(key, 20)

    code_levels = jnp.stack(
        [jax.random.randint(keys[l], (num_codes,), 1, level_sizes[l] + 1)
         for l in range(num_levels)], axis=1)                       # 1-indexed
    tables = [0.1 * jax.random.normal(keys[3 + l], (level_sizes[l], single_dim),
                                      jnp.float32)
              for l in range(num_levels)]

    H = (jax.random.uniform(keys[6], (num_codes, num_visits)) < 0.4).astype(
        jnp.float32)
    TE = 0.1 * jax.random.normal(keys[7], (num_codes, 2 * Dv), jnp.float32)

    def uinit(k, shape, fan_in):
        bound = 1.0 / math.sqrt(fan_in)
        return jax.random.uniform(k, shape, jnp.float32, -bound, bound)

    raw = dict(
        W_t=uinit(keys[8], (feat_dim, feat_dim + 2 * Dv), feat_dim + 2 * Dv),
        b_t=uinit(keys[9], (feat_dim,), feat_dim + 2 * Dv),
        W_F=uinit(keys[10], (alpha_dim, feat_dim), feat_dim),
        z_w=uinit(keys[11], (1, alpha_dim), alpha_dim),
        W_v=uinit(keys[12], (visit_dim, feat_dim), feat_dim),
        b_v=uinit(keys[13], (visit_dim,), feat_dim),
        W_ih=uinit(keys[14], (3 * hdim, visit_dim), hdim),
        b_ih=uinit(keys[15], (3 * hdim,), hdim),
        W_hh=uinit(keys[16], (3 * hdim, hdim), hdim),
        b_hh=uinit(keys[17], (3 * hdim,), hdim),
        w_att=uinit(keys[18], (1, hdim), hdim),
    )

    # Hoisted one-time weight prep (transpose / pad / bf16 cast).
    prep = prepare_params(raw, hdim)

    h_out = encoder_forward(prep, tables, code_levels, H, TE,
                            feat_dim, visit_dim, hdim)
    h_out = jax.block_until_ready(h_out)

    h_ref = encoder_ref(raw, tables, code_levels, H, TE)
    assert h_out.shape == (hdim,)
    assert jnp.allclose(h_out, h_ref, atol=1e-2, rtol=1e-2), (h_out, h_ref)

    print("KERNEL_OK")
</pallas_src>

<mosaic_0001>
module attributes {stable_mosaic.version = 11 : i64} {
  func.func @_encoder_fused_kernel(%arg0: i32, %arg1: memref<128x128xbf16, #tpu.memory_space<vmem>>, %arg2: memref<128x128xf32, #tpu.memory_space<vmem>>, %arg3: memref<8x128xbf16, #tpu.memory_space<vmem>>, %arg4: memref<128x128xbf16, #tpu.memory_space<vmem>>, %arg5: memref<1x128xf32, #tpu.memory_space<vmem>>, %arg6: memref<128x128xbf16, #tpu.memory_space<vmem>>, %arg7: memref<1x128xf32, #tpu.memory_space<vmem>>, %arg8: memref<128x128xbf16, #tpu.memory_space<vmem>>, %arg9: memref<1x128xf32, #tpu.memory_space<vmem>>, %arg10: memref<128x384xbf16, #tpu.memory_space<vmem>>, %arg11: memref<1x384xf32, #tpu.memory_space<vmem>>, %arg12: memref<128x384xbf16, #tpu.memory_space<vmem>>, %arg13: memref<1x384xf32, #tpu.memory_space<vmem>>, %arg14: memref<1x128xf32, #tpu.memory_space<vmem>>, %arg15: memref<1x128xf32, #tpu.memory_space<vmem>>, %arg16: memref<8x128xf32, #tpu.memory_space<vmem>>) attributes {dimension_semantics = [#tpu.dimension_semantics<arbitrary>], iteration_bounds = array<i64: 1>, scalar_prefetch = 0 : i64, scratch_operands = 1 : i64, tpu.core_type = #tpu.core_type<tc>, window_params = [{pipeline_mode = #tpu.pipeline_mode<synchronous>, transform_indices = @transform_0, window_bounds = array<i64: 128, 128>}, {pipeline_mode = #tpu.pipeline_mode<synchronous>, transform_indices = @transform_1, window_bounds = array<i64: 128, 128>}, {pipeline_mode = #tpu.pipeline_mode<synchronous>, transform_indices = @transform_2, window_bounds = array<i64: 8, 128>}, {pipeline_mode = #tpu.pipeline_mode<synchronous>, transform_indices = @transform_3, window_bounds = array<i64: 128, 128>}, {pipeline_mode = #tpu.pipeline_mode<synchronous>, transform_indices = @transform_4, window_bounds = array<i64: 1, 128>}, {pipeline_mode = #tpu.pipeline_mode<synchronous>, transform_indices = @transform_5, window_bounds = array<i64: 128, 128>}, {pipeline_mode = #tpu.pipeline_mode<synchronous>, transform_indices = @transform_6, window_bounds = array<i64: 1, 128>}, {pipeline_mode = #tpu.pipeline_mode<synchronous>, transform_indices = @transform_7, window_bounds = array<i64: 128, 128>}, {pipeline_mode = #tpu.pipeline_mode<synchronous>, transform_indices = @transform_8, window_bounds = array<i64: 1, 128>}, {pipeline_mode = #tpu.pipeline_mode<synchronous>, transform_indices = @transform_9, window_bounds = array<i64: 128, 384>}, {pipeline_mode = #tpu.pipeline_mode<synchronous>, transform_indices = @transform_10, window_bounds = array<i64: 1, 384>}, {pipeline_mode = #tpu.pipeline_mode<synchronous>, transform_indices = @transform_11, window_bounds = array<i64: 128, 384>}, {pipeline_mode = #tpu.pipeline_mode<synchronous>, transform_indices = @transform_12, window_bounds = array<i64: 1, 384>}, {pipeline_mode = #tpu.pipeline_mode<synchronous>, transform_indices = @transform_13, window_bounds = array<i64: 1, 128>}, {pipeline_mode = #tpu.pipeline_mode<synchronous>, transform_indices = @transform_14, window_bounds = array<i64: 1, 128>}]} {
    %c0 = arith.constant 0 : index
    %c0_0 = arith.constant 0 : index
    %0 = vector.load %arg1[%c0, %c0_0] : memref<128x128xbf16, #tpu.memory_space<vmem>>, vector<128x128xbf16>
    %c0_1 = arith.constant 0 : index
    %c0_2 = arith.constant 0 : index
    %1 = vector.load %arg4[%c0_1, %c0_2] : memref<128x128xbf16, #tpu.memory_space<vmem>>, vector<128x128xbf16>
    %cst = arith.constant dense<0.000000e+00> : vector<128x128xf32>
    %2 = tpu.matmul %0, %1, %cst {dimension_numbers = #tpu.dot_dimension_numbers<[1], [0], [0], [1], [0, 0, 1, 1], [], []>} : vector<128x128xbf16>, vector<128x128xbf16>, vector<128x128xf32> -> vector<128x128xf32>
    %c0_3 = arith.constant 0 : index
    %c0_4 = arith.constant 0 : index
    %3 = vector.load %arg5[%c0_3, %c0_4] : memref<1x128xf32, #tpu.memory_space<vmem>>, vector<1x128xf32>
    %4 = vector.broadcast %3 : vector<1x128xf32> to vector<128x128xf32>
    %5 = arith.addf %2, %4 : vector<128x128xf32>
    %6 = arith.negf %5 : vector<128x128xf32>
    %7 = math.exp %6 : vector<128x128xf32>
    %cst_5 = arith.constant 1.000000e+00 : f32
    %8 = vector.broadcast %cst_5 : f32 to vector<128x128xf32>
    %9 = arith.addf %8, %7 : vector<128x128xf32>
    %10 = arith.divf %8, %9 : vector<128x128xf32>
    %11 = arith.truncf %10 : vector<128x128xf32> to vector<128x128xbf16>
    %c0_6 = arith.constant 0 : index
    %c0_7 = arith.constant 0 : index
    %12 = vector.load %arg6[%c0_6, %c0_7] : memref<128x128xbf16, #tpu.memory_space<vmem>>, vector<128x128xbf16>
    %cst_8 = arith.constant dense<0.000000e+00> : vector<128x128xf32>
    %13 = tpu.matmul %11, %12, %cst_8 {dimension_numbers = #tpu.dot_dimension_numbers<[1], [0], [0], [1], [0, 0, 1, 1], [], []>} : vector<128x128xbf16>, vector<128x128xbf16>, vector<128x128xf32> -> vector<128x128xf32>
    %c0_9 = arith.constant 0 : index
    %c0_10 = arith.constant 0 : index
    %14 = vector.load %arg7[%c0_9, %c0_10] : memref<1x128xf32, #tpu.memory_space<vmem>>, vector<1x128xf32>
    %15 = vector.broadcast %14 : vector<1x128xf32> to vector<128x128xf32>
    %16 = arith.addf %13, %15 : vector<128x128xf32>
    %c0_11 = arith.constant 0 : index
    %c0_12 = arith.constant 0 : index
    %17 = vector.load %arg2[%c0_11, %c0_12] : memref<128x128xf32, #tpu.memory_space<vmem>>, vector<128x128xf32>
    %c0_13 = arith.constant 0 : index
    %c0_14 = arith.constant 0 : index
    %18 = vector.load %arg8[%c0_13, %c0_14] : memref<128x128xbf16, #tpu.memory_space<vmem>>, vector<128x128xbf16>
    %c0_15 = arith.constant 0 : index
    %c0_16 = arith.constant 0 : index
    %19 = vector.load %arg9[%c0_15, %c0_16] : memref<1x128xf32, #tpu.memory_space<vmem>>, vector<1x128xf32>
    %20 = arith.truncf %16 : vector<128x128xf32> to vector<128x128xbf16>
    %cst_17 = arith.constant dense<0.000000e+00> : vector<128x128xf32>
    %21 = tpu.matmul %20, %18, %cst_17 {dimension_numbers = #tpu.dot_dimension_numbers<[1], [0], [0], [1], [0, 0, 1, 1], [], []>} : vector<128x128xbf16>, vector<128x128xbf16>, vector<128x128xf32> -> vector<128x128xf32>
    %22 = arith.negf %21 : vector<128x128xf32>
    %23 = math.exp %22 : vector<128x128xf32>
    %cst_18 = arith.constant 1.000000e+00 : f32
    %24 = vector.broadcast %cst_18 : f32 to vector<128x128xf32>
    %25 = arith.addf %24, %23 : vector<128x128xf32>
    %26 = arith.divf %24, %25 : vector<128x128xf32>
    %27 = arith.truncf %17 : vector<128x128xf32> to vector<128x128xbf16>
    %cst_19 = arith.constant dense<0.000000e+00> : vector<128x128xf32>
    %28 = tpu.matmul %27, %18, %cst_19 {dimension_numbers = #tpu.dot_dimension_numbers<[1], [0], [0], [1], [0, 0, 1, 1], [], []>} : vector<128x128xbf16>, vector<128x128xbf16>, vector<128x128xf32> -> vector<128x128xf32>
    %29 = arith.negf %28 : vector<128x128xf32>
    %30 = math.exp %29 : vector<128x128xf32>
    %cst_20 = arith.constant 1.000000e+00 : f32
    %31 = vector.broadcast %cst_20 : f32 to vector<128x128xf32>
    %32 = arith.addf %31, %30 : vector<128x128xf32>
    %33 = arith.divf %31, %32 : vector<128x128xf32>
    %34 = vector.broadcast %19 : vector<1x128xf32> to vector<128x128xf32>
    %35 = arith.mulf %26, %34 : vector<128x128xf32>
    %cst_21 = arith.constant dense<0.000000e+00> : vector<128xf32>
    %36 = vector.multi_reduction <add>, %35, %cst_21 [1] : vector<128x128xf32> to vector<128xf32>
    %37 = vector.shape_cast %36 : vector<128xf32> to vector<128x1xf32>
    %38 = vector.broadcast %19 : vector<1x128xf32> to vector<128x128xf32>
    %39 = arith.mulf %33, %38 : vector<128x128xf32>
    %cst_22 = arith.constant dense<0.000000e+00> : vector<128xf32>
    %40 = vector.multi_reduction <add>, %39, %cst_22 [1] : vector<128x128xf32> to vector<128xf32>
    %41 = vector.shape_cast %40 : vector<128xf32> to vector<128x1xf32>
    %42 = arith.subf %37, %41 : vector<128x1xf32>
    %43 = arith.negf %42 : vector<128x1xf32>
    %44 = math.exp %43 : vector<128x1xf32>
    %cst_23 = arith.constant 1.000000e+00 : f32
    %45 = vector.broadcast %cst_23 : f32 to vector<128x1xf32>
    %46 = arith.addf %45, %44 : vector<128x1xf32>
    %47 = arith.divf %45, %46 : vector<128x1xf32>
    %48 = vector.broadcast %47 : vector<128x1xf32> to vector<128x128xf32>
    %49 = arith.mulf %48, %16 : vector<128x128xf32>
    %cst_24 = arith.constant 1.000000e+00 : f32
    %50 = vector.broadcast %cst_24 : f32 to vector<128x1xf32>
    %51 = arith.subf %50, %47 : vector<128x1xf32>
    %52 = vector.broadcast %51 : vector<128x1xf32> to vector<128x128xf32>
    %53 = arith.mulf %52, %17 : vector<128x128xf32>
    %54 = arith.addf %49, %53 : vector<128x128xf32>
    %c0_25 = arith.constant 0 : index
    %c0_26 = arith.constant 0 : index
    %55 = vector.load %arg3[%c0_25, %c0_26] : memref<8x128xbf16, #tpu.memory_space<vmem>>, vector<8x128xbf16>
    %56 = arith.truncf %54 : vector<128x128xf32> to vector<128x128xbf16>
    %cst_27 = arith.constant dense<0.000000e+00> : vector<8x128xf32>
    %57 = tpu.matmul %55, %56, %cst_27 {dimension_numbers = #tpu.dot_dimension_numbers<[1], [0], [0], [1], [0, 0, 1, 1], [], []>} : vector<8x128xbf16>, vector<128x128xbf16>, vector<8x128xf32> -> vector<8x128xf32>
    %58 = arith.truncf %57 : vector<8x128xf32> to vector<8x128xbf16>
    %c0_28 = arith.constant 0 : index
    %c0_29 = arith.constant 0 : index
    %59 = vector.load %arg10[%c0_28, %c0_29] : memref<128x384xbf16, #tpu.memory_space<vmem>>, vector<128x384xbf16>
    %cst_30 = arith.constant dense<0.000000e+00> : vector<8x384xf32>
    %60 = tpu.matmul %58, %59, %cst_30 {dimension_numbers = #tpu.dot_dimension_numbers<[1], [0], [0], [1], [0, 0, 1, 1], [], []>} : vector<8x128xbf16>, vector<128x384xbf16>, vector<8x384xf32> -> vector<8x384xf32>
    %c0_31 = arith.constant 0 : index
    %c0_32 = arith.constant 0 : index
    %61 = vector.load %arg11[%c0_31, %c0_32] : memref<1x384xf32, #tpu.memory_space<vmem>>, vector<1x384xf32>
    %62 = vector.broadcast %61 : vector<1x384xf32> to vector<8x384xf32>
    %63 = arith.addf %60, %62 : vector<8x384xf32>
    %c0_33 = arith.constant 0 : index
    %c0_34 = arith.constant 0 : index
    %64 = vector.load %arg12[%c0_33, %c0_34] : memref<128x384xbf16, #tpu.memory_space<vmem>>, vector<128x384xbf16>
    %c0_35 = arith.constant 0 : index
    %c0_36 = arith.constant 0 : index
    %65 = vector.load %arg13[%c0_35, %c0_36] : memref<1x384xf32, #tpu.memory_space<vmem>>, vector<1x384xf32>
    %cst_37 = arith.constant 0.000000e+00 : f32
    %66 = vector.broadcast %cst_37 : f32 to vector<1x128xf32>
    %67 = vector.extract_strided_slice %63 {offsets = [0, 0], sizes = [1, 384], strides = [1, 1]} : vector<8x384xf32> to vector<1x384xf32>
    %68 = arith.truncf %66 : vector<1x128xf32> to vector<1x128xbf16>
    %cst_38 = arith.constant dense<0.000000e+00> : vector<1x384xf32>
    %69 = tpu.matmul %68, %64, %cst_38 {dimension_numbers = #tpu.dot_dimension_numbers<[1], [0], [0], [1], [0, 0, 1, 1], [], []>} : vector<1x128xbf16>, vector<128x384xbf16>, vector<1x384xf32> -> vector<1x384xf32>
    %70 = arith.addf %69, %65 : vector<1x384xf32>
    %71 = vector.extract_strided_slice %67 {offsets = [0, 0], sizes = [1, 128], strides = [1, 1]} : vector<1x384xf32> to vector<1x128xf32>
    %72 = vector.extract_strided_slice %70 {offsets = [0, 0], sizes = [1, 128], strides = [1, 1]} : vector<1x384xf32> to vector<1x128xf32>
    %73 = arith.addf %71, %72 : vector<1x128xf32>
    %74 = arith.negf %73 : vector<1x128xf32>
    %75 = math.exp %74 : vector<1x128xf32>
    %cst_39 = arith.constant 1.000000e+00 : f32
    %76 = vector.broadcast %cst_39 : f32 to vector<1x128xf32>
    %77 = arith.addf %76, %75 : vector<1x128xf32>
    %78 = arith.divf %76, %77 : vector<1x128xf32>
    %79 = vector.extract_strided_slice %67 {offsets = [0, 128], sizes = [1, 128], strides = [1, 1]} : vector<1x384xf32> to vector<1x128xf32>
    %80 = vector.extract_strided_slice %70 {offsets = [0, 128], sizes = [1, 128], strides = [1, 1]} : vector<1x384xf32> to vector<1x128xf32>
    %81 = arith.addf %79, %80 : vector<1x128xf32>
    %82 = arith.negf %81 : vector<1x128xf32>
    %83 = math.exp %82 : vector<1x128xf32>
    %cst_40 = arith.constant 1.000000e+00 : f32
    %84 = vector.broadcast %cst_40 : f32 to vector<1x128xf32>
    %85 = arith.addf %84, %83 : vector<1x128xf32>
    %86 = arith.divf %84, %85 : vector<1x128xf32>
    %87 = vector.extract_strided_slice %67 {offsets = [0, 256], sizes = [1, 128], strides = [1, 1]} : vector<1x384xf32> to vector<1x128xf32>
    %88 = vector.extract_strided_slice %70 {offsets = [0, 256], sizes = [1, 128], strides = [1, 1]} : vector<1x384xf32> to vector<1x128xf32>
    %89 = arith.mulf %78, %88 : vector<1x128xf32>
    %90 = arith.addf %87, %89 : vector<1x128xf32>
    %91 = math.tanh %90 : vector<1x128xf32>
    %cst_41 = arith.constant 1.000000e+00 : f32
    %92 = vector.broadcast %cst_41 : f32 to vector<1x128xf32>
    %93 = arith.subf %92, %86 : vector<1x128xf32>
    %94 = arith.mulf %93, %91 : vector<1x128xf32>
    %95 = arith.mulf %86, %66 : vector<1x128xf32>
    %96 = arith.addf %94, %95 : vector<1x128xf32>
    %c0_42 = arith.constant 0 : index
    %c0_43 = arith.constant 0 : index
    %97 = vector.load %arg16[%c0_42, %c0_43] : memref<8x128xf32, #tpu.memory_space<vmem>>, vector<1x128xf32>
    tpu.vector_store %arg16[%c0_42, %c0_43], %96 {strides = array<i32>} : memref<8x128xf32, #tpu.memory_space<vmem>>, vector<1x128xf32>,
    %98 = vector.extract_strided_slice %63 {offsets = [1, 0], sizes = [1, 384], strides = [1, 1]} : vector<8x384xf32> to vector<1x384xf32>
    %99 = arith.truncf %96 : vector<1x128xf32> to vector<1x128xbf16>
    %cst_44 = arith.constant dense<0.000000e+00> : vector<1x384xf32>
    %100 = tpu.matmul %99, %64, %cst_44 {dimension_numbers = #tpu.dot_dimension_numbers<[1], [0], [0], [1], [0, 0, 1, 1], [], []>} : vector<1x128xbf16>, vector<128x384xbf16>, vector<1x384xf32> -> vector<1x384xf32>
    %101 = arith.addf %100, %65 : vector<1x384xf32>
    %102 = vector.extract_strided_slice %98 {offsets = [0, 0], sizes = [1, 128], strides = [1, 1]} : vector<1x384xf32> to vector<1x128xf32>
    %103 = vector.extract_strided_slice %101 {offsets = [0, 0], sizes = [1, 128], strides = [1, 1]} : vector<1x384xf32> to vector<1x128xf32>
    %104 = arith.addf %102, %103 : vector<1x128xf32>
    %105 = arith.negf %104 : vector<1x128xf32>
    %106 = math.exp %105 : vector<1x128xf32>
    %cst_45 = arith.constant 1.000000e+00 : f32
    %107 = vector.broadcast %cst_45 : f32 to vector<1x128xf32>
    %108 = arith.addf %107, %106 : vector<1x128xf32>
    %109 = arith.divf %107, %108 : vector<1x128xf32>
    %110 = vector.extract_strided_slice %98 {offsets = [0, 128], sizes = [1, 128], strides = [1, 1]} : vector<1x384xf32> to vector<1x128xf32>
    %111 = vector.extract_strided_slice %101 {offsets = [0, 128], sizes = [1, 128], strides = [1, 1]} : vector<1x384xf32> to vector<1x128xf32>
    %112 = arith.addf %110, %111 : vector<1x128xf32>
    %113 = arith.negf %112 : vector<1x128xf32>
    %114 = math.exp %113 : vector<1x128xf32>
    %cst_46 = arith.constant 1.000000e+00 : f32
    %115 = vector.broadcast %cst_46 : f32 to vector<1x128xf32>
    %116 = arith.addf %115, %114 : vector<1x128xf32>
    %117 = arith.divf %115, %116 : vector<1x128xf32>
    %118 = vector.extract_strided_slice %98 {offsets = [0, 256], sizes = [1, 128], strides = [1, 1]} : vector<1x384xf32> to vector<1x128xf32>
    %119 = vector.extract_strided_slice %101 {offsets = [0, 256], sizes = [1, 128], strides = [1, 1]} : vector<1x384xf32> to vector<1x128xf32>
    %120 = arith.mulf %109, %119 : vector<1x128xf32>
    %121 = arith.addf %118, %120 : vector<1x128xf32>
    %122 = math.tanh %121 : vector<1x128xf32>
    %cst_47 = arith.constant 1.000000e+00 : f32
    %123 = vector.broadcast %cst_47 : f32 to vector<1x128xf32>
    %124 = arith.subf %123, %117 : vector<1x128xf32>
    %125 = arith.mulf %124, %122 : vector<1x128xf32>
    %126 = arith.mulf %117, %96 : vector<1x128xf32>
    %127 = arith.addf %125, %126 : vector<1x128xf32>
    %c1 = arith.constant 1 : index
    %c0_48 = arith.constant 0 : index
    %128 = vector.load %arg16[%c1, %c0_48] : memref<8x128xf32, #tpu.memory_space<vmem>>, vector<1x128xf32>
    tpu.vector_store %arg16[%c1, %c0_48], %127 {strides = array<i32>} : memref<8x128xf32, #tpu.memory_space<vmem>>, vector<1x128xf32>,
    %129 = vector.extract_strided_slice %63 {offsets = [2, 0], sizes = [1, 384], strides = [1, 1]} : vector<8x384xf32> to vector<1x384xf32>
    %130 = arith.truncf %127 : vector<1x128xf32> to vector<1x128xbf16>
    %cst_49 = arith.constant dense<0.000000e+00> : vector<1x384xf32>
    %131 = tpu.matmul %130, %64, %cst_49 {dimension_numbers = #tpu.dot_dimension_numbers<[1], [0], [0], [1], [0, 0, 1, 1], [], []>} : vector<1x128xbf16>, vector<128x384xbf16>, vector<1x384xf32> -> vector<1x384xf32>
    %132 = arith.addf %131, %65 : vector<1x384xf32>
    %133 = vector.extract_strided_slice %129 {offsets = [0, 0], sizes = [1, 128], strides = [1, 1]} : vector<1x384xf32> to vector<1x128xf32>
    %134 = vector.extract_strided_slice %132 {offsets = [0, 0], sizes = [1, 128], strides = [1, 1]} : vector<1x384xf32> to vector<1x128xf32>
    %135 = arith.addf %133, %134 : vector<1x128xf32>
    %136 = arith.negf %135 : vector<1x128xf32>
    %137 = math.exp %136 : vector<1x128xf32>
    %cst_50 = arith.constant 1.000000e+00 : f32
    %138 = vector.broadcast %cst_50 : f32 to vector<1x128xf32>
    %139 = arith.addf %138, %137 : vector<1x128xf32>
    %140 = arith.divf %138, %139 : vector<1x128xf32>
    %141 = vector.extract_strided_slice %129 {offsets = [0, 128], sizes = [1, 128], strides = [1, 1]} : vector<1x384xf32> to vector<1x128xf32>
    %142 = vector.extract_strided_slice %132 {offsets = [0, 128], sizes = [1, 128], strides = [1, 1]} : vector<1x384xf32> to vector<1x128xf32>
    %143 = arith.addf %141, %142 : vector<1x128xf32>
    %144 = arith.negf %143 : vector<1x128xf32>
    %145 = math.exp %144 : vector<1x128xf32>
    %cst_51 = arith.constant 1.000000e+00 : f32
    %146 = vector.broadcast %cst_51 : f32 to vector<1x128xf32>
    %147 = arith.addf %146, %145 : vector<1x128xf32>
    %148 = arith.divf %146, %147 : vector<1x128xf32>
    %149 = vector.extract_strided_slice %129 {offsets = [0, 256], sizes = [1, 128], strides = [1, 1]} : vector<1x384xf32> to vector<1x128xf32>
    %150 = vector.extract_strided_slice %132 {offsets = [0, 256], sizes = [1, 128], strides = [1, 1]} : vector<1x384xf32> to vector<1x128xf32>
    %151 = arith.mulf %140, %150 : vector<1x128xf32>
    %152 = arith.addf %149, %151 : vector<1x128xf32>
    %153 = math.tanh %152 : vector<1x128xf32>
    %cst_52 = arith.constant 1.000000e+00 : f32
    %154 = vector.broadcast %cst_52 : f32 to vector<1x128xf32>
    %155 = arith.subf %154, %148 : vector<1x128xf32>
    %156 = arith.mulf %155, %153 : vector<1x128xf32>
    %157 = arith.mulf %148, %127 : vector<1x128xf32>
    %158 = arith.addf %156, %157 : vector<1x128xf32>
    %c2 = arith.constant 2 : index
    %c0_53 = arith.constant 0 : index
    %159 = vector.load %arg16[%c2, %c0_53] : memref<8x128xf32, #tpu.memory_space<vmem>>, vector<1x128xf32>
    tpu.vector_store %arg16[%c2, %c0_53], %158 {strides = array<i32>} : memref<8x128xf32, #tpu.memory_space<vmem>>, vector<1x128xf32>,
    %160 = vector.extract_strided_slice %63 {offsets = [3, 0], sizes = [1, 384], strides = [1, 1]} : vector<8x384xf32> to vector<1x384xf32>
    %161 = arith.truncf %158 : vector<1x128xf32> to vector<1x128xbf16>
    %cst_54 = arith.constant dense<0.000000e+00> : vector<1x384xf32>
    %162 = tpu.matmul %161, %64, %cst_54 {dimension_numbers = #tpu.dot_dimension_numbers<[1], [0], [0], [1], [0, 0, 1, 1], [], []>} : vector<1x128xbf16>, vector<128x384xbf16>, vector<1x384xf32> -> vector<1x384xf32>
    %163 = arith.addf %162, %65 : vector<1x384xf32>
    %164 = vector.extract_strided_slice %160 {offsets = [0, 0], sizes = [1, 128], strides = [1, 1]} : vector<1x384xf32> to vector<1x128xf32>
    %165 = vector.extract_strided_slice %163 {offsets = [0, 0], sizes = [1, 128], strides = [1, 1]} : vector<1x384xf32> to vector<1x128xf32>
    %166 = arith.addf %164, %165 : vector<1x128xf32>
    %167 = arith.negf %166 : vector<1x128xf32>
    %168 = math.exp %167 : vector<1x128xf32>
    %cst_55 = arith.constant 1.000000e+00 : f32
    %169 = vector.broadcast %cst_55 : f32 to vector<1x128xf32>
    %170 = arith.addf %169, %168 : vector<1x128xf32>
    %171 = arith.divf %169, %170 : vector<1x128xf32>
    %172 = vector.extract_strided_slice %160 {offsets = [0, 128], sizes = [1, 128], strides = [1, 1]} : vector<1x384xf32> to vector<1x128xf32>
    %173 = vector.extract_strided_slice %163 {offsets = [0, 128], sizes = [1, 128], strides = [1, 1]} : vector<1x384xf32> to vector<1x128xf32>
    %174 = arith.addf %172, %173 : vector<1x128xf32>
    %175 = arith.negf %174 : vector<1x128xf32>
    %176 = math.exp %175 : vector<1x128xf32>
    %cst_56 = arith.constant 1.000000e+00 : f32
    %177 = vector.broadcast %cst_56 : f32 to vector<1x128xf32>
    %178 = arith.addf %177, %176 : vector<1x128xf32>
    %179 = arith.divf %177, %178 : vector<1x128xf32>
    %180 = vector.extract_strided_slice %160 {offsets = [0, 256], sizes = [1, 128], strides = [1, 1]} : vector<1x384xf32> to vector<1x128xf32>
    %181 = vector.extract_strided_slice %163 {offsets = [0, 256], sizes = [1, 128], strides = [1, 1]} : vector<1x384xf32> to vector<1x128xf32>
    %182 = arith.mulf %171, %181 : vector<1x128xf32>
    %183 = arith.addf %180, %182 : vector<1x128xf32>
    %184 = math.tanh %183 : vector<1x128xf32>
    %cst_57 = arith.constant 1.000000e+00 : f32
    %185 = vector.broadcast %cst_57 : f32 to vector<1x128xf32>
    %186 = arith.subf %185, %179 : vector<1x128xf32>
    %187 = arith.mulf %186, %184 : vector<1x128xf32>
    %188 = arith.mulf %179, %158 : vector<1x128xf32>
    %189 = arith.addf %187, %188 : vector<1x128xf32>
    %c3 = arith.constant 3 : index
    %c0_58 = arith.constant 0 : index
    %190 = vector.load %arg16[%c3, %c0_58] : memref<8x128xf32, #tpu.memory_space<vmem>>, vector<1x128xf32>
    tpu.vector_store %arg16[%c3, %c0_58], %189 {strides = array<i32>} : memref<8x128xf32, #tpu.memory_space<vmem>>, vector<1x128xf32>,
    %191 = vector.extract_strided_slice %63 {offsets = [4, 0], sizes = [1, 384], strides = [1, 1]} : vector<8x384xf32> to vector<1x384xf32>
    %192 = arith.truncf %189 : vector<1x128xf32> to vector<1x128xbf16>
    %cst_59 = arith.constant dense<0.000000e+00> : vector<1x384xf32>
    %193 = tpu.matmul %192, %64, %cst_59 {dimension_numbers = #tpu.dot_dimension_numbers<[1], [0], [0], [1], [0, 0, 1, 1], [], []>} : vector<1x128xbf16>, vector<128x384xbf16>, vector<1x384xf32> -> vector<1x384xf32>
    %194 = arith.addf %193, %65 : vector<1x384xf32>
    %195 = vector.extract_strided_slice %191 {offsets = [0, 0], sizes = [1, 128], strides = [1, 1]} : vector<1x384xf32> to vector<1x128xf32>
    %196 = vector.extract_strided_slice %194 {offsets = [0, 0], sizes = [1, 128], strides = [1, 1]} : vector<1x384xf32> to vector<1x128xf32>
    %197 = arith.addf %195, %196 : vector<1x128xf32>
    %198 = arith.negf %197 : vector<1x128xf32>
    %199 = math.exp %198 : vector<1x128xf32>
    %cst_60 = arith.constant 1.000000e+00 : f32
    %200 = vector.broadcast %cst_60 : f32 to vector<1x128xf32>
    %201 = arith.addf %200, %199 : vector<1x128xf32>
    %202 = arith.divf %200, %201 : vector<1x128xf32>
    %203 = vector.extract_strided_slice %191 {offsets = [0, 128], sizes = [1, 128], strides = [1, 1]} : vector<1x384xf32> to vector<1x128xf32>
    %204 = vector.extract_strided_slice %194 {offsets = [0, 128], sizes = [1, 128], strides = [1, 1]} : vector<1x384xf32> to vector<1x128xf32>
    %205 = arith.addf %203, %204 : vector<1x128xf32>
    %206 = arith.negf %205 : vector<1x128xf32>
    %207 = math.exp %206 : vector<1x128xf32>
    %cst_61 = arith.constant 1.000000e+00 : f32
    %208 = vector.broadcast %cst_61 : f32 to vector<1x128xf32>
    %209 = arith.addf %208, %207 : vector<1x128xf32>
    %210 = arith.divf %208, %209 : vector<1x128xf32>
    %211 = vector.extract_strided_slice %191 {offsets = [0, 256], sizes = [1, 128], strides = [1, 1]} : vector<1x384xf32> to vector<1x128xf32>
    %212 = vector.extract_strided_slice %194 {offsets = [0, 256], sizes = [1, 128], strides = [1, 1]} : vector<1x384xf32> to vector<1x128xf32>
    %213 = arith.mulf %202, %212 : vector<1x128xf32>
    %214 = arith.addf %211, %213 : vector<1x128xf32>
    %215 = math.tanh %214 : vector<1x128xf32>
    %cst_62 = arith.constant 1.000000e+00 : f32
    %216 = vector.broadcast %cst_62 : f32 to vector<1x128xf32>
    %217 = arith.subf %216, %210 : vector<1x128xf32>
    %218 = arith.mulf %217, %215 : vector<1x128xf32>
    %219 = arith.mulf %210, %189 : vector<1x128xf32>
    %220 = arith.addf %218, %219 : vector<1x128xf32>
    %c4 = arith.constant 4 : index
    %c0_63 = arith.constant 0 : index
    %221 = vector.load %arg16[%c4, %c0_63] : memref<8x128xf32, #tpu.memory_space<vmem>>, vector<1x128xf32>
    tpu.vector_store %arg16[%c4, %c0_63], %220 {strides = array<i32>} : memref<8x128xf32, #tpu.memory_space<vmem>>, vector<1x128xf32>,
    %222 = vector.extract_strided_slice %63 {offsets = [5, 0], sizes = [1, 384], strides = [1, 1]} : vector<8x384xf32> to vector<1x384xf32>
    %223 = arith.truncf %220 : vector<1x128xf32> to vector<1x128xbf16>
    %cst_64 = arith.constant dense<0.000000e+00> : vector<1x384xf32>
    %224 = tpu.matmul %223, %64, %cst_64 {dimension_numbers = #tpu.dot_dimension_numbers<[1], [0], [0], [1], [0, 0, 1, 1], [], []>} : vector<1x128xbf16>, vector<128x384xbf16>, vector<1x384xf32> -> vector<1x384xf32>
    %225 = arith.addf %224, %65 : vector<1x384xf32>
    %226 = vector.extract_strided_slice %222 {offsets = [0, 0], sizes = [1, 128], strides = [1, 1]} : vector<1x384xf32> to vector<1x128xf32>
    %227 = vector.extract_strided_slice %225 {offsets = [0, 0], sizes = [1, 128], strides = [1, 1]} : vector<1x384xf32> to vector<1x128xf32>
    %228 = arith.addf %226, %227 : vector<1x128xf32>
    %229 = arith.negf %228 : vector<1x128xf32>
    %230 = math.exp %229 : vector<1x128xf32>
    %cst_65 = arith.constant 1.000000e+00 : f32
    %231 = vector.broadcast %cst_65 : f32 to vector<1x128xf32>
    %232 = arith.addf %231, %230 : vector<1x128xf32>
    %233 = arith.divf %231, %232 : vector<1x128xf32>
    %234 = vector.extract_strided_slice %222 {offsets = [0, 128], sizes = [1, 128], strides = [1, 1]} : vector<1x384xf32> to vector<1x128xf32>
    %235 = vector.extract_strided_slice %225 {offsets = [0, 128], sizes = [1, 128], strides = [1, 1]} : vector<1x384xf32> to vector<1x128xf32>
    %236 = arith.addf %234, %235 : vector<1x128xf32>
    %237 = arith.negf %236 : vector<1x128xf32>
    %238 = math.exp %237 : vector<1x128xf32>
    %cst_66 = arith.constant 1.000000e+00 : f32
    %239 = vector.broadcast %cst_66 : f32 to vector<1x128xf32>
    %240 = arith.addf %239, %238 : vector<1x128xf32>
    %241 = arith.divf %239, %240 : vector<1x128xf32>
    %242 = vector.extract_strided_slice %222 {offsets = [0, 256], sizes = [1, 128], strides = [1, 1]} : vector<1x384xf32> to vector<1x128xf32>
    %243 = vector.extract_strided_slice %225 {offsets = [0, 256], sizes = [1, 128], strides = [1, 1]} : vector<1x384xf32> to vector<1x128xf32>
    %244 = arith.mulf %233, %243 : vector<1x128xf32>
    %245 = arith.addf %242, %244 : vector<1x128xf32>
    %246 = math.tanh %245 : vector<1x128xf32>
    %cst_67 = arith.constant 1.000000e+00 : f32
    %247 = vector.broadcast %cst_67 : f32 to vector<1x128xf32>
    %248 = arith.subf %247, %241 : vector<1x128xf32>
    %249 = arith.mulf %248, %246 : vector<1x128xf32>
    %250 = arith.mulf %241, %220 : vector<1x128xf32>
    %251 = arith.addf %249, %250 : vector<1x128xf32>
    %c5 = arith.constant 5 : index
    %c0_68 = arith.constant 0 : index
    %252 = vector.load %arg16[%c5, %c0_68] : memref<8x128xf32, #tpu.memory_space<vmem>>, vector<1x128xf32>
    tpu.vector_store %arg16[%c5, %c0_68], %251 {strides = array<i32>} : memref<8x128xf32, #tpu.memory_space<vmem>>, vector<1x128xf32>,
    %253 = vector.extract_strided_slice %63 {offsets = [6, 0], sizes = [1, 384], strides = [1, 1]} : vector<8x384xf32> to vector<1x384xf32>
    %254 = arith.truncf %251 : vector<1x128xf32> to vector<1x128xbf16>
    %cst_69 = arith.constant dense<0.000000e+00> : vector<1x384xf32>
    %255 = tpu.matmul %254, %64, %cst_69 {dimension_numbers = #tpu.dot_dimension_numbers<[1], [0], [0], [1], [0, 0, 1, 1], [], []>} : vector<1x128xbf16>, vector<128x384xbf16>, vector<1x384xf32> -> vector<1x384xf32>
    %256 = arith.addf %255, %65 : vector<1x384xf32>
    %257 = vector.extract_strided_slice %253 {offsets = [0, 0], sizes = [1, 128], strides = [1, 1]} : vector<1x384xf32> to vector<1x128xf32>
    %258 = vector.extract_strided_slice %256 {offsets = [0, 0], sizes = [1, 128], strides = [1, 1]} : vector<1x384xf32> to vector<1x128xf32>
    %259 = arith.addf %257, %258 : vector<1x128xf32>
    %260 = arith.negf %259 : vector<1x128xf32>
    %261 = math.exp %260 : vector<1x128xf32>
    %cst_70 = arith.constant 1.000000e+00 : f32
    %262 = vector.broadcast %cst_70 : f32 to vector<1x128xf32>
    %263 = arith.addf %262, %261 : vector<1x128xf32>
    %264 = arith.divf %262, %263 : vector<1x128xf32>
    %265 = vector.extract_strided_slice %253 {offsets = [0, 128], sizes = [1, 128], strides = [1, 1]} : vector<1x384xf32> to vector<1x128xf32>
    %266 = vector.extract_strided_slice %256 {offsets = [0, 128], sizes = [1, 128], strides = [1, 1]} : vector<1x384xf32> to vector<1x128xf32>
    %267 = arith.addf %265, %266 : vector<1x128xf32>
    %268 = arith.negf %267 : vector<1x128xf32>
    %269 = math.exp %268 : vector<1x128xf32>
    %cst_71 = arith.constant 1.000000e+00 : f32
    %270 = vector.broadcast %cst_71 : f32 to vector<1x128xf32>
    %271 = arith.addf %270, %269 : vector<1x128xf32>
    %272 = arith.divf %270, %271 : vector<1x128xf32>
    %273 = vector.extract_strided_slice %253 {offsets = [0, 256], sizes = [1, 128], strides = [1, 1]} : vector<1x384xf32> to vector<1x128xf32>
    %274 = vector.extract_strided_slice %256 {offsets = [0, 256], sizes = [1, 128], strides = [1, 1]} : vector<1x384xf32> to vector<1x128xf32>
    %275 = arith.mulf %264, %274 : vector<1x128xf32>
    %276 = arith.addf %273, %275 : vector<1x128xf32>
    %277 = math.tanh %276 : vector<1x128xf32>
    %cst_72 = arith.constant 1.000000e+00 : f32
    %278 = vector.broadcast %cst_72 : f32 to vector<1x128xf32>
    %279 = arith.subf %278, %272 : vector<1x128xf32>
    %280 = arith.mulf %279, %277 : vector<1x128xf32>
    %281 = arith.mulf %272, %251 : vector<1x128xf32>
    %282 = arith.addf %280, %281 : vector<1x128xf32>
    %c6 = arith.constant 6 : index
    %c0_73 = arith.constant 0 : index
    %283 = vector.load %arg16[%c6, %c0_73] : memref<8x128xf32, #tpu.memory_space<vmem>>, vector<1x128xf32>
    tpu.vector_store %arg16[%c6, %c0_73], %282 {strides = array<i32>} : memref<8x128xf32, #tpu.memory_space<vmem>>, vector<1x128xf32>,
    %284 = vector.extract_strided_slice %63 {offsets = [7, 0], sizes = [1, 384], strides = [1, 1]} : vector<8x384xf32> to vector<1x384xf32>
    %285 = arith.truncf %282 : vector<1x128xf32> to vector<1x128xbf16>
    %cst_74 = arith.constant dense<0.000000e+00> : vector<1x384xf32>
    %286 = tpu.matmul %285, %64, %cst_74 {dimension_numbers = #tpu.dot_dimension_numbers<[1], [0], [0], [1], [0, 0, 1, 1], [], []>} : vector<1x128xbf16>, vector<128x384xbf16>, vector<1x384xf32> -> vector<1x384xf32>
    %287 = arith.addf %286, %65 : vector<1x384xf32>
    %288 = vector.extract_strided_slice %284 {offsets = [0, 0], sizes = [1, 128], strides = [1, 1]} : vector<1x384xf32> to vector<1x128xf32>
    %289 = vector.extract_strided_slice %287 {offsets = [0, 0], sizes = [1, 128], strides = [1, 1]} : vector<1x384xf32> to vector<1x128xf32>
    %290 = arith.addf %288, %289 : vector<1x128xf32>
    %291 = arith.negf %290 : vector<1x128xf32>
    %292 = math.exp %291 : vector<1x128xf32>
    %cst_75 = arith.constant 1.000000e+00 : f32
    %293 = vector.broadcast %cst_75 : f32 to vector<1x128xf32>
    %294 = arith.addf %293, %292 : vector<1x128xf32>
    %295 = arith.divf %293, %294 : vector<1x128xf32>
    %296 = vector.extract_strided_slice %284 {offsets = [0, 128], sizes = [1, 128], strides = [1, 1]} : vector<1x384xf32> to vector<1x128xf32>
    %297 = vector.extract_strided_slice %287 {offsets = [0, 128], sizes = [1, 128], strides = [1, 1]} : vector<1x384xf32> to vector<1x128xf32>
    %298 = arith.addf %296, %297 : vector<1x128xf32>
    %299 = arith.negf %298 : vector<1x128xf32>
    %300 = math.exp %299 : vector<1x128xf32>
    %cst_76 = arith.constant 1.000000e+00 : f32
    %301 = vector.broadcast %cst_76 : f32 to vector<1x128xf32>
    %302 = arith.addf %301, %300 : vector<1x128xf32>
    %303 = arith.divf %301, %302 : vector<1x128xf32>
    %304 = vector.extract_strided_slice %284 {offsets = [0, 256], sizes = [1, 128], strides = [1, 1]} : vector<1x384xf32> to vector<1x128xf32>
    %305 = vector.extract_strided_slice %287 {offsets = [0, 256], sizes = [1, 128], strides = [1, 1]} : vector<1x384xf32> to vector<1x128xf32>
    %306 = arith.mulf %295, %305 : vector<1x128xf32>
    %307 = arith.addf %304, %306 : vector<1x128xf32>
    %308 = math.tanh %307 : vector<1x128xf32>
    %cst_77 = arith.constant 1.000000e+00 : f32
    %309 = vector.broadcast %cst_77 : f32 to vector<1x128xf32>
    %310 = arith.subf %309, %303 : vector<1x128xf32>
    %311 = arith.mulf %310, %308 : vector<1x128xf32>
    %312 = arith.mulf %303, %282 : vector<1x128xf32>
    %313 = arith.addf %311, %312 : vector<1x128xf32>
    %c7 = arith.constant 7 : index
    %c0_78 = arith.constant 0 : index
    %314 = vector.load %arg16[%c7, %c0_78] : memref<8x128xf32, #tpu.memory_space<vmem>>, vector<1x128xf32>
    tpu.vector_store %arg16[%c7, %c0_78], %313 {strides = array<i32>} : memref<8x128xf32, #tpu.memory_space<vmem>>, vector<1x128xf32>,
    %c0_79 = arith.constant 0 : index
    %c0_80 = arith.constant 0 : index
    %315 = vector.load %arg16[%c0_79, %c0_80] : memref<8x128xf32, #tpu.memory_space<vmem>>, vector<8x128xf32>
    %c0_81 = arith.constant 0 : index
    %c0_82 = arith.constant 0 : index
    %316 = vector.load %arg14[%c0_81, %c0_82] : memref<1x128xf32, #tpu.memory_space<vmem>>, vector<1x128xf32>
    %317 = vector.broadcast %316 : vector<1x128xf32> to vector<8x128xf32>
    %318 = arith.mulf %315, %317 : vector<8x128xf32>
    %cst_83 = arith.constant dense<0.000000e+00> : vector<8xf32>
    %319 = vector.multi_reduction <add>, %318, %cst_83 [1] : vector<8x128xf32> to vector<8xf32>
    %320 = vector.shape_cast %319 : vector<8xf32> to vector<8x1xf32>
    %cst_84 = arith.constant dense<0xFF800000> : vector<1xf32>
    %321 = vector.multi_reduction <maximumf>, %320, %cst_84 [0] : vector<8x1xf32> to vector<1xf32>
    %322 = vector.shape_cast %321 : vector<1xf32> to vector<1x1xf32>
    %323 = vector.broadcast %322 : vector<1x1xf32> to vector<8x1xf32>
    %324 = arith.subf %320, %323 : vector<8x1xf32>
    %325 = math.exp %324 : vector<8x1xf32>
    %cst_85 = arith.constant dense<0.000000e+00> : vector<1xf32>
    %326 = vector.multi_reduction <add>, %325, %cst_85 [0] : vector<8x1xf32> to vector<1xf32>
    %327 = vector.shape_cast %326 : vector<1xf32> to vector<1x1xf32>
    %328 = tpu.reciprocal %327 {approx = true} : vector<1x1xf32> -> vector<1x1xf32>
    %329 = vector.broadcast %328 : vector<1x1xf32> to vector<8x1xf32>
    %330 = arith.mulf %325, %329 : vector<8x1xf32>
    %331 = vector.broadcast %330 : vector<8x1xf32> to vector<8x128xf32>
    %332 = arith.mulf %331, %315 : vector<8x128xf32>
    %cst_86 = arith.constant dense<0.000000e+00> : vector<128xf32>
    %333 = vector.multi_reduction <add>, %332, %cst_86 [0] : vector<8x128xf32> to vector<128xf32>
    %334 = vector.shape_cast %333 : vector<128xf32> to vector<1x128xf32>
    %c0_87 = arith.constant 0 : index
    %c0_88 = arith.constant 0 : index
    %335 = vector.load %arg15[%c0_87, %c0_88] : memref<1x128xf32, #tpu.memory_space<vmem>>, vector<1x128xf32>
    tpu.vector_store %arg15[%c0_87, %c0_88], %334 {strides = array<i32>} : memref<1x128xf32, #tpu.memory_space<vmem>>, vector<1x128xf32>,
    return
  }
  func.func @transform_0(%arg0: i32) -> (i32, i32) {
    %c0_i32 = arith.constant 0 : i32
    %c0_i32_0 = arith.constant 0 : i32
    %c0_i32_1 = arith.constant 0 : i32
    return %c0_i32, %c0_i32_0 : i32, i32
  }
  func.func @transform_1(%arg0: i32) -> (i32, i32) {
    %c0_i32 = arith.constant 0 : i32
    %c0_i32_0 = arith.constant 0 : i32
    %c0_i32_1 = arith.constant 0 : i32
    return %c0_i32, %c0_i32_0 : i32, i32
  }
  func.func @transform_2(%arg0: i32) -> (i32, i32) {
    %c0_i32 = arith.constant 0 : i32
    %c0_i32_0 = arith.constant 0 : i32
    %c0_i32_1 = arith.constant 0 : i32
    return %c0_i32, %c0_i32_0 : i32, i32
  }
  func.func @transform_3(%arg0: i32) -> (i32, i32) {
    %c0_i32 = arith.constant 0 : i32
    %c0_i32_0 = arith.constant 0 : i32
    %c0_i32_1 = arith.constant 0 : i32
    return %c0_i32, %c0_i32_0 : i32, i32
  }
  func.func @transform_4(%arg0: i32) -> (i32, i32) {
    %c0_i32 = arith.constant 0 : i32
    %c0_i32_0 = arith.constant 0 : i32
    %c0_i32_1 = arith.constant 0 : i32
    return %c0_i32, %c0_i32_0 : i32, i32
  }
  func.func @transform_5(%arg0: i32) -> (i32, i32) {
    %c0_i32 = arith.constant 0 : i32
    %c0_i32_0 = arith.constant 0 : i32
    %c0_i32_1 = arith.constant 0 : i32
    return %c0_i32, %c0_i32_0 : i32, i32
  }
  func.func @transform_6(%arg0: i32) -> (i32, i32) {
    %c0_i32 = arith.constant 0 : i32
    %c0_i32_0 = arith.constant 0 : i32
    %c0_i32_1 = arith.constant 0 : i32
    return %c0_i32, %c0_i32_0 : i32, i32
  }
  func.func @transform_7(%arg0: i32) -> (i32, i32) {
    %c0_i32 = arith.constant 0 : i32
    %c0_i32_0 = arith.constant 0 : i32
    %c0_i32_1 = arith.constant 0 : i32
    return %c0_i32, %c0_i32_0 : i32, i32
  }
  func.func @transform_8(%arg0: i32) -> (i32, i32) {
    %c0_i32 = arith.constant 0 : i32
    %c0_i32_0 = arith.constant 0 : i32
    %c0_i32_1 = arith.constant 0 : i32
    return %c0_i32, %c0_i32_0 : i32, i32
  }
  func.func @transform_9(%arg0: i32) -> (i32, i32) {
    %c0_i32 = arith.constant 0 : i32
    %c0_i32_0 = arith.constant 0 : i32
    %c0_i32_1 = arith.constant 0 : i32
    return %c0_i32, %c0_i32_0 : i32, i32
  }
  func.func @transform_10(%arg0: i32) -> (i32, i32) {
    %c0_i32 = arith.constant 0 : i32
    %c0_i32_0 = arith.constant 0 : i32
    %c0_i32_1 = arith.constant 0 : i32
    return %c0_i32, %c0_i32_0 : i32, i32
  }
  func.func @transform_11(%arg0: i32) -> (i32, i32) {
    %c0_i32 = arith.constant 0 : i32
    %c0_i32_0 = arith.constant 0 : i32
    %c0_i32_1 = arith.constant 0 : i32
    return %c0_i32, %c0_i32_0 : i32, i32
  }
  func.func @transform_12(%arg0: i32) -> (i32, i32) {
    %c0_i32 = arith.constant 0 : i32
    %c0_i32_0 = arith.constant 0 : i32
    %c0_i32_1 = arith.constant 0 : i32
    return %c0_i32, %c0_i32_0 : i32, i32
  }
  func.func @transform_13(%arg0: i32) -> (i32, i32) {
    %c0_i32 = arith.constant 0 : i32
    %c0_i32_0 = arith.constant 0 : i32
    %c0_i32_1 = arith.constant 0 : i32
    return %c0_i32, %c0_i32_0 : i32, i32
  }
  func.func @transform_14(%arg0: i32) -> (i32, i32) {
    %c0_i32 = arith.constant 0 : i32
    %c0_i32_0 = arith.constant 0 : i32
    %c0_i32_1 = arith.constant 0 : i32
    return %c0_i32, %c0_i32_0 : i32, i32
  }
}

</mosaic_0001>

<llo_original>
// kernel: tpu_custom_call.1
$region0: #{tpu_custom_call.1}
  #allocation0 [shape = 'u32[]', space=smem, size = 0x4, offset = 0x4, fixed_abs, tag = 'smem constant byte address 0x4 - core index']
  #allocation1 [shape = 'u32[72,128]{1,0:T(1,128)}', space=vmem, size = 0x9000, scoped, tag = 'internal scratch']
  #allocation2 [shape = 'f32[8,128]{1,0:T(8,128)}', space=vmem, size = 0x1000, scoped, tag = 'scratch operand']
  %s0 = inlined_call_operand.hbm [shape: bf16[128,128], index: 0, kind: input, shape index: {}]
  %s1 = inlined_call_operand.hbm [shape: f32[128,128], index: 1, kind: input, shape index: {}]
  %s2 = inlined_call_operand.hbm [shape: bf16[8,128], index: 2, kind: input, shape index: {}]
  %s3 = inlined_call_operand.hbm [shape: bf16[128,128], index: 3, kind: input, shape index: {}]
  %s4 = inlined_call_operand.hbm [shape: f32[1,128], index: 4, kind: input, shape index: {}]
  %s5 = inlined_call_operand.hbm [shape: bf16[128,128], index: 5, kind: input, shape index: {}]
  %s6 = inlined_call_operand.hbm [shape: f32[1,128], index: 6, kind: input, shape index: {}]
  %s7 = inlined_call_operand.hbm [shape: bf16[128,128], index: 7, kind: input, shape index: {}]
  %s8 = inlined_call_operand.vmem [shape: f32[1,128], index: 8, kind: input, shape index: {}]
  %s9 = inlined_call_operand.hbm [shape: bf16[128,384], index: 9, kind: input, shape index: {}]
  %s10 = inlined_call_operand.vmem [shape: f32[1,384], index: 10, kind: input, shape index: {}]
  %s11 = inlined_call_operand.hbm [shape: bf16[128,384], index: 11, kind: input, shape index: {}]
  %s12 = inlined_call_operand.vmem [shape: f32[1,384], index: 12, kind: input, shape index: {}]
  %s13 = inlined_call_operand.vmem [shape: f32[1,128], index: 13, kind: input, shape index: {}]
  %s14 = inlined_call_operand.hbm [shape: f32[1,128], index: 14, kind: output, shape index: {}]
  %s15 = sld [smem:[#allocation0]]
  $region106: #{tpu_custom_call.1} parent=0
    _
  %s17 = ssub.s32 1, %s15
  %s18 = scalar_select 0, %s17, %s15
  $region1: #{tpu_custom_call.1} parent=0
    #allocation3 [shape = 'u8[32768]{0}', space=vmem, size = 0x8000, scoped, tag = 'input window, operand 0, single buffered']
    #allocation4 [shape = 's32[1]{0}', space=sflag, size = 0x4, scoped, tag = 'scoped memory for tpu_custom_call.1']
    #allocation5 [shape = 's32[1]{0}', space=sflag, size = 0x4, scoped, tag = 'scoped memory for tpu_custom_call.1']
    #allocation6 [shape = 'u8[65536]{0}', space=vmem, size = 0x10000, scoped, tag = 'input window, operand 1, single buffered']
    #allocation7 [shape = 's32[1]{0}', space=sflag, size = 0x4, scoped, tag = 'scoped memory for tpu_custom_call.1']
    #allocation8 [shape = 'u8[2048]{0}', space=vmem, size = 0x800, scoped, tag = 'input window, operand 2, single buffered']
    #allocation9 [shape = 'u8[32768]{0}', space=vmem, size = 0x8000, scoped, tag = 'input window, operand 3, single buffered']
    #allocation10 [shape = 's32[1]{0}', space=sflag, size = 0x4, scoped, tag = 'scoped memory for tpu_custom_call.1']
    #allocation11 [shape = 'u8[512]{0}', space=vmem, size = 0x400, scoped, tag = 'input window, operand 4, single buffered']
    #allocation12 [shape = 'u8[32768]{0}', space=vmem, size = 0x8000, scoped, tag = 'input window, operand 5, single buffered']
    #allocation13 [shape = 's32[1]{0}', space=sflag, size = 0x4, scoped, tag = 'scoped memory for tpu_custom_call.1']
    #allocation14 [shape = 'u8[512]{0}', space=vmem, size = 0x400, scoped, tag = 'input window, operand 6, single buffered']
    #allocation15 [shape = 'u8[32768]{0}', space=vmem, size = 0x8000, scoped, tag = 'input window, operand 7, single buffered']
    #allocation16 [shape = 's32[1]{0}', space=sflag, size = 0x4, scoped, tag = 'scoped memory for tpu_custom_call.1']
    #allocation17 [shape = 'u8[98304]{0}', space=vmem, size = 0x18000, scoped, tag = 'input window, operand 9, single buffered']
    #allocation18 [shape = 'u8[98304]{0}', space=vmem, size = 0x18000, scoped, tag = 'input window, operand 11, single buffered']
    #allocation19 [shape = 's32[1]{0}', space=sflag, size = 0x4, scoped, tag = 'scoped memory for tpu_custom_call.1']
    #allocation20 [shape = 'u8[512]{0}', space=vmem, size = 0x400, scoped, tag = 'output window, operand 0, single buffered']
    %19 = vsyncpa [#allocation4], 0
    %20 = vsyncpa [#allocation7], 0
    %21 = vsyncpa [#allocation10], 0
    %22 = vsyncpa [#allocation13], 0
    %23 = vsyncpa [#allocation16], 0
    %24 = vsyncpa [#allocation19], 0
    %25 = vsyncpa [#allocation5], 0
    // Predicated region
    $region2: #{tpu_custom_call.1} parent=1 // pred_check
      _
    $region3: #{tpu_custom_call.1} parent=1 // pred_check_branch
      %27 = sbr.rel (0) target = $region5
    $region4: #{tpu_custom_call.1} parent=1 // pred_region
      %29 = vsyncadd [#allocation4], 0
      %s30 = sshll.u32 %s0, 4
      %s31 = int_to_ptr.hbm [resolvable:$true] %s30
      %s32 = sshll.u32 [#allocation3], 4
      %s33 = int_to_ptr.vmem [resolvable:$true] %s32
      %38 = dma.hbm_to_vmem [thread:$0]  %s31, 1024, %s33, [#allocation4], 64, 64, 4
    $region5: #{tpu_custom_call.1} parent=1 // pred_fallthru
      _
    // Predicated region
    $region6: #{tpu_custom_call.1} parent=1 // pred_check
      _
    $region7: #{tpu_custom_call.1} parent=1 // pred_check_branch
      %40 = sbr.rel (0) target = $region9
    $region8: #{tpu_custom_call.1} parent=1 // pred_region
      %42 = vsyncadd [#allocation7], 0
      %s43 = sshll.u32 %s1, 4
      %s44 = int_to_ptr.hbm [resolvable:$true] %s43
      %s45 = sshll.u32 [#allocation6], 4
      %s46 = int_to_ptr.vmem [resolvable:$true] %s45
      %51 = dma.hbm_to_vmem [thread:$0]  %s44, 2048, %s46, [#allocation7], 128, 128, 8
    $region9: #{tpu_custom_call.1} parent=1 // pred_fallthru
      _
    // Predicated region
    $region10: #{tpu_custom_call.1} parent=1 // pred_check
      _
    $region11: #{tpu_custom_call.1} parent=1 // pred_check_branch
      %53 = sbr.rel (0) target = $region13
    $region12: #{tpu_custom_call.1} parent=1 // pred_region
      %55 = vsyncadd [#allocation7], 0
      %s57 = sshll.u32 %s2, 4
      %s58 = int_to_ptr.hbm [resolvable:$true] %s57
      %s59 = sshll.u32 [#allocation8], 4
      %s60 = int_to_ptr.vmem [resolvable:$true] %s59
      %62 = dma.hbm_to_vmem [thread:$0]  %s58, 64, %s60, [#allocation7]
    $region13: #{tpu_custom_call.1} parent=1 // pred_fallthru
      _
    // Predicated region
    $region14: #{tpu_custom_call.1} parent=1 // pred_check
      _
    $region15: #{tpu_custom_call.1} parent=1 // pred_check_branch
      %64 = sbr.rel (0) target = $region17
    $region16: #{tpu_custom_call.1} parent=1 // pred_region
      %66 = vsyncadd [#allocation10], 0
      %s67 = sshll.u32 %s3, 4
      %s68 = int_to_ptr.hbm [resolvable:$true] %s67
      %s69 = sshll.u32 [#allocation9], 4
      %s70 = int_to_ptr.vmem [resolvable:$true] %s69
      %75 = dma.hbm_to_vmem [thread:$0]  %s68, 1024, %s70, [#allocation10], 64, 64, 4
    $region17: #{tpu_custom_call.1} parent=1 // pred_fallthru
      _
    // Predicated region
    $region18: #{tpu_custom_call.1} parent=1 // pred_check
      _
    $region19: #{tpu_custom_call.1} parent=1 // pred_check_branch
      %77 = sbr.rel (0) target = $region21
    $region20: #{tpu_custom_call.1} parent=1 // pred_region
      %79 = vsyncadd [#allocation10], 0
      %s81 = sshll.u32 %s4, 4
      %s82 = int_to_ptr.hbm [resolvable:$true] %s81
      %s83 = sshll.u32 [#allocation11], 4
      %s84 = int_to_ptr.vmem [resolvable:$true] %s83
      %86 = dma.hbm_to_vmem [thread:$0]  %s82, 16, %s84, [#allocation10]
    $region21: #{tpu_custom_call.1} parent=1 // pred_fallthru
      _
    // Predicated region
    $region22: #{tpu_custom_call.1} parent=1 // pred_check
      _
    $region23: #{tpu_custom_call.1} parent=1 // pred_check_branch
      %88 = sbr.rel (0) target = $region25
    $region24: #{tpu_custom_call.1} parent=1 // pred_region
      %90 = vsyncadd [#allocation13], 0
      %s91 = sshll.u32 %s5, 4
      %s92 = int_to_ptr.hbm [resolvable:$true] %s91
      %s93 = sshll.u32 [#allocation12], 4
      %s94 = int_to_ptr.vmem [resolvable:$true] %s93
      %99 = dma.hbm_to_vmem [thread:$0]  %s92, 1024, %s94, [#allocation13], 64, 64, 4
    $region25: #{tpu_custom_call.1} parent=1 // pred_fallthru
      _
    // Predicated region
    $region26: #{tpu_custom_call.1} parent=1 // pred_check
      _
    $region27: #{tpu_custom_call.1} parent=1 // pred_check_branch
      %101 = sbr.rel (0) target = $region29
    $region28: #{tpu_custom_call.1} parent=1 // pred_region
      %103 = vsyncadd [#allocation13], 0
      %s105 = sshll.u32 %s6, 4
      %s106 = int_to_ptr.hbm [resolvable:$true] %s105
      %s107 = sshll.u32 [#allocation14], 4
      %s108 = int_to_ptr.vmem [resolvable:$true] %s107
      %110 = dma.hbm_to_vmem [thread:$0]  %s106, 16, %s108, [#allocation13]
    $region29: #{tpu_custom_call.1} parent=1 // pred_fallthru
      _
    // Predicated region
    $region30: #{tpu_custom_call.1} parent=1 // pred_check
      _
    $region31: #{tpu_custom_call.1} parent=1 // pred_check_branch
      %112 = sbr.rel (0) target = $region33
    $region32: #{tpu_custom_call.1} parent=1 // pred_region
      %114 = vsyncadd [#allocation16], 0
      %s115 = sshll.u32 %s7, 4
      %s116 = int_to_ptr.hbm [resolvable:$true] %s115
      %s117 = sshll.u32 [#allocation15], 4
      %s118 = int_to_ptr.vmem [resolvable:$true] %s117
      %123 = dma.hbm_to_vmem [thread:$0]  %s116, 1024, %s118, [#allocation16], 64, 64, 4
    $region33: #{tpu_custom_call.1} parent=1 // pred_fallthru
      _
    // Predicated region
    $region34: #{tpu_custom_call.1} parent=1 // pred_check
      _
    $region35: #{tpu_custom_call.1} parent=1 // pred_check_branch
      %125 = sbr.rel (0) target = $region37
    $region36: #{tpu_custom_call.1} parent=1 // pred_region
      _
    $region37: #{tpu_custom_call.1} parent=1 // pred_fallthru
      _
    // Predicated region
    $region38: #{tpu_custom_call.1} parent=1 // pred_check
      _
    $region39: #{tpu_custom_call.1} parent=1 // pred_check_branch
      %127 = sbr.rel (0) target = $region41
    $region40: #{tpu_custom_call.1} parent=1 // pred_region
      %129 = vsyncadd [#allocation16], 0
      %s130 = sshll.u32 %s9, 4
      %s131 = int_to_ptr.hbm [resolvable:$true] %s130
      %s132 = sshll.u32 [#allocation17], 4
      %s133 = int_to_ptr.vmem [resolvable:$true] %s132
      %138 = dma.hbm_to_vmem [thread:$0]  %s131, 3072, %s133, [#allocation16], 192, 192, 12
    $region41: #{tpu_custom_call.1} parent=1 // pred_fallthru
      _
    // Predicated region
    $region42: #{tpu_custom_call.1} parent=1 // pred_check
      _
    $region43: #{tpu_custom_call.1} parent=1 // pred_check_branch
      %140 = sbr.rel (0) target = $region45
    $region44: #{tpu_custom_call.1} parent=1 // pred_region
      _
    $region45: #{tpu_custom_call.1} parent=1 // pred_fallthru
      _
    // Predicated region
    $region46: #{tpu_custom_call.1} parent=1 // pred_check
      _
    $region47: #{tpu_custom_call.1} parent=1 // pred_check_branch
      %142 = sbr.rel (0) target = $region49
    $region48: #{tpu_custom_call.1} parent=1 // pred_region
      %144 = vsyncadd [#allocation19], 0
      %s145 = sshll.u32 %s11, 4
      %s146 = int_to_ptr.hbm [resolvable:$true] %s145
      %s147 = sshll.u32 [#allocation18], 4
      %s148 = int_to_ptr.vmem [resolvable:$true] %s147
      %153 = dma.hbm_to_vmem [thread:$0]  %s146, 3072, %s148, [#allocation19], 192, 192, 12
    $region49: #{tpu_custom_call.1} parent=1 // pred_fallthru
      _
    // Predicated region
    $region50: #{tpu_custom_call.1} parent=1 // pred_check
      _
    $region51: #{tpu_custom_call.1} parent=1 // pred_check_branch
      %155 = sbr.rel (0) target = $region53
    $region52: #{tpu_custom_call.1} parent=1 // pred_region
      _
    $region53: #{tpu_custom_call.1} parent=1 // pred_fallthru
      _
    // Predicated region
    $region54: #{tpu_custom_call.1} parent=1 // pred_check
      _
    $region55: #{tpu_custom_call.1} parent=1 // pred_check_branch
      %157 = sbr.rel (0) target = $region57
    $region56: #{tpu_custom_call.1} parent=1 // pred_region
      _
    $region57: #{tpu_custom_call.1} parent=1 // pred_fallthru
      _
    // Predicated region
    $region58: #{tpu_custom_call.1} parent=1 // pred_check
      _
    $region59: #{tpu_custom_call.1} parent=1 // pred_check_branch
      %159 = sbr.rel (0) target = $region61
    $region60: #{tpu_custom_call.1} parent=1 // pred_region
      %161 = dma.done [#allocation4], 1024
    $region61: #{tpu_custom_call.1} parent=1 // pred_fallthru
      _
    // Predicated region
    $region62: #{tpu_custom_call.1} parent=1 // pred_check
      _
    $region63: #{tpu_custom_call.1} parent=1 // pred_check_branch
      %163 = sbr.rel (0) target = $region65
    $region64: #{tpu_custom_call.1} parent=1 // pred_region
      %165 = dma.done [#allocation7], 2048
    $region65: #{tpu_custom_call.1} parent=1 // pred_fallthru
      _
    // Predicated region
    $region66: #{tpu_custom_call.1} parent=1 // pred_check
      _
    $region67: #{tpu_custom_call.1} parent=1 // pred_check_branch
      %167 = sbr.rel (0) target = $region69
    $region68: #{tpu_custom_call.1} parent=1 // pred_region
      %169 = dma.done [#allocation7], 64
    $region69: #{tpu_custom_call.1} parent=1 // pred_fallthru
      _
    // Predicated region
    $region70: #{tpu_custom_call.1} parent=1 // pred_check
      _
    $region71: #{tpu_custom_call.1} parent=1 // pred_check_branch
      %171 = sbr.rel (0) target = $region73
    $region72: #{tpu_custom_call.1} parent=1 // pred_region
      %173 = dma.done [#allocation10], 1024
    $region73: #{tpu_custom_call.1} parent=1 // pred_fallthru
      _
    // Predicated region
    $region74: #{tpu_custom_call.1} parent=1 // pred_check
      _
    $region75: #{tpu_custom_call.1} parent=1 // pred_check_branch
      %175 = sbr.rel (0) target = $region77
    $region76: #{tpu_custom_call.1} parent=1 // pred_region
      %177 = dma.done [#allocation10], 16
    $region77: #{tpu_custom_call.1} parent=1 // pred_fallthru
      _
    // Predicated region
    $region78: #{tpu_custom_call.1} parent=1 // pred_check
      _
    $region79: #{tpu_custom_call.1} parent=1 // pred_check_branch
      %179 = sbr.rel (0) target = $region81
    $region80: #{tpu_custom_call.1} parent=1 // pred_region
      %181 = dma.done [#allocation13], 1024
    $region81: #{tpu_custom_call.1} parent=1 // pred_fallthru
      _
    // Predicated region
    $region82: #{tpu_custom_call.1} parent=1 // pred_check
      _
    $region83: #{tpu_custom_call.1} parent=1 // pred_check_branch
      %183 = sbr.rel (0) target = $region85
    $region84: #{tpu_custom_call.1} parent=1 // pred_region
      %185 = dma.done [#allocation13], 16
    $region85: #{tpu_custom_call.1} parent=1 // pred_fallthru
      _
    // Predicated region
    $region86: #{tpu_custom_call.1} parent=1 // pred_check
      _
    $region87: #{tpu_custom_call.1} parent=1 // pred_check_branch
      %187 = sbr.rel (0) target = $region89
    $region88: #{tpu_custom_call.1} parent=1 // pred_region
      %189 = dma.done [#allocation16], 1024
    $region89: #{tpu_custom_call.1} parent=1 // pred_fallthru
      _
    // Predicated region
    $region90: #{tpu_custom_call.1} parent=1 // pred_check
      _
    $region91: #{tpu_custom_call.1} parent=1 // pred_check_branch
      %191 = sbr.rel (0) target = $region93
    $region92: #{tpu_custom_call.1} parent=1 // pred_region
      %193 = dma.done [#allocation16], 3072
    $region93: #{tpu_custom_call.1} parent=1 // pred_fallthru
      _
    // Predicated region
    $region94: #{tpu_custom_call.1} parent=1 // pred_check
      _
    $region95: #{tpu_custom_call.1} parent=1 // pred_check_branch
      %195 = sbr.rel (0) target = $region97
    $region96: #{tpu_custom_call.1} parent=1 // pred_region
      %197 = dma.done [#allocation19], 3072
    $region97: #{tpu_custom_call.1} parent=1 // pred_fallthru
      _
    %v199 = vld [vmem:[#allocation3] sm:$0xf]
    %v200 = vld [vmem:[#allocation3 + $0x4] sm:$0xf]
    %v201 = vld [vmem:[#allocation3 + $0x8] sm:$0xf]
    %v202 = vld [vmem:[#allocation3 + $0xc] sm:$0xf]
    %v203 = vld [vmem:[#allocation3 + $0x10] sm:$0xf]
    %v204 = vld [vmem:[#allocation3 + $0x14] sm:$0xf]
    %v205 = vld [vmem:[#allocation3 + $0x18] sm:$0xf]
    %v206 = vld [vmem:[#allocation3 + $0x1c] sm:$0xf]
    %v207 = vld [vmem:[#allocation3 + $0x20] sm:$0xf]
    %v208 = vld [vmem:[#allocation3 + $0x24] sm:$0xf]
    %v209 = vld [vmem:[#allocation3 + $0x28] sm:$0xf]
    %v210 = vld [vmem:[#allocation3 + $0x2c] sm:$0xf]
    %v211 = vld [vmem:[#allocation3 + $0x30] sm:$0xf]
    %v212 = vld [vmem:[#allocation3 + $0x34] sm:$0xf]
    %v213 = vld [vmem:[#allocation3 + $0x38] sm:$0xf]
    %v214 = vld [vmem:[#allocation3 + $0x3c] sm:$0xf]
    %v215 = vld [vmem:[#allocation9] sm:$0xf]
    %v216 = vld [vmem:[#allocation9 + $0x4] sm:$0xf]
    %v217 = vld [vmem:[#allocation9 + $0x8] sm:$0xf]
    %v218 = vld [vmem:[#allocation9 + $0xc] sm:$0xf]
    %v219 = vld [vmem:[#allocation9 + $0x10] sm:$0xf]
    %v220 = vld [vmem:[#allocation9 + $0x14] sm:$0xf]
    %v221 = vld [vmem:[#allocation9 + $0x18] sm:$0xf]
    %v222 = vld [vmem:[#allocation9 + $0x1c] sm:$0xf]
    %v223 = vld [vmem:[#allocation9 + $0x20] sm:$0xf]
    %v224 = vld [vmem:[#allocation9 + $0x24] sm:$0xf]
    %v225 = vld [vmem:[#allocation9 + $0x28] sm:$0xf]
    %v226 = vld [vmem:[#allocation9 + $0x2c] sm:$0xf]
    %v227 = vld [vmem:[#allocation9 + $0x30] sm:$0xf]
    %v228 = vld [vmem:[#allocation9 + $0x34] sm:$0xf]
    %v229 = vld [vmem:[#allocation9 + $0x38] sm:$0xf]
    %v230 = vld [vmem:[#allocation9 + $0x3c] sm:$0xf]
    %v231 = vld [vmem:[#allocation11] sm:$0x1]
    %v233 = vperm.slane %v231, 0
    %v251 = vunpack.c.l.b16 %v199
    %v252 = vunpack.c.l.b16 %v200
    %v253 = vunpack.c.l.b16 %v201
    %v254 = vunpack.c.l.b16 %v202
    %v255 = vunpack.c.l.b16 %v203
    %v256 = vunpack.c.l.b16 %v204
    %v257 = vunpack.c.l.b16 %v205
    %v258 = vunpack.c.l.b16 %v206
    %v259 = vunpack.c.l.b16 %v207
    %v260 = vunpack.c.l.b16 %v208
    %v261 = vunpack.c.l.b16 %v209
    %v262 = vunpack.c.l.b16 %v210
    %v263 = vunpack.c.l.b16 %v211
    %v264 = vunpack.c.l.b16 %v212
    %v265 = vunpack.c.l.b16 %v213
    %v266 = vunpack.c.l.b16 %v214
    %v267 = vpack.c.b16 %v252, %v251
    %v268 = vpack.c.b16 %v254, %v253
    %v269 = vpack.c.b16 %v256, %v255
    %v270 = vpack.c.b16 %v258, %v257
    %v271 = vpack.c.b16 %v260, %v259
    %v272 = vpack.c.b16 %v262, %v261
    %v273 = vpack.c.b16 %v264, %v263
    %v274 = vpack.c.b16 %v266, %v265
    %v299 = vunpack.c.l.b16 %v215
    %v300 = vunpack.c.l.b16 %v216
    %v301 = vunpack.c.l.b16 %v217
    %v302 = vunpack.c.l.b16 %v218
    %v303 = vunpack.c.l.b16 %v219
    %v304 = vunpack.c.l.b16 %v220
    %v305 = vunpack.c.l.b16 %v221
    %v306 = vunpack.c.l.b16 %v222
    %v307 = vunpack.c.l.b16 %v223
    %v308 = vunpack.c.l.b16 %v224
    %v309 = vunpack.c.l.b16 %v225
    %v310 = vunpack.c.l.b16 %v226
    %v311 = vunpack.c.l.b16 %v227
    %v312 = vunpack.c.l.b16 %v228
    %v313 = vunpack.c.l.b16 %v229
    %v314 = vunpack.c.l.b16 %v230
    %v315 = vpack.c.b16 %v300, %v299
    %v316 = vpack.c.b16 %v302, %v301
    %v317 = vpack.c.b16 %v304, %v303
    %v318 = vpack.c.b16 %v306, %v305
    %v319 = vpack.c.b16 %v308, %v307
    %v320 = vpack.c.b16 %v310, %v309
    %v321 = vpack.c.b16 %v312, %v311
    %v322 = vpack.c.b16 %v314, %v313
    %331 = vmatpush.bf16.msra.mxu0 %v322
    %332 = vmatpush.bf16.msra.mxu0 %v321
    %333 = vmatpush.bf16.msra.mxu0 %v320
    %334 = vmatpush.bf16.msra.mxu0 %v319
    %335 = vmatpush.bf16.msra.mxu0 %v318
    %336 = vmatpush.bf16.msra.mxu0 %v317
    %337 = vmatpush.bf16.msra.mxu0 %v316
    %338 = vmatpush.bf16.msra.mxu0 %v315
    %339 = vmatmul.bf16.gmra.mxu0 %v267
    %v340 = vpop.f32.mrf.mxu0
    %v341 = vadd.f32 %v233, %v340
    %v342 = vpop.f32.mrf.mxu0
    %v343 = vadd.f32 %v233, %v342
    %344 = vmatmul.bf16.gmra.mxu0 %v268
    %v345 = vpop.f32.mrf.mxu0
    %v346 = vadd.f32 %v233, %v345
    %v347 = vpop.f32.mrf.mxu0
    %v348 = vadd.f32 %v233, %v347
    %349 = vmatmul.bf16.gmra.mxu0 %v269
    %v350 = vpop.f32.mrf.mxu0
    %v351 = vadd.f32 %v233, %v350
    %v352 = vpop.f32.mrf.mxu0
    %v353 = vadd.f32 %v233, %v352
    %354 = vmatmul.bf16.gmra.mxu0 %v270
    %v355 = vpop.f32.mrf.mxu0
    %v356 = vadd.f32 %v233, %v355
    %v357 = vpop.f32.mrf.mxu0
    %v358 = vadd.f32 %v233, %v357
    %359 = vmatmul.bf16.gmra.mxu0 %v271
    %v360 = vpop.f32.mrf.mxu0
    %v361 = vadd.f32 %v233, %v360
    %v362 = vpop.f32.mrf.mxu0
    %v363 = vadd.f32 %v233, %v362
    %364 = vmatmul.bf16.gmra.mxu0 %v272
    %v365 = vpop.f32.mrf.mxu0
    %v366 = vadd.f32 %v233, %v365
    %v367 = vpop.f32.mrf.mxu0
    %v368 = vadd.f32 %v233, %v367
    %369 = vmatmul.bf16.gmra.mxu0 %v273
    %v370 = vpop.f32.mrf.mxu0
    %v371 = vadd.f32 %v233, %v370
    %v372 = vpop.f32.mrf.mxu0
    %v373 = vadd.f32 %v233, %v372
    %374 = vmatmul.bf16.gmra.mxu0 %v274
    %v375 = vpop.f32.mrf.mxu0
    %v376 = vadd.f32 %v233, %v375
    %v377 = vpop.f32.mrf.mxu0
    %v378 = vadd.f32 %v233, %v377
    %379 = vdwg.mxu0
    %v380 = vxor.u32 %v341, 2147483648
    %v381 = vxor.u32 %v343, 2147483648
    %v382 = vxor.u32 %v346, 2147483648
    %v383 = vxor.u32 %v348, 2147483648
    %v384 = vxor.u32 %v351, 2147483648
    %v385 = vxor.u32 %v353, 2147483648
    %v386 = vxor.u32 %v356, 2147483648
    %v387 = vxor.u32 %v358, 2147483648
    %v388 = vxor.u32 %v361, 2147483648
    %v389 = vxor.u32 %v363, 2147483648
    %v390 = vxor.u32 %v366, 2147483648
    %v391 = vxor.u32 %v368, 2147483648
    %v392 = vxor.u32 %v371, 2147483648
    %v393 = vxor.u32 %v373, 2147483648
    %v394 = vxor.u32 %v376, 2147483648
    %v395 = vxor.u32 %v378, 2147483648
    %v396 = vmul.f32 %v380, 1.442695
    %v397 = vpow.pop %v396
    %v398 = vmul.f32 %v381, 1.442695
    %v399 = vpow.pop %v398
    %v400 = vmul.f32 %v382, 1.442695
    %v401 = vpow.pop %v400
    %v402 = vmul.f32 %v383, 1.442695
    %v403 = vpow.pop %v402
    %v404 = vmul.f32 %v384, 1.442695
    %v405 = vpow.pop %v404
    %v406 = vmul.f32 %v385, 1.442695
    %v407 = vpow.pop %v406
    %v408 = vmul.f32 %v386, 1.442695
    %v409 = vpow.pop %v408
    %v410 = vmul.f32 %v387, 1.442695
    %v411 = vpow.pop %v410
    %v412 = vmul.f32 %v388, 1.442695
    %v413 = vpow.pop %v412
    %v414 = vmul.f32 %v389, 1.442695
    %v415 = vpow.pop %v414
    %v416 = vmul.f32 %v390, 1.442695
    %v417 = vpow.pop %v416
    %v418 = vmul.f32 %v391, 1.442695
    %v419 = vpow.pop %v418
    %v420 = vmul.f32 %v392, 1.442695
    %v421 = vpow.pop %v420
    %v422 = vmul.f32 %v393, 1.442695
    %v423 = vpow.pop %v422
    %v424 = vmul.f32 %v394, 1.442695
    %v425 = vpow.pop %v424
    %v426 = vmul.f32 %v395, 1.442695
    %v427 = vpow.pop %v426
    %v428 = vadd.f32 %v397, 1.0
    %v429 = vadd.f32 %v399, 1.0
    %v430 = vadd.f32 %v401, 1.0
    %v431 = vadd.f32 %v403, 1.0
    %v432 = vadd.f32 %v405, 1.0
    %v433 = vadd.f32 %v407, 1.0
    %v434 = vadd.f32 %v409, 1.0
    %v435 = vadd.f32 %v411, 1.0
    %v436 = vadd.f32 %v413, 1.0
    %v437 = vadd.f32 %v415, 1.0
    %v438 = vadd.f32 %v417, 1.0
    %v439 = vadd.f32 %v419, 1.0
    %v440 = vadd.f32 %v421, 1.0
    %v441 = vadd.f32 %v423, 1.0
    %v442 = vadd.f32 %v425, 1.0
    %v443 = vadd.f32 %v427, 1.0
    %v444 = vrcp.pop %v428
    %v445 = vmul.f32 %v428, %v444
    %v446 = vsub.f32 1.0, %v445
    %v447 = vmul.f32 %v444, %v446
    %v448 = vadd.f32 %v444, %v447
    %vm449 = vweird.f32 %v428
    %vm450 = vweird.f32 %v444
    %vm451 = vmor %vm449, %vm450
    %v452 = vsel %vm451, %v444, %v448
    %v453 = vand.u32 2147483647, %v428
    %vm454 = vcmp.eq.f32.partialorder %v453, 8.507059e+37
    %v455 = vand.u32 %v428, 2147483648
    %v456 = vor.u32 1.1754944e-38, %v455
    %v457 = vsel %vm454, %v456, %v452
    %v458 = vmul.f32 1.0, %v457
    %v459 = vrcp.pop %v429
    %v460 = vmul.f32 %v429, %v459
    %v461 = vsub.f32 1.0, %v460
    %v462 = vmul.f32 %v459, %v461
    %v463 = vadd.f32 %v459, %v462
    %vm464 = vweird.f32 %v429
    %vm465 = vweird.f32 %v459
    %vm466 = vmor %vm464, %vm465
    %v467 = vsel %vm466, %v459, %v463
    %v468 = vand.u32 2147483647, %v429
    %vm469 = vcmp.eq.f32.partialorder %v468, 8.507059e+37
    %v470 = vand.u32 %v429, 2147483648
    %v471 = vor.u32 1.1754944e-38, %v470
    %v472 = vsel %vm469, %v471, %v467
    %v473 = vmul.f32 1.0, %v472
    %v474 = vrcp.pop %v430
    %v475 = vmul.f32 %v430, %v474
    %v476 = vsub.f32 1.0, %v475
    %v477 = vmul.f32 %v474, %v476
    %v478 = vadd.f32 %v474, %v477
    %vm479 = vweird.f32 %v430
    %vm480 = vweird.f32 %v474
    %vm481 = vmor %vm479, %vm480
    %v482 = vsel %vm481, %v474, %v478
    %v483 = vand.u32 2147483647, %v430
    %vm484 = vcmp.eq.f32.partialorder %v483, 8.507059e+37
    %v485 = vand.u32 %v430, 2147483648
    %v486 = vor.u32 1.1754944e-38, %v485
    %v487 = vsel %vm484, %v486, %v482
    %v488 = vmul.f32 1.0, %v487
    %v489 = vrcp.pop %v431
    %v490 = vmul.f32 %v431, %v489
    %v491 = vsub.f32 1.0, %v490
    %v492 = vmul.f32 %v489, %v491
    %v493 = vadd.f32 %v489, %v492
    %vm494 = vweird.f32 %v431
    %vm495 = vweird.f32 %v489
    %vm496 = vmor %vm494, %vm495
    %v497 = vsel %vm496, %v489, %v493
    %v498 = vand.u32 2147483647, %v431
    %vm499 = vcmp.eq.f32.partialorder %v498, 8.507059e+37
    %v500 = vand.u32 %v431, 2147483648
    %v501 = vor.u32 1.1754944e-38, %v500
    %v502 = vsel %vm499, %v501, %v497
    %v503 = vmul.f32 1.0, %v502
    %v504 = vrcp.pop %v432
    %v505 = vmul.f32 %v432, %v504
    %v506 = vsub.f32 1.0, %v505
    %v507 = vmul.f32 %v504, %v506
    %v508 = vadd.f32 %v504, %v507
    %vm509 = vweird.f32 %v432
    %vm510 = vweird.f32 %v504
    %vm511 = vmor %vm509, %vm510
    %v512 = vsel %vm511, %v504, %v508
    %v513 = vand.u32 2147483647, %v432
    %vm514 = vcmp.eq.f32.partialorder %v513, 8.507059e+37
    %v515 = vand.u32 %v432, 2147483648
    %v516 = vor.u32 1.1754944e-38, %v515
    %v517 = vsel %vm514, %v516, %v512
    %v518 = vmul.f32 1.0, %v517
    %v519 = vrcp.pop %v433
    %v520 = vmul.f32 %v433, %v519
    %v521 = vsub.f32 1.0, %v520
    %v522 = vmul.f32 %v519, %v521
    %v523 = vadd.f32 %v519, %v522
    %vm524 = vweird.f32 %v433
    %vm525 = vweird.f32 %v519
    %vm526 = vmor %vm524, %vm525
    %v527 = vsel %vm526, %v519, %v523
    %v528 = vand.u32 2147483647, %v433
    %vm529 = vcmp.eq.f32.partialorder %v528, 8.507059e+37
    %v530 = vand.u32 %v433, 2147483648
    %v531 = vor.u32 1.1754944e-38, %v530
    %v532 = vsel %vm529, %v531, %v527
    %v533 = vmul.f32 1.0, %v532
    %v534 = vrcp.pop %v434
    %v535 = vmul.f32 %v434, %v534
    %v536 = vsub.f32 1.0, %v535
    %v537 = vmul.f32 %v534, %v536
    %v538 = vadd.f32 %v534, %v537
    %vm539 = vweird.f32 %v434
    %vm540 = vweird.f32 %v534
    %vm541 = vmor %vm539, %vm540
    %v542 = vsel %vm541, %v534, %v538
    %v543 = vand.u32 2147483647, %v434
    %vm544 = vcmp.eq.f32.partialorder %v543, 8.507059e+37
    %v545 = vand.u32 %v434, 2147483648
    %v546 = vor.u32 1.1754944e-38, %v545
    %v547 = vsel %vm544, %v546, %v542
    %v548 = vmul.f32 1.0, %v547
    %v549 = vrcp.pop %v435
    %v550 = vmul.f32 %v435, %v549
    %v551 = vsub.f32 1.0, %v550
    %v552 = vmul.f32 %v549, %v551
    %v553 = vadd.f32 %v549, %v552
    %vm554 = vweird.f32 %v435
    %vm555 = vweird.f32 %v549
    %vm556 = vmor %vm554, %vm555
    %v557 = vsel %vm556, %v549, %v553
    %v558 = vand.u32 2147483647, %v435
    %vm559 = vcmp.eq.f32.partialorder %v558, 8.507059e+37
    %v560 = vand.u32 %v435, 2147483648
    %v561 = vor.u32 1.1754944e-38, %v560
    %v562 = vsel %vm559, %v561, %v557
    %v563 = vmul.f32 1.0, %v562
    %v564 = vrcp.pop %v436
    %v565 = vmul.f32 %v436, %v564
    %v566 = vsub.f32 1.0, %v565
    %v567 = vmul.f32 %v564, %v566
    %v568 = vadd.f32 %v564, %v567
    %vm569 = vweird.f32 %v436
    %vm570 = vweird.f32 %v564
    %vm571 = vmor %vm569, %vm570
    %v572 = vsel %vm571, %v564, %v568
    %v573 = vand.u32 2147483647, %v436
    %vm574 = vcmp.eq.f32.partialorder %v573, 8.507059e+37
    %v575 = vand.u32 %v436, 2147483648
    %v576 = vor.u32 1.1754944e-38, %v575
    %v577 = vsel %vm574, %v576, %v572
    %v578 = vmul.f32 1.0, %v577
    %v579 = vrcp.pop %v437
    %v580 = vmul.f32 %v437, %v579
    %v581 = vsub.f32 1.0, %v580
    %v582 = vmul.f32 %v579, %v581
    %v583 = vadd.f32 %v579, %v582
    %vm584 = vweird.f32 %v437
    %vm585 = vweird.f32 %v579
    %vm586 = vmor %vm584, %vm585
    %v587 = vsel %vm586, %v579, %v583
    %v588 = vand.u32 2147483647, %v437
    %vm589 = vcmp.eq.f32.partialorder %v588, 8.507059e+37
    %v590 = vand.u32 %v437, 2147483648
    %v591 = vor.u32 1.1754944e-38, %v590
    %v592 = vsel %vm589, %v591, %v587
    %v593 = vmul.f32 1.0, %v592
    %v594 = vrcp.pop %v438
    %v595 = vmul.f32 %v438, %v594
    %v596 = vsub.f32 1.0, %v595
    %v597 = vmul.f32 %v594, %v596
    %v598 = vadd.f32 %v594, %v597
    %vm599 = vweird.f32 %v438
    %vm600 = vweird.f32 %v594
    %vm601 = vmor %vm599, %vm600
    %v602 = vsel %vm601, %v594, %v598
    %v603 = vand.u32 2147483647, %v438
    %vm604 = vcmp.eq.f32.partialorder %v603, 8.507059e+37
    %v605 = vand.u32 %v438, 2147483648
    %v606 = vor.u32 1.1754944e-38, %v605
    %v607 = vsel %vm604, %v606, %v602
    %v608 = vmul.f32 1.0, %v607
    %v609 = vrcp.pop %v439
    %v610 = vmul.f32 %v439, %v609
    %v611 = vsub.f32 1.0, %v610
    %v612 = vmul.f32 %v609, %v611
    %v613 = vadd.f32 %v609, %v612
    %vm614 = vweird.f32 %v439
    %vm615 = vweird.f32 %v609
    %vm616 = vmor %vm614, %vm615
    %v617 = vsel %vm616, %v609, %v613
    %v618 = vand.u32 2147483647, %v439
    %vm619 = vcmp.eq.f32.partialorder %v618, 8.507059e+37
    %v620 = vand.u32 %v439, 2147483648
    %v621 = vor.u32 1.1754944e-38, %v620
    %v622 = vsel %vm619, %v621, %v617
    %v623 = vmul.f32 1.0, %v622
    %v624 = vrcp.pop %v440
    %v625 = vmul.f32 %v440, %v624
    %v626 = vsub.f32 1.0, %v625
    %v627 = vmul.f32 %v624, %v626
    %v628 = vadd.f32 %v624, %v627
    %vm629 = vweird.f32 %v440
    %vm630 = vweird.f32 %v624
    %vm631 = vmor %vm629, %vm630
    %v632 = vsel %vm631, %v624, %v628
    %v633 = vand.u32 2147483647, %v440
    %vm634 = vcmp.eq.f32.partialorder %v633, 8.507059e+37
    %v635 = vand.u32 %v440, 2147483648
    %v636 = vor.u32 1.1754944e-38, %v635
    %v637 = vsel %vm634, %v636, %v632
    %v638 = vmul.f32 1.0, %v637
    %v639 = vrcp.pop %v441
    %v640 = vmul.f32 %v441, %v639
    %v641 = vsub.f32 1.0, %v640
    %v642 = vmul.f32 %v639, %v641
    %v643 = vadd.f32 %v639, %v642
    %vm644 = vweird.f32 %v441
    %vm645 = vweird.f32 %v639
    %vm646 = vmor %vm644, %vm645
    %v647 = vsel %vm646, %v639, %v643
    %v648 = vand.u32 2147483647, %v441
    %vm649 = vcmp.eq.f32.partialorder %v648, 8.507059e+37
    %v650 = vand.u32 %v441, 2147483648
    %v651 = vor.u32 1.1754944e-38, %v650
    %v652 = vsel %vm649, %v651, %v647
    %v653 = vmul.f32 1.0, %v652
    %v654 = vrcp.pop %v442
    %v655 = vmul.f32 %v442, %v654
    %v656 = vsub.f32 1.0, %v655
    %v657 = vmul.f32 %v654, %v656
    %v658 = vadd.f32 %v654, %v657
    %vm659 = vweird.f32 %v442
    %vm660 = vweird.f32 %v654
    %vm661 = vmor %vm659, %vm660
    %v662 = vsel %vm661, %v654, %v658
    %v663 = vand.u32 2147483647, %v442
    %vm664 = vcmp.eq.f32.partialorder %v663, 8.507059e+37
    %v665 = vand.u32 %v442, 2147483648
    %v666 = vor.u32 1.1754944e-38, %v665
    %v667 = vsel %vm664, %v666, %v662
    %v668 = vmul.f32 1.0, %v667
    %v669 = vrcp.pop %v443
    %v670 = vmul.f32 %v443, %v669
    %v671 = vsub.f32 1.0, %v670
    %v672 = vmul.f32 %v669, %v671
    %v673 = vadd.f32 %v669, %v672
    %vm674 = vweird.f32 %v443
    %vm675 = vweird.f32 %v669
    %vm676 = vmor %vm674, %vm675
    %v677 = vsel %vm676, %v669, %v673
    %v678 = vand.u32 2147483647, %v443
    %vm679 = vcmp.eq.f32.partialorder %v678, 8.507059e+37
    %v680 = vand.u32 %v443, 2147483648
    %v681 = vor.u32 1.1754944e-38, %v680
    %v682 = vsel %vm679, %v681, %v677
    %v683 = vmul.f32 1.0, %v682
    %v684 = vpack.c.bf16 %v473, %v458
    %v685 = vpack.c.bf16 %v503, %v488
    %v686 = vpack.c.bf16 %v533, %v518
    %v687 = vpack.c.bf16 %v563, %v548
    %v688 = vpack.c.bf16 %v593, %v578
    %v689 = vpack.c.bf16 %v623, %v608
    %v690 = vpack.c.bf16 %v653, %v638
    %v691 = vpack.c.bf16 %v683, %v668
    %v692 = vld [vmem:[#allocation12] sm:$0xf]
    %v693 = vld [vmem:[#allocation12 + $0x4] sm:$0xf]
    %v694 = vld [vmem:[#allocation12 + $0x8] sm:$0xf]
    %v695 = vld [vmem:[#allocation12 + $0xc] sm:$0xf]
    %v696 = vld [vmem:[#allocation12 + $0x10] sm:$0xf]
    %v697 = vld [vmem:[#allocation12 + $0x14] sm:$0xf]
    %v698 = vld [vmem:[#allocation12 + $0x18] sm:$0xf]
    %v699 = vld [vmem:[#allocation12 + $0x1c] sm:$0xf]
    %v700 = vld [vmem:[#allocation12 + $0x20] sm:$0xf]
    %v701 = vld [vmem:[#allocation12 + $0x24] sm:$0xf]
    %v702 = vld [vmem:[#allocation12 + $0x28] sm:$0xf]
    %v703 = vld [vmem:[#allocation12 + $0x2c] sm:$0xf]
    %v704 = vld [vmem:[#allocation12 + $0x30] sm:$0xf]
    %v705 = vld [vmem:[#allocation12 + $0x34] sm:$0xf]
    %v706 = vld [vmem:[#allocation12 + $0x38] sm:$0xf]
    %v707 = vld [vmem:[#allocation12 + $0x3c] sm:$0xf]
    %v708 = vld [vmem:[#allocation14] sm:$0x1]
    %v710 = vperm.slane %v708, 0
    %v728 = vunpack.c.l.b16 %v692
    %v729 = vunpack.c.l.b16 %v693
    %v730 = vunpack.c.l.b16 %v694
    %v731 = vunpack.c.l.b16 %v695
    %v732 = vunpack.c.l.b16 %v696
    %v733 = vunpack.c.l.b16 %v697
    %v734 = vunpack.c.l.b16 %v698
    %v735 = vunpack.c.l.b16 %v699
    %v736 = vunpack.c.l.b16 %v700
    %v737 = vunpack.c.l.b16 %v701
    %v738 = vunpack.c.l.b16 %v702
    %v739 = vunpack.c.l.b16 %v703
    %v740 = vunpack.c.l.b16 %v704
    %v741 = vunpack.c.l.b16 %v705
    %v742 = vunpack.c.l.b16 %v706
    %v743 = vunpack.c.l.b16 %v707
    %v744 = vpack.c.b16 %v729, %v728
    %v745 = vpack.c.b16 %v731, %v730
    %v746 = vpack.c.b16 %v733, %v732
    %v747 = vpack.c.b16 %v735, %v734
    %v748 = vpack.c.b16 %v737, %v736
    %v749 = vpack.c.b16 %v739, %v738
    %v750 = vpack.c.b16 %v741, %v740
    %v751 = vpack.c.b16 %v743, %v742
    %760 = vmatpush.bf16.msra.mxu0 %v751
    %761 = vmatpush.bf16.msra.mxu0 %v750
    %762 = vmatpush.bf16.msra.mxu0 %v749
    %763 = vmatpush.bf16.msra.mxu0 %v748
    %764 = vmatpush.bf16.msra.mxu0 %v747
    %765 = vmatpush.bf16.msra.mxu0 %v746
    %766 = vmatpush.bf16.msra.mxu0 %v745
    %767 = vmatpush.bf16.msra.mxu0 %v744
    %768 = vmatmul.bf16.gmra.mxu0 %v684
    %v769 = vpop.f32.mrf.mxu0
    %v770 = vadd.f32 %v710, %v769
    %v771 = vpop.f32.mrf.mxu0
    %v772 = vadd.f32 %v710, %v771
    %773 = vmatmul.bf16.gmra.mxu0 %v685
    %v774 = vpop.f32.mrf.mxu0
    %v775 = vadd.f32 %v710, %v774
    %v776 = vpop.f32.mrf.mxu0
    %v777 = vadd.f32 %v710, %v776
    %778 = vmatmul.bf16.gmra.mxu0 %v686
    %v779 = vpop.f32.mrf.mxu0
    %v780 = vadd.f32 %v710, %v779
    %v781 = vpop.f32.mrf.mxu0
    %v782 = vadd.f32 %v710, %v781
    %783 = vmatmul.bf16.gmra.mxu0 %v687
    %v784 = vpop.f32.mrf.mxu0
    %v785 = vadd.f32 %v710, %v784
    %v786 = vpop.f32.mrf.mxu0
    %v787 = vadd.f32 %v710, %v786
    %788 = vmatmul.bf16.gmra.mxu0 %v688
    %v789 = vpop.f32.mrf.mxu0
    %v790 = vadd.f32 %v710, %v789
    %v791 = vpop.f32.mrf.mxu0
    %v792 = vadd.f32 %v710, %v791
    %793 = vmatmul.bf16.gmra.mxu0 %v689
    %v794 = vpop.f32.mrf.mxu0
    %v795 = vadd.f32 %v710, %v794
    %v796 = vpop.f32.mrf.mxu0
    %v797 = vadd.f32 %v710, %v796
    %798 = vmatmul.bf16.gmra.mxu0 %v690
    %v799 = vpop.f32.mrf.mxu0
    %v800 = vadd.f32 %v710, %v799
    %v801 = vpop.f32.mrf.mxu0
    %v802 = vadd.f32 %v710, %v801
    %803 = vmatmul.bf16.gmra.mxu0 %v691
    %v804 = vpop.f32.mrf.mxu0
    %v805 = vadd.f32 %v710, %v804
    %v806 = vpop.f32.mrf.mxu0
    %v807 = vadd.f32 %v710, %v806
    %808 = vdwg.mxu0
    %v809 = vld [vmem:[#allocation6] sm:$0xff]
    %v810 = vld [vmem:[#allocation6 + $0x8] sm:$0xff]
    %v811 = vld [vmem:[#allocation6 + $0x10] sm:$0xff]
    %v812 = vld [vmem:[#allocation6 + $0x18] sm:$0xff]
    %v813 = vld [vmem:[#allocation6 + $0x20] sm:$0xff]
    %v814 = vld [vmem:[#allocation6 + $0x28] sm:$0xff]
    %v815 = vld [vmem:[#allocation6 + $0x30] sm:$0xff]
    %v816 = vld [vmem:[#allocation6 + $0x38] sm:$0xff]
    %v817 = vld [vmem:[#allocation6 + $0x40] sm:$0xff]
    %v818 = vld [vmem:[#allocation6 + $0x48] sm:$0xff]
    %v819 = vld [vmem:[#allocation6 + $0x50] sm:$0xff]
    %v820 = vld [vmem:[#allocation6 + $0x58] sm:$0xff]
    %v821 = vld [vmem:[#allocation6 + $0x60] sm:$0xff]
    %v822 = vld [vmem:[#allocation6 + $0x68] sm:$0xff]
    %v823 = vld [vmem:[#allocation6 + $0x70] sm:$0xff]
    %v824 = vld [vmem:[#allocation6 + $0x78] sm:$0xff]
    %v825 = vld [vmem:[#allocation15] sm:$0xf]
    %v826 = vld [vmem:[#allocation15 + $0x4] sm:$0xf]
    %v827 = vld [vmem:[#allocation15 + $0x8] sm:$0xf]
    %v828 = vld [vmem:[#allocation15 + $0xc] sm:$0xf]
    %v829 = vld [vmem:[#allocation15 + $0x10] sm:$0xf]
    %v830 = vld [vmem:[#allocation15 + $0x14] sm:$0xf]
    %v831 = vld [vmem:[#allocation15 + $0x18] sm:$0xf]
    %v832 = vld [vmem:[#allocation15 + $0x1c] sm:$0xf]
    %v833 = vld [vmem:[#allocation15 + $0x20] sm:$0xf]
    %v834 = vld [vmem:[#allocation15 + $0x24] sm:$0xf]
    %v835 = vld [vmem:[#allocation15 + $0x28] sm:$0xf]
    %v836 = vld [vmem:[#allocation15 + $0x2c] sm:$0xf]
    %v837 = vld [vmem:[#allocation15 + $0x30] sm:$0xf]
    %v838 = vld [vmem:[#allocation15 + $0x34] sm:$0xf]
    %v839 = vld [vmem:[#allocation15 + $0x38] sm:$0xf]
    %v840 = vld [vmem:[#allocation15 + $0x3c] sm:$0xf]
    %v841 = vld [vmem:[%s8] sm:$0x1]
    %v842 = vpack.c.bf16 %v772, %v770
    %v843 = vpack.c.bf16 %v777, %v775
    %v844 = vpack.c.bf16 %v782, %v780
    %v845 = vpack.c.bf16 %v787, %v785
    %v846 = vpack.c.bf16 %v792, %v790
    %v847 = vpack.c.bf16 %v797, %v795
    %v848 = vpack.c.bf16 %v802, %v800
    %v849 = vpack.c.bf16 %v807, %v805
    %v866 = vunpack.c.l.b16 %v825
    %v867 = vunpack.c.l.b16 %v826
    %v868 = vunpack.c.l.b16 %v827
    %v869 = vunpack.c.l.b16 %v828
    %v870 = vunpack.c.l.b16 %v829
    %v871 = vunpack.c.l.b16 %v830
    %v872 = vunpack.c.l.b16 %v831
    %v873 = vunpack.c.l.b16 %v832
    %v874 = vunpack.c.l.b16 %v833
    %v875 = vunpack.c.l.b16 %v834
    %v876 = vunpack.c.l.b16 %v835
    %v877 = vunpack.c.l.b16 %v836
    %v878 = vunpack.c.l.b16 %v837
    %v879 = vunpack.c.l.b16 %v838
    %v880 = vunpack.c.l.b16 %v839
    %v881 = vunpack.c.l.b16 %v840
    %v882 = vpack.c.b16 %v867, %v866
    %v883 = vpack.c.b16 %v869, %v868
    %v884 = vpack.c.b16 %v871, %v870
    %v885 = vpack.c.b16 %v873, %v872
    %v886 = vpack.c.b16 %v875, %v874
    %v887 = vpack.c.b16 %v877, %v876
    %v888 = vpack.c.b16 %v879, %v878
    %v889 = vpack.c.b16 %v881, %v880
    %898 = vmatpush.bf16.msra.mxu0 %v889
    %899 = vmatpush.bf16.msra.mxu0 %v888
    %900 = vmatpush.bf16.msra.mxu0 %v887
    %901 = vmatpush.bf16.msra.mxu0 %v886
    %902 = vmatpush.bf16.msra.mxu0 %v885
    %903 = vmatpush.bf16.msra.mxu0 %v884
    %904 = vmatpush.bf16.msra.mxu0 %v883
    %905 = vmatpush.bf16.msra.mxu0 %v882
    %906 = vmatmul.bf16.gmra.mxu0 %v842
    %v907 = vpop.f32.mrf.mxu0
    %v908 = vadd.f32 0.0, %v907
    %v909 = vpop.f32.mrf.mxu0
    %v910 = vadd.f32 0.0, %v909
    %911 = vmatmul.bf16.gmra.mxu0 %v843
    %v912 = vpop.f32.mrf.mxu0
    %v913 = vadd.f32 0.0, %v912
    %v914 = vpop.f32.mrf.mxu0
    %v915 = vadd.f32 0.0, %v914
    %916 = vmatmul.bf16.gmra.mxu0 %v844
    %v917 = vpop.f32.mrf.mxu0
    %v918 = vadd.f32 0.0, %v917
    %v919 = vpop.f32.mrf.mxu0
    %v920 = vadd.f32 0.0, %v919
    %921 = vmatmul.bf16.gmra.mxu0 %v845
    %v922 = vpop.f32.mrf.mxu0
    %v923 = vadd.f32 0.0, %v922
    %v924 = vpop.f32.mrf.mxu0
    %v925 = vadd.f32 0.0, %v924
    %926 = vmatmul.bf16.gmra.mxu0 %v846
    %v927 = vpop.f32.mrf.mxu0
    %v928 = vadd.f32 0.0, %v927
    %v929 = vpop.f32.mrf.mxu0
    %v930 = vadd.f32 0.0, %v929
    %931 = vmatmul.bf16.gmra.mxu0 %v847
    %v932 = vpop.f32.mrf.mxu0
    %v933 = vadd.f32 0.0, %v932
    %v934 = vpop.f32.mrf.mxu0
    %v935 = vadd.f32 0.0, %v934
    %936 = vmatmul.bf16.gmra.mxu0 %v848
    %v937 = vpop.f32.mrf.mxu0
    %v938 = vadd.f32 0.0, %v937
    %v939 = vpop.f32.mrf.mxu0
    %v940 = vadd.f32 0.0, %v939
    %941 = vmatmul.bf16.gmra.mxu0 %v849
    %v942 = vpop.f32.mrf.mxu0
    %v943 = vadd.f32 0.0, %v942
    %v944 = vpop.f32.mrf.mxu0
    %v945 = vadd.f32 0.0, %v944
    %946 = vdwg.mxu0
    %v947 = vxor.u32 %v908, 2147483648
    %v948 = vxor.u32 %v910, 2147483648
    %v949 = vxor.u32 %v913, 2147483648
    %v950 = vxor.u32 %v915, 2147483648
    %v951 = vxor.u32 %v918, 2147483648
    %v952 = vxor.u32 %v920, 2147483648
    %v953 = vxor.u32 %v923, 2147483648
    %v954 = vxor.u32 %v925, 2147483648
    %v955 = vxor.u32 %v928, 2147483648
    %v956 = vxor.u32 %v930, 2147483648
    %v957 = vxor.u32 %v933, 2147483648
    %v958 = vxor.u32 %v935, 2147483648
    %v959 = vxor.u32 %v938, 2147483648
    %v960 = vxor.u32 %v940, 2147483648
    %v961 = vxor.u32 %v943, 2147483648
    %v962 = vxor.u32 %v945, 2147483648
    %v963 = vmul.f32 %v947, 1.442695
    %v964 = vpow.pop %v963
    %v965 = vmul.f32 %v948, 1.442695
    %v966 = vpow.pop %v965
    %v967 = vmul.f32 %v949, 1.442695
    %v968 = vpow.pop %v967
    %v969 = vmul.f32 %v950, 1.442695
    %v970 = vpow.pop %v969
    %v971 = vmul.f32 %v951, 1.442695
    %v972 = vpow.pop %v971
    %v973 = vmul.f32 %v952, 1.442695
    %v974 = vpow.pop %v973
    %v975 = vmul.f32 %v953, 1.442695
    %v976 = vpow.pop %v975
    %v977 = vmul.f32 %v954, 1.442695
    %v978 = vpow.pop %v977
    %v979 = vmul.f32 %v955, 1.442695
    %v980 = vpow.pop %v979
    %v981 = vmul.f32 %v956, 1.442695
    %v982 = vpow.pop %v981
    %v983 = vmul.f32 %v957, 1.442695
    %v984 = vpow.pop %v983
    %v985 = vmul.f32 %v958, 1.442695
    %v986 = vpow.pop %v985
    %v987 = vmul.f32 %v959, 1.442695
    %v988 = vpow.pop %v987
    %v989 = vmul.f32 %v960, 1.442695
    %v990 = vpow.pop %v989
    %v991 = vmul.f32 %v961, 1.442695
    %v992 = vpow.pop %v991
    %v993 = vmul.f32 %v962, 1.442695
    %v994 = vpow.pop %v993
    %v995 = vadd.f32 %v964, 1.0
    %v996 = vadd.f32 %v966, 1.0
    %v997 = vadd.f32 %v968, 1.0
    %v998 = vadd.f32 %v970, 1.0
    %v999 = vadd.f32 %v972, 1.0
    %v1000 = vadd.f32 %v974, 1.0
    %v1001 = vadd.f32 %v976, 1.0
    %v1002 = vadd.f32 %v978, 1.0
    %v1003 = vadd.f32 %v980, 1.0
    %v1004 = vadd.f32 %v982, 1.0
    %v1005 = vadd.f32 %v984, 1.0
    %v1006 = vadd.f32 %v986, 1.0
    %v1007 = vadd.f32 %v988, 1.0
    %v1008 = vadd.f32 %v990, 1.0
    %v1009 = vadd.f32 %v992, 1.0
    %v1010 = vadd.f32 %v994, 1.0
    %v1011 = vrcp.pop %v995
    %v1012 = vmul.f32 %v995, %v1011
    %v1013 = vsub.f32 1.0, %v1012
    %v1014 = vmul.f32 %v1011, %v1013
    %v1015 = vadd.f32 %v1011, %v1014
    %vm1016 = vweird.f32 %v995
    %vm1017 = vweird.f32 %v1011
    %vm1018 = vmor %vm1016, %vm1017
    %v1019 = vsel %vm1018, %v1011, %v1015
    %v1020 = vand.u32 2147483647, %v995
    %vm1021 = vcmp.eq.f32.partialorder %v1020, 8.507059e+37
    %v1022 = vand.u32 %v995, 2147483648
    %v1023 = vor.u32 1.1754944e-38, %v1022
    %v1024 = vsel %vm1021, %v1023, %v1019
    %v1025 = vmul.f32 1.0, %v1024
    %v1026 = vrcp.pop %v996
    %v1027 = vmul.f32 %v996, %v1026
    %v1028 = vsub.f32 1.0, %v1027
    %v1029 = vmul.f32 %v1026, %v1028
    %v1030 = vadd.f32 %v1026, %v1029
    %vm1031 = vweird.f32 %v996
    %vm1032 = vweird.f32 %v1026
    %vm1033 = vmor %vm1031, %vm1032
    %v1034 = vsel %vm1033, %v1026, %v1030
    %v1035 = vand.u32 2147483647, %v996
    %vm1036 = vcmp.eq.f32.partialorder %v1035, 8.507059e+37
    %v1037 = vand.u32 %v996, 2147483648
    %v1038 = vor.u32 1.1754944e-38, %v1037
    %v1039 = vsel %vm1036, %v1038, %v1034
    %v1040 = vmul.f32 1.0, %v1039
    %v1041 = vrcp.pop %v997
    %v1042 = vmul.f32 %v997, %v1041
    %v1043 = vsub.f32 1.0, %v1042
    %v1044 = vmul.f32 %v1041, %v1043
    %v1045 = vadd.f32 %v1041, %v1044
    %vm1046 = vweird.f32 %v997
    %vm1047 = vweird.f32 %v1041
    %vm1048 = vmor %vm1046, %vm1047
    %v1049 = vsel %vm1048, %v1041, %v1045
    %v1050 = vand.u32 2147483647, %v997
    %vm1051 = vcmp.eq.f32.partialorder %v1050, 8.507059e+37
    %v1052 = vand.u32 %v997, 2147483648
    %v1053 = vor.u32 1.1754944e-38, %v1052
    %v1054 = vsel %vm1051, %v1053, %v1049
    %v1055 = vmul.f32 1.0, %v1054
    %v1056 = vrcp.pop %v998
    %v1057 = vmul.f32 %v998, %v1056
    %v1058 = vsub.f32 1.0, %v1057
    %v1059 = vmul.f32 %v1056, %v1058
    %v1060 = vadd.f32 %v1056, %v1059
    %vm1061 = vweird.f32 %v998
    %vm1062 = vweird.f32 %v1056
    %vm1063 = vmor %vm1061, %vm1062
    %v1064 = vsel %vm1063, %v1056, %v1060
    %v1065 = vand.u32 2147483647, %v998
    %vm1066 = vcmp.eq.f32.partialorder %v1065, 8.507059e+37
    %v1067 = vand.u32 %v998, 2147483648
    %v1068 = vor.u32 1.1754944e-38, %v1067
    %v1069 = vsel %vm1066, %v1068, %v1064
    %v1070 = vmul.f32 1.0, %v1069
    %v1071 = vrcp.pop %v999
    %v1072 = vmul.f32 %v999, %v1071
    %v1073 = vsub.f32 1.0, %v1072
    %v1074 = vmul.f32 %v1071, %v1073
    %v1075 = vadd.f32 %v1071, %v1074
    %vm1076 = vweird.f32 %v999
    %vm1077 = vweird.f32 %v1071
    %vm1078 = vmor %vm1076, %vm1077
    %v1079 = vsel %vm1078, %v1071, %v1075
    %v1080 = vand.u32 2147483647, %v999
    %vm1081 = vcmp.eq.f32.partialorder %v1080, 8.507059e+37
    %v1082 = vand.u32 %v999, 2147483648
    %v1083 = vor.u32 1.1754944e-38, %v1082
    %v1084 = vsel %vm1081, %v1083, %v1079
    %v1085 = vmul.f32 1.0, %v1084
    %v1086 = vrcp.pop %v1000
    %v1087 = vmul.f32 %v1000, %v1086
    %v1088 = vsub.f32 1.0, %v1087
    %v1089 = vmul.f32 %v1086, %v1088
    %v1090 = vadd.f32 %v1086, %v1089
    %vm1091 = vweird.f32 %v1000
    %vm1092 = vweird.f32 %v1086
    %vm1093 = vmor %vm1091, %vm1092
    %v1094 = vsel %vm1093, %v1086, %v1090
    %v1095 = vand.u32 2147483647, %v1000
    %vm1096 = vcmp.eq.f32.partialorder %v1095, 8.507059e+37
    %v1097 = vand.u32 %v1000, 2147483648
    %v1098 = vor.u32 1.1754944e-38, %v1097
    %v1099 = vsel %vm1096, %v1098, %v1094
    %v1100 = vmul.f32 1.0, %v1099
    %v1101 = vrcp.pop %v1001
    %v1102 = vmul.f32 %v1001, %v1101
    %v1103 = vsub.f32 1.0, %v1102
    %v1104 = vmul.f32 %v1101, %v1103
    %v1105 = vadd.f32 %v1101, %v1104
    %vm1106 = vweird.f32 %v1001
    %vm1107 = vweird.f32 %v1101
    %vm1108 = vmor %vm1106, %vm1107
    %v1109 = vsel %vm1108, %v1101, %v1105
    %v1110 = vand.u32 2147483647, %v1001
    %vm1111 = vcmp.eq.f32.partialorder %v1110, 8.507059e+37
    %v1112 = vand.u32 %v1001, 2147483648
    %v1113 = vor.u32 1.1754944e-38, %v1112
    %v1114 = vsel %vm1111, %v1113, %v1109
    %v1115 = vmul.f32 1.0, %v1114
    %v1116 = vrcp.pop %v1002
    %v1117 = vmul.f32 %v1002, %v1116
    %v1118 = vsub.f32 1.0, %v1117
    %v1119 = vmul.f32 %v1116, %v1118
    %v1120 = vadd.f32 %v1116, %v1119
    %vm1121 = vweird.f32 %v1002
    %vm1122 = vweird.f32 %v1116
    %vm1123 = vmor %vm1121, %vm1122
    %v1124 = vsel %vm1123, %v1116, %v1120
    %v1125 = vand.u32 2147483647, %v1002
    %vm1126 = vcmp.eq.f32.partialorder %v1125, 8.507059e+37
    %v1127 = vand.u32 %v1002, 2147483648
    %v1128 = vor.u32 1.1754944e-38, %v1127
    %v1129 = vsel %vm1126, %v1128, %v1124
    %v1130 = vmul.f32 1.0, %v1129
    %v1131 = vrcp.pop %v1003
    %v1132 = vmul.f32 %v1003, %v1131
    %v1133 = vsub.f32 1.0, %v1132
    %v1134 = vmul.f32 %v1131, %v1133
    %v1135 = vadd.f32 %v1131, %v1134
    %vm1136 = vweird.f32 %v1003
    %vm1137 = vweird.f32 %v1131
    %vm1138 = vmor %vm1136, %vm1137
    %v1139 = vsel %vm1138, %v1131, %v1135
    %v1140 = vand.u32 2147483647, %v1003
    %vm1141 = vcmp.eq.f32.partialorder %v1140, 8.507059e+37
    %v1142 = vand.u32 %v1003, 2147483648
    %v1143 = vor.u32 1.1754944e-38, %v1142
    %v1144 = vsel %vm1141, %v1143, %v1139
    %v1145 = vmul.f32 1.0, %v1144
    %v1146 = vrcp.pop %v1004
    %v1147 = vmul.f32 %v1004, %v1146
    %v1148 = vsub.f32 1.0, %v1147
    %v1149 = vmul.f32 %v1146, %v1148
    %v1150 = vadd.f32 %v1146, %v1149
    %vm1151 = vweird.f32 %v1004
    %vm1152 = vweird.f32 %v1146
    %vm1153 = vmor %vm1151, %vm1152
    %v1154 = vsel %vm1153, %v1146, %v1150
    %v1155 = vand.u32 2147483647, %v1004
    %vm1156 = vcmp.eq.f32.partialorder %v1155, 8.507059e+37
    %v1157 = vand.u32 %v1004, 2147483648
    %v1158 = vor.u32 1.1754944e-38, %v1157
    %v1159 = vsel %vm1156, %v1158, %v1154
    %v1160 = vmul.f32 1.0, %v1159
    %v1161 = vrcp.pop %v1005
    %v1162 = vmul.f32 %v1005, %v1161
    %v1163 = vsub.f32 1.0, %v1162
    %v1164 = vmul.f32 %v1161, %v1163
    %v1165 = vadd.f32 %v1161, %v1164
    %vm1166 = vweird.f32 %v1005
    %vm1167 = vweird.f32 %v1161
    %vm1168 = vmor %vm1166, %vm1167
    %v1169 = vsel %vm1168, %v1161, %v1165
    %v1170 = vand.u32 2147483647, %v1005
    %vm1171 = vcmp.eq.f32.partialorder %v1170, 8.507059e+37
    %v1172 = vand.u32 %v1005, 2147483648
    %v1173 = vor.u32 1.1754944e-38, %v1172
    %v1174 = vsel %vm1171, %v1173, %v1169
    %v1175 = vmul.f32 1.0, %v1174
    %v1176 = vrcp.pop %v1006
    %v1177 = vmul.f32 %v1006, %v1176
    %v1178 = vsub.f32 1.0, %v1177
    %v1179 = vmul.f32 %v1176, %v1178
    %v1180 = vadd.f32 %v1176, %v1179
    %vm1181 = vweird.f32 %v1006
    %vm1182 = vweird.f32 %v1176
    %vm1183 = vmor %vm1181, %vm1182
    %v1184 = vsel %vm1183, %v1176, %v1180
    %v1185 = vand.u32 2147483647, %v1006
    %vm1186 = vcmp.eq.f32.partialorder %v1185, 8.507059e+37
    %v1187 = vand.u32 %v1006, 2147483648
    %v1188 = vor.u32 1.1754944e-38, %v1187
    %v1189 = vsel %vm1186, %v1188, %v1184
    %v1190 = vmul.f32 1.0, %v1189
    %v1191 = vrcp.pop %v1007
    %v1192 = vmul.f32 %v1007, %v1191
    %v1193 = vsub.f32 1.0, %v1192
    %v1194 = vmul.f32 %v1191, %v1193
    %v1195 = vadd.f32 %v1191, %v1194
    %vm1196 = vweird.f32 %v1007
    %vm1197 = vweird.f32 %v1191
    %vm1198 = vmor %vm1196, %vm1197
    %v1199 = vsel %vm1198, %v1191, %v1195
    %v1200 = vand.u32 2147483647, %v1007
    %vm1201 = vcmp.eq.f32.partialorder %v1200, 8.507059e+37
    %v1202 = vand.u32 %v1007, 2147483648
    %v1203 = vor.u32 1.1754944e-38, %v1202
    %v1204 = vsel %vm1201, %v1203, %v1199
    %v1205 = vmul.f32 1.0, %v1204
    %v1206 = vrcp.pop %v1008
    %v1207 = vmul.f32 %v1008, %v1206
    %v1208 = vsub.f32 1.0, %v1207
    %v1209 = vmul.f32 %v1206, %v1208
    %v1210 = vadd.f32 %v1206, %v1209
    %vm1211 = vweird.f32 %v1008
    %vm1212 = vweird.f32 %v1206
    %vm1213 = vmor %vm1211, %vm1212
    %v1214 = vsel %vm1213, %v1206, %v1210
    %v1215 = vand.u32 2147483647, %v1008
    %vm1216 = vcmp.eq.f32.partialorder %v1215, 8.507059e+37
    %v1217 = vand.u32 %v1008, 2147483648
    %v1218 = vor.u32 1.1754944e-38, %v1217
    %v1219 = vsel %vm1216, %v1218, %v1214
    %v1220 = vmul.f32 1.0, %v1219
    %v1221 = vrcp.pop %v1009
    %v1222 = vmul.f32 %v1009, %v1221
    %v1223 = vsub.f32 1.0, %v1222
    %v1224 = vmul.f32 %v1221, %v1223
    %v1225 = vadd.f32 %v1221, %v1224
    %vm1226 = vweird.f32 %v1009
    %vm1227 = vweird.f32 %v1221
    %vm1228 = vmor %vm1226, %vm1227
    %v1229 = vsel %vm1228, %v1221, %v1225
    %v1230 = vand.u32 2147483647, %v1009
    %vm1231 = vcmp.eq.f32.partialorder %v1230, 8.507059e+37
    %v1232 = vand.u32 %v1009, 2147483648
    %v1233 = vor.u32 1.1754944e-38, %v1232
    %v1234 = vsel %vm1231, %v1233, %v1229
    %v1235 = vmul.f32 1.0, %v1234
    %v1236 = vrcp.pop %v1010
    %v1237 = vmul.f32 %v1010, %v1236
    %v1238 = vsub.f32 1.0, %v1237
    %v1239 = vmul.f32 %v1236, %v1238
    %v1240 = vadd.f32 %v1236, %v1239
    %vm1241 = vweird.f32 %v1010
    %vm1242 = vweird.f32 %v1236
    %vm1243 = vmor %vm1241, %vm1242
    %v1244 = vsel %vm1243, %v1236, %v1240
    %v1245 = vand.u32 2147483647, %v1010
    %vm1246 = vcmp.eq.f32.partialorder %v1245, 8.507059e+37
    %v1247 = vand.u32 %v1010, 2147483648
    %v1248 = vor.u32 1.1754944e-38, %v1247
    %v1249 = vsel %vm1246, %v1248, %v1244
    %v1250 = vmul.f32 1.0, %v1249
    %v1251 = vpack.c.bf16 %v810, %v809
    %v1252 = vpack.c.bf16 %v812, %v811
    %v1253 = vpack.c.bf16 %v814, %v813
    %v1254 = vpack.c.bf16 %v816, %v815
    %v1255 = vpack.c.bf16 %v818, %v817
    %v1256 = vpack.c.bf16 %v820, %v819
    %v1257 = vpack.c.bf16 %v822, %v821
    %v1258 = vpack.c.bf16 %v824, %v823
    %1259 = vmatpush.bf16.msra.mxu0 %v889
    %1260 = vmatpush.bf16.msra.mxu0 %v888
    %1261 = vmatpush.bf16.msra.mxu0 %v887
    %1262 = vmatpush.bf16.msra.mxu0 %v886
    %1263 = vmatpush.bf16.msra.mxu0 %v885
    %1264 = vmatpush.bf16.msra.mxu0 %v884
    %1265 = vmatpush.bf16.msra.mxu0 %v883
    %1266 = vmatpush.bf16.msra.mxu0 %v882
    %1267 = vmatmul.bf16.gmra.mxu0 %v1251
    %v1268 = vpop.f32.mrf.mxu0
    %v1269 = vadd.f32 0.0, %v1268
    %v1270 = vpop.f32.mrf.mxu0
    %v1271 = vadd.f32 0.0, %v1270
    %1272 = vmatmul.bf16.gmra.mxu0 %v1252
    %v1273 = vpop.f32.mrf.mxu0
    %v1274 = vadd.f32 0.0, %v1273
    %v1275 = vpop.f32.mrf.mxu0
    %v1276 = vadd.f32 0.0, %v1275
    %1277 = vmatmul.bf16.gmra.mxu0 %v1253
    %v1278 = vpop.f32.mrf.mxu0
    %v1279 = vadd.f32 0.0, %v1278
    %v1280 = vpop.f32.mrf.mxu0
    %v1281 = vadd.f32 0.0, %v1280
    %1282 = vmatmul.bf16.gmra.mxu0 %v1254
    %v1283 = vpop.f32.mrf.mxu0
    %v1284 = vadd.f32 0.0, %v1283
    %v1285 = vpop.f32.mrf.mxu0
    %v1286 = vadd.f32 0.0, %v1285
    %1287 = vmatmul.bf16.gmra.mxu0 %v1255
    %v1288 = vpop.f32.mrf.mxu0
    %v1289 = vadd.f32 0.0, %v1288
    %v1290 = vpop.f32.mrf.mxu0
    %v1291 = vadd.f32 0.0, %v1290
    %1292 = vmatmul.bf16.gmra.mxu0 %v1256
    %v1293 = vpop.f32.mrf.mxu0
    %v1294 = vadd.f32 0.0, %v1293
    %v1295 = vpop.f32.mrf.mxu0
    %v1296 = vadd.f32 0.0, %v1295
    %1297 = vmatmul.bf16.gmra.mxu0 %v1257
    %v1298 = vpop.f32.mrf.mxu0
    %v1299 = vadd.f32 0.0, %v1298
    %v1300 = vpop.f32.mrf.mxu0
    %v1301 = vadd.f32 0.0, %v1300
    %1302 = vmatmul.bf16.gmra.mxu0 %v1258
    %v1303 = vpop.f32.mrf.mxu0
    %v1304 = vadd.f32 0.0, %v1303
    %v1305 = vpop.f32.mrf.mxu0
    %v1306 = vadd.f32 0.0, %v1305
    %1307 = vdwg.mxu0
    %v1308 = vxor.u32 %v1269, 2147483648
    %v1309 = vxor.u32 %v1271, 2147483648
    %v1310 = vxor.u32 %v1274, 2147483648
    %v1311 = vxor.u32 %v1276, 2147483648
    %v1312 = vxor.u32 %v1279, 2147483648
    %v1313 = vxor.u32 %v1281, 2147483648
    %v1314 = vxor.u32 %v1284, 2147483648
    %v1315 = vxor.u32 %v1286, 2147483648
    %v1316 = vxor.u32 %v1289, 2147483648
    %v1317 = vxor.u32 %v1291, 2147483648
    %v1318 = vxor.u32 %v1294, 2147483648
    %v1319 = vxor.u32 %v1296, 2147483648
    %v1320 = vxor.u32 %v1299, 2147483648
    %v1321 = vxor.u32 %v1301, 2147483648
    %v1322 = vxor.u32 %v1304, 2147483648
    %v1323 = vxor.u32 %v1306, 2147483648
    %v1324 = vmul.f32 %v1308, 1.442695
    %v1325 = vpow.pop %v1324
    %v1326 = vmul.f32 %v1309, 1.442695
    %v1327 = vpow.pop %v1326
    %v1328 = vmul.f32 %v1310, 1.442695
    %v1329 = vpow.pop %v1328
    %v1330 = vmul.f32 %v1311, 1.442695
    %v1331 = vpow.pop %v1330
    %v1332 = vmul.f32 %v1312, 1.442695
    %v1333 = vpow.pop %v1332
    %v1334 = vmul.f32 %v1313, 1.442695
    %v1335 = vpow.pop %v1334
    %v1336 = vmul.f32 %v1314, 1.442695
    %v1337 = vpow.pop %v1336
    %v1338 = vmul.f32 %v1315, 1.442695
    %v1339 = vpow.pop %v1338
    %v1340 = vmul.f32 %v1316, 1.442695
    %v1341 = vpow.pop %v1340
    %v1342 = vmul.f32 %v1317, 1.442695
    %v1343 = vpow.pop %v1342
    %v1344 = vmul.f32 %v1318, 1.442695
    %v1345 = vpow.pop %v1344
    %v1346 = vmul.f32 %v1319, 1.442695
    %v1347 = vpow.pop %v1346
    %v1348 = vmul.f32 %v1320, 1.442695
    %v1349 = vpow.pop %v1348
    %v1350 = vmul.f32 %v1321, 1.442695
    %v1351 = vpow.pop %v1350
    %v1352 = vmul.f32 %v1322, 1.442695
    %v1353 = vpow.pop %v1352
    %v1354 = vmul.f32 %v1323, 1.442695
    %v1355 = vpow.pop %v1354
    %v1356 = vadd.f32 %v1325, 1.0
    %v1357 = vadd.f32 %v1327, 1.0
    %v1358 = vadd.f32 %v1329, 1.0
    %v1359 = vadd.f32 %v1331, 1.0
    %v1360 = vadd.f32 %v1333, 1.0
    %v1361 = vadd.f32 %v1335, 1.0
    %v1362 = vadd.f32 %v1337, 1.0
    %v1363 = vadd.f32 %v1339, 1.0
    %v1364 = vadd.f32 %v1341, 1.0
    %v1365 = vadd.f32 %v1343, 1.0
    %v1366 = vadd.f32 %v1345, 1.0
    %v1367 = vadd.f32 %v1347, 1.0
    %v1368 = vadd.f32 %v1349, 1.0
    %v1369 = vadd.f32 %v1351, 1.0
    %v1370 = vadd.f32 %v1353, 1.0
    %v1371 = vadd.f32 %v1355, 1.0
    %v1372 = vrcp.pop %v1356
    %v1373 = vmul.f32 %v1356, %v1372
    %v1374 = vsub.f32 1.0, %v1373
    %v1375 = vmul.f32 %v1372, %v1374
    %v1376 = vadd.f32 %v1372, %v1375
    %vm1377 = vweird.f32 %v1356
    %vm1378 = vweird.f32 %v1372
    %vm1379 = vmor %vm1377, %vm1378
    %v1380 = vsel %vm1379, %v1372, %v1376
    %v1381 = vand.u32 2147483647, %v1356
    %vm1382 = vcmp.eq.f32.partialorder %v1381, 8.507059e+37
    %v1383 = vand.u32 %v1356, 2147483648
    %v1384 = vor.u32 1.1754944e-38, %v1383
    %v1385 = vsel %vm1382, %v1384, %v1380
    %v1386 = vmul.f32 1.0, %v1385
    %v1387 = vrcp.pop %v1357
    %v1388 = vmul.f32 %v1357, %v1387
    %v1389 = vsub.f32 1.0, %v1388
    %v1390 = vmul.f32 %v1387, %v1389
    %v1391 = vadd.f32 %v1387, %v1390
    %vm1392 = vweird.f32 %v1357
    %vm1393 = vweird.f32 %v1387
    %vm1394 = vmor %vm1392, %vm1393
    %v1395 = vsel %vm1394, %v1387, %v1391
    %v1396 = vand.u32 2147483647, %v1357
    %vm1397 = vcmp.eq.f32.partialorder %v1396, 8.507059e+37
    %v1398 = vand.u32 %v1357, 2147483648
    %v1399 = vor.u32 1.1754944e-38, %v1398
    %v1400 = vsel %vm1397, %v1399, %v1395
    %v1401 = vmul.f32 1.0, %v1400
    %v1402 = vrcp.pop %v1358
    %v1403 = vmul.f32 %v1358, %v1402
    %v1404 = vsub.f32 1.0, %v1403
    %v1405 = vmul.f32 %v1402, %v1404
    %v1406 = vadd.f32 %v1402, %v1405
    %vm1407 = vweird.f32 %v1358
    %vm1408 = vweird.f32 %v1402
    %vm1409 = vmor %vm1407, %vm1408
    %v1410 = vsel %vm1409, %v1402, %v1406
    %v1411 = vand.u32 2147483647, %v1358
    %vm1412 = vcmp.eq.f32.partialorder %v1411, 8.507059e+37
    %v1413 = vand.u32 %v1358, 2147483648
    %v1414 = vor.u32 1.1754944e-38, %v1413
    %v1415 = vsel %vm1412, %v1414, %v1410
    %v1416 = vmul.f32 1.0, %v1415
    %v1417 = vrcp.pop %v1359
    %v1418 = vmul.f32 %v1359, %v1417
    %v1419 = vsub.f32 1.0, %v1418
    %v1420 = vmul.f32 %v1417, %v1419
    %v1421 = vadd.f32 %v1417, %v1420
    %vm1422 = vweird.f32 %v1359
    %vm1423 = vweird.f32 %v1417
    %vm1424 = vmor %vm1422, %vm1423
    %v1425 = vsel %vm1424, %v1417, %v1421
    %v1426 = vand.u32 2147483647, %v1359
    %vm1427 = vcmp.eq.f32.partialorder %v1426, 8.507059e+37
    %v1428 = vand.u32 %v1359, 2147483648
    %v1429 = vor.u32 1.1754944e-38, %v1428
    %v1430 = vsel %vm1427, %v1429, %v1425
    %v1431 = vmul.f32 1.0, %v1430
    %v1432 = vrcp.pop %v1360
    %v1433 = vmul.f32 %v1360, %v1432
    %v1434 = vsub.f32 1.0, %v1433
    %v1435 = vmul.f32 %v1432, %v1434
    %v1436 = vadd.f32 %v1432, %v1435
    %vm1437 = vweird.f32 %v1360
    %vm1438 = vweird.f32 %v1432
    %vm1439 = vmor %vm1437, %vm1438
    %v1440 = vsel %vm1439, %v1432, %v1436
    %v1441 = vand.u32 2147483647, %v1360
    %vm1442 = vcmp.eq.f32.partialorder %v1441, 8.507059e+37
    %v1443 = vand.u32 %v1360, 2147483648
    %v1444 = vor.u32 1.1754944e-38, %v1443
    %v1445 = vsel %vm1442, %v1444, %v1440
    %v1446 = vmul.f32 1.0, %v1445
    %v1447 = vrcp.pop %v1361
    %v1448 = vmul.f32 %v1361, %v1447
    %v1449 = vsub.f32 1.0, %v1448
    %v1450 = vmul.f32 %v1447, %v1449
    %v1451 = vadd.f32 %v1447, %v1450
    %vm1452 = vweird.f32 %v1361
    %vm1453 = vweird.f32 %v1447
    %vm1454 = vmor %vm1452, %vm1453
    %v1455 = vsel %vm1454, %v1447, %v1451
    %v1456 = vand.u32 2147483647, %v1361
    %vm1457 = vcmp.eq.f32.partialorder %v1456, 8.507059e+37
    %v1458 = vand.u32 %v1361, 2147483648
    %v1459 = vor.u32 1.1754944e-38, %v1458
    %v1460 = vsel %vm1457, %v1459, %v1455
    %v1461 = vmul.f32 1.0, %v1460
    %v1462 = vrcp.pop %v1362
    %v1463 = vmul.f32 %v1362, %v1462
    %v1464 = vsub.f32 1.0, %v1463
    %v1465 = vmul.f32 %v1462, %v1464
    %v1466 = vadd.f32 %v1462, %v1465
    %vm1467 = vweird.f32 %v1362
    %vm1468 = vweird.f32 %v1462
    %vm1469 = vmor %vm1467, %vm1468
    %v1470 = vsel %vm1469, %v1462, %v1466
    %v1471 = vand.u32 2147483647, %v1362
    %vm1472 = vcmp.eq.f32.partialorder %v1471, 8.507059e+37
    %v1473 = vand.u32 %v1362, 2147483648
    %v1474 = vor.u32 1.1754944e-38, %v1473
    %v1475 = vsel %vm1472, %v1474, %v1470
    %v1476 = vmul.f32 1.0, %v1475
    %v1477 = vrcp.pop %v1363
    %v1478 = vmul.f32 %v1363, %v1477
    %v1479 = vsub.f32 1.0, %v1478
    %v1480 = vmul.f32 %v1477, %v1479
    %v1481 = vadd.f32 %v1477, %v1480
    %vm1482 = vweird.f32 %v1363
    %vm1483 = vweird.f32 %v1477
    %vm1484 = vmor %vm1482, %vm1483
    %v1485 = vsel %vm1484, %v1477, %v1481
    %v1486 = vand.u32 2147483647, %v1363
    %vm1487 = vcmp.eq.f32.partialorder %v1486, 8.507059e+37
    %v1488 = vand.u32 %v1363, 2147483648
    %v1489 = vor.u32 1.1754944e-38, %v1488
    %v1490 = vsel %vm1487, %v1489, %v1485
    %v1491 = vmul.f32 1.0, %v1490
    %v1492 = vrcp.pop %v1364
    %v1493 = vmul.f32 %v1364, %v1492
    %v1494 = vsub.f32 1.0, %v1493
    %v1495 = vmul.f32 %v1492, %v1494
    %v1496 = vadd.f32 %v1492, %v1495
    %vm1497 = vweird.f32 %v1364
    %vm1498 = vweird.f32 %v1492
    %vm1499 = vmor %vm1497, %vm1498
    %v1500 = vsel %vm1499, %v1492, %v1496
    %v1501 = vand.u32 2147483647, %v1364
    %vm1502 = vcmp.eq.f32.partialorder %v1501, 8.507059e+37
    %v1503 = vand.u32 %v1364, 2147483648
    %v1504 = vor.u32 1.1754944e-38, %v1503
    %v1505 = vsel %vm1502, %v1504, %v1500
    %v1506 = vmul.f32 1.0, %v1505
    %v1507 = vrcp.pop %v1365
    %v1508 = vmul.f32 %v1365, %v1507
    %v1509 = vsub.f32 1.0, %v1508
    %v1510 = vmul.f32 %v1507, %v1509
    %v1511 = vadd.f32 %v1507, %v1510
    %vm1512 = vweird.f32 %v1365
    %vm1513 = vweird.f32 %v1507
    %vm1514 = vmor %vm1512, %vm1513
    %v1515 = vsel %vm1514, %v1507, %v1511
    %v1516 = vand.u32 2147483647, %v1365
    %vm1517 = vcmp.eq.f32.partialorder %v1516, 8.507059e+37
    %v1518 = vand.u32 %v1365, 2147483648
    %v1519 = vor.u32 1.1754944e-38, %v1518
    %v1520 = vsel %vm1517, %v1519, %v1515
    %v1521 = vmul.f32 1.0, %v1520
    %v1522 = vrcp.pop %v1366
    %v1523 = vmul.f32 %v1366, %v1522
    %v1524 = vsub.f32 1.0, %v1523
    %v1525 = vmul.f32 %v1522, %v1524
    %v1526 = vadd.f32 %v1522, %v1525
    %vm1527 = vweird.f32 %v1366
    %vm1528 = vweird.f32 %v1522
    %vm1529 = vmor %vm1527, %vm1528
    %v1530 = vsel %vm1529, %v1522, %v1526
    %v1531 = vand.u32 2147483647, %v1366
    %vm1532 = vcmp.eq.f32.partialorder %v1531, 8.507059e+37
    %v1533 = vand.u32 %v1366, 2147483648
    %v1534 = vor.u32 1.1754944e-38, %v1533
    %v1535 = vsel %vm1532, %v1534, %v1530
    %v1536 = vmul.f32 1.0, %v1535
    %v1537 = vrcp.pop %v1367
    %v1538 = vmul.f32 %v1367, %v1537
    %v1539 = vsub.f32 1.0, %v1538
    %v1540 = vmul.f32 %v1537, %v1539
    %v1541 = vadd.f32 %v1537, %v1540
    %vm1542 = vweird.f32 %v1367
    %vm1543 = vweird.f32 %v1537
    %vm1544 = vmor %vm1542, %vm1543
    %v1545 = vsel %vm1544, %v1537, %v1541
    %v1546 = vand.u32 2147483647, %v1367
    %vm1547 = vcmp.eq.f32.partialorder %v1546, 8.507059e+37
    %v1548 = vand.u32 %v1367, 2147483648
    %v1549 = vor.u32 1.1754944e-38, %v1548
    %v1550 = vsel %vm1547, %v1549, %v1545
    %v1551 = vmul.f32 1.0, %v1550
    %v1552 = vrcp.pop %v1368
    %v1553 = vmul.f32 %v1368, %v1552
    %v1554 = vsub.f32 1.0, %v1553
    %v1555 = vmul.f32 %v1552, %v1554
    %v1556 = vadd.f32 %v1552, %v1555
    %vm1557 = vweird.f32 %v1368
    %vm1558 = vweird.f32 %v1552
    %vm1559 = vmor %vm1557, %vm1558
    %v1560 = vsel %vm1559, %v1552, %v1556
    %v1561 = vand.u32 2147483647, %v1368
    %vm1562 = vcmp.eq.f32.partialorder %v1561, 8.507059e+37
    %v1563 = vand.u32 %v1368, 2147483648
    %v1564 = vor.u32 1.1754944e-38, %v1563
    %v1565 = vsel %vm1562, %v1564, %v1560
    %v1566 = vmul.f32 1.0, %v1565
    %v1567 = vrcp.pop %v1369
    %v1568 = vmul.f32 %v1369, %v1567
    %v1569 = vsub.f32 1.0, %v1568
    %v1570 = vmul.f32 %v1567, %v1569
    %v1571 = vadd.f32 %v1567, %v1570
    %vm1572 = vweird.f32 %v1369
    %vm1573 = vweird.f32 %v1567
    %vm1574 = vmor %vm1572, %vm1573
    %v1575 = vsel %vm1574, %v1567, %v1571
    %v1576 = vand.u32 2147483647, %v1369
    %vm1577 = vcmp.eq.f32.partialorder %v1576, 8.507059e+37
    %v1578 = vand.u32 %v1369, 2147483648
    %v1579 = vor.u32 1.1754944e-38, %v1578
    %v1580 = vsel %vm1577, %v1579, %v1575
    %v1581 = vmul.f32 1.0, %v1580
    %v1582 = vrcp.pop %v1370
    %v1583 = vmul.f32 %v1370, %v1582
    %v1584 = vsub.f32 1.0, %v1583
    %v1585 = vmul.f32 %v1582, %v1584
    %v1586 = vadd.f32 %v1582, %v1585
    %vm1587 = vweird.f32 %v1370
    %vm1588 = vweird.f32 %v1582
    %vm1589 = vmor %vm1587, %vm1588
    %v1590 = vsel %vm1589, %v1582, %v1586
    %v1591 = vand.u32 2147483647, %v1370
    %vm1592 = vcmp.eq.f32.partialorder %v1591, 8.507059e+37
    %v1593 = vand.u32 %v1370, 2147483648
    %v1594 = vor.u32 1.1754944e-38, %v1593
    %v1595 = vsel %vm1592, %v1594, %v1590
    %v1596 = vmul.f32 1.0, %v1595
    %v1597 = vrcp.pop %v1371
    %v1598 = vmul.f32 %v1371, %v1597
    %v1599 = vsub.f32 1.0, %v1598
    %v1600 = vmul.f32 %v1597, %v1599
    %v1601 = vadd.f32 %v1597, %v1600
    %vm1602 = vweird.f32 %v1371
    %vm1603 = vweird.f32 %v1597
    %vm1604 = vmor %vm1602, %vm1603
    %v1605 = vsel %vm1604, %v1597, %v1601
    %v1606 = vand.u32 2147483647, %v1371
    %vm1607 = vcmp.eq.f32.partialorder %v1606, 8.507059e+37
    %v1608 = vand.u32 %v1371, 2147483648
    %v1609 = vor.u32 1.1754944e-38, %v1608
    %v1610 = vsel %vm1607, %v1609, %v1605
    %v1611 = vmul.f32 1.0, %v1610
    %v1613 = vperm.slane %v841, 0
    %v1615 = vmul.f32 %v1025, %v1613
    %v1616 = vmul.f32 %v1040, %v1613
    %v1617 = vmul.f32 %v1055, %v1613
    %v1618 = vmul.f32 %v1070, %v1613
    %v1619 = vmul.f32 %v1085, %v1613
    %v1620 = vmul.f32 %v1100, %v1613
    %v1621 = vmul.f32 %v1115, %v1613
    %v1622 = vmul.f32 %v1130, %v1613
    %v1623 = vmul.f32 %v1145, %v1613
    %v1624 = vmul.f32 %v1160, %v1613
    %v1625 = vmul.f32 %v1175, %v1613
    %v1626 = vmul.f32 %v1190, %v1613
    %v1627 = vmul.f32 %v1205, %v1613
    %v1628 = vmul.f32 %v1220, %v1613
    %v1629 = vmul.f32 %v1235, %v1613
    %v1630 = vmul.f32 %v1250, %v1613
    %1631 = vadd.xlane.f32.xlu0 %v1615
    %v1632 = vpop.xlane.xlu0 %1631
    %1633 = vadd.xlane.f32.xlu0 %v1616
    %v1634 = vpop.xlane.xlu0 %1633
    %1635 = vadd.xlane.f32.xlu0 %v1617
    %v1636 = vpop.xlane.xlu0 %1635
    %1637 = vadd.xlane.f32.xlu0 %v1618
    %v1638 = vpop.xlane.xlu0 %1637
    %1639 = vadd.xlane.f32.xlu0 %v1619
    %v1640 = vpop.xlane.xlu0 %1639
    %1641 = vadd.xlane.f32.xlu0 %v1620
    %v1642 = vpop.xlane.xlu0 %1641
    %1643 = vadd.xlane.f32.xlu0 %v1621
    %v1644 = vpop.xlane.xlu0 %1643
    %1645 = vadd.xlane.f32.xlu0 %v1622
    %v1646 = vpop.xlane.xlu0 %1645
    %1647 = vadd.xlane.f32.xlu0 %v1623
    %v1648 = vpop.xlane.xlu0 %1647
    %1649 = vadd.xlane.f32.xlu0 %v1624
    %v1650 = vpop.xlane.xlu0 %1649
    %1651 = vadd.xlane.f32.xlu0 %v1625
    %v1652 = vpop.xlane.xlu0 %1651
    %1653 = vadd.xlane.f32.xlu0 %v1626
    %v1654 = vpop.xlane.xlu0 %1653
    %1655 = vadd.xlane.f32.xlu0 %v1627
    %v1656 = vpop.xlane.xlu0 %1655
    %1657 = vadd.xlane.f32.xlu0 %v1628
    %v1658 = vpop.xlane.xlu0 %1657
    %1659 = vadd.xlane.f32.xlu0 %v1629
    %v1660 = vpop.xlane.xlu0 %1659
    %1661 = vadd.xlane.f32.xlu0 %v1630
    %v1662 = vpop.xlane.xlu0 %1661
    %v1663 = vmul.f32 %v1386, %v1613
    %v1664 = vmul.f32 %v1401, %v1613
    %v1665 = vmul.f32 %v1416, %v1613
    %v1666 = vmul.f32 %v1431, %v1613
    %v1667 = vmul.f32 %v1446, %v1613
    %v1668 = vmul.f32 %v1461, %v1613
    %v1669 = vmul.f32 %v1476, %v1613
    %v1670 = vmul.f32 %v1491, %v1613
    %v1671 = vmul.f32 %v1506, %v1613
    %v1672 = vmul.f32 %v1521, %v1613
    %v1673 = vmul.f32 %v1536, %v1613
    %v1674 = vmul.f32 %v1551, %v1613
    %v1675 = vmul.f32 %v1566, %v1613
    %v1676 = vmul.f32 %v1581, %v1613
    %v1677 = vmul.f32 %v1596, %v1613
    %v1678 = vmul.f32 %v1611, %v1613
    %1679 = vadd.xlane.f32.xlu0 %v1663
    %v1680 = vpop.xlane.xlu0 %1679
    %1681 = vadd.xlane.f32.xlu0 %v1664
    %v1682 = vpop.xlane.xlu0 %1681
    %1683 = vadd.xlane.f32.xlu0 %v1665
    %v1684 = vpop.xlane.xlu0 %1683
    %1685 = vadd.xlane.f32.xlu0 %v1666
    %v1686 = vpop.xlane.xlu0 %1685
    %1687 = vadd.xlane.f32.xlu0 %v1667
    %v1688 = vpop.xlane.xlu0 %1687
    %1689 = vadd.xlane.f32.xlu0 %v1668
    %v1690 = vpop.xlane.xlu0 %1689
    %1691 = vadd.xlane.f32.xlu0 %v1669
    %v1692 = vpop.xlane.xlu0 %1691
    %1693 = vadd.xlane.f32.xlu0 %v1670
    %v1694 = vpop.xlane.xlu0 %1693
    %1695 = vadd.xlane.f32.xlu0 %v1671
    %v1696 = vpop.xlane.xlu0 %1695
    %1697 = vadd.xlane.f32.xlu0 %v1672
    %v1698 = vpop.xlane.xlu0 %1697
    %1699 = vadd.xlane.f32.xlu0 %v1673
    %v1700 = vpop.xlane.xlu0 %1699
    %1701 = vadd.xlane.f32.xlu0 %v1674
    %v1702 = vpop.xlane.xlu0 %1701
    %1703 = vadd.xlane.f32.xlu0 %v1675
    %v1704 = vpop.xlane.xlu0 %1703
    %1705 = vadd.xlane.f32.xlu0 %v1676
    %v1706 = vpop.xlane.xlu0 %1705
    %1707 = vadd.xlane.f32.xlu0 %v1677
    %v1708 = vpop.xlane.xlu0 %1707
    %1709 = vadd.xlane.f32.xlu0 %v1678
    %v1710 = vpop.xlane.xlu0 %1709
    %v1711 = vsub.f32 %v1632, %v1680
    %v1712 = vsub.f32 %v1634, %v1682
    %v1713 = vsub.f32 %v1636, %v1684
    %v1714 = vsub.f32 %v1638, %v1686
    %v1715 = vsub.f32 %v1640, %v1688
    %v1716 = vsub.f32 %v1642, %v1690
    %v1717 = vsub.f32 %v1644, %v1692
    %v1718 = vsub.f32 %v1646, %v1694
    %v1719 = vsub.f32 %v1648, %v1696
    %v1720 = vsub.f32 %v1650, %v1698
    %v1721 = vsub.f32 %v1652, %v1700
    %v1722 = vsub.f32 %v1654, %v1702
    %v1723 = vsub.f32 %v1656, %v1704
    %v1724 = vsub.f32 %v1658, %v1706
    %v1725 = vsub.f32 %v1660, %v1708
    %v1726 = vsub.f32 %v1662, %v1710
    %v1727 = vxor.u32 %v1711, 2147483648
    %v1728 = vxor.u32 %v1712, 2147483648
    %v1729 = vxor.u32 %v1713, 2147483648
    %v1730 = vxor.u32 %v1714, 2147483648
    %v1731 = vxor.u32 %v1715, 2147483648
    %v1732 = vxor.u32 %v1716, 2147483648
    %v1733 = vxor.u32 %v1717, 2147483648
    %v1734 = vxor.u32 %v1718, 2147483648
    %v1735 = vxor.u32 %v1719, 2147483648
    %v1736 = vxor.u32 %v1720, 2147483648
    %v1737 = vxor.u32 %v1721, 2147483648
    %v1738 = vxor.u32 %v1722, 2147483648
    %v1739 = vxor.u32 %v1723, 2147483648
    %v1740 = vxor.u32 %v1724, 2147483648
    %v1741 = vxor.u32 %v1725, 2147483648
    %v1742 = vxor.u32 %v1726, 2147483648
    %v1743 = vmul.f32 %v1727, 1.442695
    %v1744 = vpow.pop %v1743
    %v1745 = vmul.f32 %v1728, 1.442695
    %v1746 = vpow.pop %v1745
    %v1747 = vmul.f32 %v1729, 1.442695
    %v1748 = vpow.pop %v1747
    %v1749 = vmul.f32 %v1730, 1.442695
    %v1750 = vpow.pop %v1749
    %v1751 = vmul.f32 %v1731, 1.442695
    %v1752 = vpow.pop %v1751
    %v1753 = vmul.f32 %v1732, 1.442695
    %v1754 = vpow.pop %v1753
    %v1755 = vmul.f32 %v1733, 1.442695
    %v1756 = vpow.pop %v1755
    %v1757 = vmul.f32 %v1734, 1.442695
    %v1758 = vpow.pop %v1757
    %v1759 = vmul.f32 %v1735, 1.442695
    %v1760 = vpow.pop %v1759
    %v1761 = vmul.f32 %v1736, 1.442695
    %v1762 = vpow.pop %v1761
    %v1763 = vmul.f32 %v1737, 1.442695
    %v1764 = vpow.pop %v1763
    %v1765 = vmul.f32 %v1738, 1.442695
    %v1766 = vpow.pop %v1765
    %v1767 = vmul.f32 %v1739, 1.442695
    %v1768 = vpow.pop %v1767
    %v1769 = vmul.f32 %v1740, 1.442695
    %v1770 = vpow.pop %v1769
    %v1771 = vmul.f32 %v1741, 1.442695
    %v1772 = vpow.pop %v1771
    %v1773 = vmul.f32 %v1742, 1.442695
    %v1774 = vpow.pop %v1773
    %v1775 = vadd.f32 %v1744, 1.0
    %v1776 = vadd.f32 %v1746, 1.0
    %v1777 = vadd.f32 %v1748, 1.0
    %v1778 = vadd.f32 %v1750, 1.0
    %v1779 = vadd.f32 %v1752, 1.0
    %v1780 = vadd.f32 %v1754, 1.0
    %v1781 = vadd.f32 %v1756, 1.0
    %v1782 = vadd.f32 %v1758, 1.0
    %v1783 = vadd.f32 %v1760, 1.0
    %v1784 = vadd.f32 %v1762, 1.0
    %v1785 = vadd.f32 %v1764, 1.0
    %v1786 = vadd.f32 %v1766, 1.0
    %v1787 = vadd.f32 %v1768, 1.0
    %v1788 = vadd.f32 %v1770, 1.0
    %v1789 = vadd.f32 %v1772, 1.0
    %v1790 = vadd.f32 %v1774, 1.0
    %v1791 = vrcp.pop %v1775
    %v1792 = vmul.f32 %v1775, %v1791
    %v1793 = vsub.f32 1.0, %v1792
    %v1794 = vmul.f32 %v1791, %v1793
    %v1795 = vadd.f32 %v1791, %v1794
    %vm1796 = vweird.f32 %v1775
    %vm1797 = vweird.f32 %v1791
    %vm1798 = vmor %vm1796, %vm1797
    %v1799 = vsel %vm1798, %v1791, %v1795
    %v1800 = vand.u32 2147483647, %v1775
    %vm1801 = vcmp.eq.f32.partialorder %v1800, 8.507059e+37
    %v1802 = vand.u32 %v1775, 2147483648
    %v1803 = vor.u32 1.1754944e-38, %v1802
    %v1804 = vsel %vm1801, %v1803, %v1799
    %v1805 = vmul.f32 1.0, %v1804
    %v1806 = vrcp.pop %v1776
    %v1807 = vmul.f32 %v1776, %v1806
    %v1808 = vsub.f32 1.0, %v1807
    %v1809 = vmul.f32 %v1806, %v1808
    %v1810 = vadd.f32 %v1806, %v1809
    %vm1811 = vweird.f32 %v1776
    %vm1812 = vweird.f32 %v1806
    %vm1813 = vmor %vm1811, %vm1812
    %v1814 = vsel %vm1813, %v1806, %v1810
    %v1815 = vand.u32 2147483647, %v1776
    %vm1816 = vcmp.eq.f32.partialorder %v1815, 8.507059e+37
    %v1817 = vand.u32 %v1776, 2147483648
    %v1818 = vor.u32 1.1754944e-38, %v1817
    %v1819 = vsel %vm1816, %v1818, %v1814
    %v1820 = vmul.f32 1.0, %v1819
    %v1821 = vrcp.pop %v1777
    %v1822 = vmul.f32 %v1777, %v1821
    %v1823 = vsub.f32 1.0, %v1822
    %v1824 = vmul.f32 %v1821, %v1823
    %v1825 = vadd.f32 %v1821, %v1824
    %vm1826 = vweird.f32 %v1777
    %vm1827 = vweird.f32 %v1821
    %vm1828 = vmor %vm1826, %vm1827
    %v1829 = vsel %vm1828, %v1821, %v1825
    %v1830 = vand.u32 2147483647, %v1777
    %vm1831 = vcmp.eq.f32.partialorder %v1830, 8.507059e+37
    %v1832 = vand.u32 %v1777, 2147483648
    %v1833 = vor.u32 1.1754944e-38, %v1832
    %v1834 = vsel %vm1831, %v1833, %v1829
    %v1835 = vmul.f32 1.0, %v1834
    %v1836 = vrcp.pop %v1778
    %v1837 = vmul.f32 %v1778, %v1836
    %v1838 = vsub.f32 1.0, %v1837
    %v1839 = vmul.f32 %v1836, %v1838
    %v1840 = vadd.f32 %v1836, %v1839
    %vm1841 = vweird.f32 %v1778
    %vm1842 = vweird.f32 %v1836
    %vm1843 = vmor %vm1841, %vm1842
    %v1844 = vsel %vm1843, %v1836, %v1840
    %v1845 = vand.u32 2147483647, %v1778
    %vm1846 = vcmp.eq.f32.partialorder %v1845, 8.507059e+37
    %v1847 = vand.u32 %v1778, 2147483648
    %v1848 = vor.u32 1.1754944e-38, %v1847
    %v1849 = vsel %vm1846, %v1848, %v1844
    %v1850 = vmul.f32 1.0, %v1849
    %v1851 = vrcp.pop %v1779
    %v1852 = vmul.f32 %v1779, %v1851
    %v1853 = vsub.f32 1.0, %v1852
    %v1854 = vmul.f32 %v1851, %v1853
    %v1855 = vadd.f32 %v1851, %v1854
    %vm1856 = vweird.f32 %v1779
    %vm1857 = vweird.f32 %v1851
    %vm1858 = vmor %vm1856, %vm1857
    %v1859 = vsel %vm1858, %v1851, %v1855
    %v1860 = vand.u32 2147483647, %v1779
    %vm1861 = vcmp.eq.f32.partialorder %v1860, 8.507059e+37
    %v1862 = vand.u32 %v1779, 2147483648
    %v1863 = vor.u32 1.1754944e-38, %v1862
    %v1864 = vsel %vm1861, %v1863, %v1859
    %v1865 = vmul.f32 1.0, %v1864
    %v1866 = vrcp.pop %v1780
    %v1867 = vmul.f32 %v1780, %v1866
    %v1868 = vsub.f32 1.0, %v1867
    %v1869 = vmul.f32 %v1866, %v1868
    %v1870 = vadd.f32 %v1866, %v1869
    %vm1871 = vweird.f32 %v1780
    %vm1872 = vweird.f32 %v1866
    %vm1873 = vmor %vm1871, %vm1872
    %v1874 = vsel %vm1873, %v1866, %v1870
    %v1875 = vand.u32 2147483647, %v1780
    %vm1876 = vcmp.eq.f32.partialorder %v1875, 8.507059e+37
    %v1877 = vand.u32 %v1780, 2147483648
    %v1878 = vor.u32 1.1754944e-38, %v1877
    %v1879 = vsel %vm1876, %v1878, %v1874
    %v1880 = vmul.f32 1.0, %v1879
    %v1881 = vrcp.pop %v1781
    %v1882 = vmul.f32 %v1781, %v1881
    %v1883 = vsub.f32 1.0, %v1882
    %v1884 = vmul.f32 %v1881, %v1883
    %v1885 = vadd.f32 %v1881, %v1884
    %vm1886 = vweird.f32 %v1781
    %vm1887 = vweird.f32 %v1881
    %vm1888 = vmor %vm1886, %vm1887
    %v1889 = vsel %vm1888, %v1881, %v1885
    %v1890 = vand.u32 2147483647, %v1781
    %vm1891 = vcmp.eq.f32.partialorder %v1890, 8.507059e+37
    %v1892 = vand.u32 %v1781, 2147483648
    %v1893 = vor.u32 1.1754944e-38, %v1892
    %v1894 = vsel %vm1891, %v1893, %v1889
    %v1895 = vmul.f32 1.0, %v1894
    %v1896 = vrcp.pop %v1782
    %v1897 = vmul.f32 %v1782, %v1896
    %v1898 = vsub.f32 1.0, %v1897
    %v1899 = vmul.f32 %v1896, %v1898
    %v1900 = vadd.f32 %v1896, %v1899
    %vm1901 = vweird.f32 %v1782
    %vm1902 = vweird.f32 %v1896
    %vm1903 = vmor %vm1901, %vm1902
    %v1904 = vsel %vm1903, %v1896, %v1900
    %v1905 = vand.u32 2147483647, %v1782
    %vm1906 = vcmp.eq.f32.partialorder %v1905, 8.507059e+37
    %v1907 = vand.u32 %v1782, 2147483648
    %v1908 = vor.u32 1.1754944e-38, %v1907
    %v1909 = vsel %vm1906, %v1908, %v1904
    %v1910 = vmul.f32 1.0, %v1909
    %v1911 = vrcp.pop %v1783
    %v1912 = vmul.f32 %v1783, %v1911
    %v1913 = vsub.f32 1.0, %v1912
    %v1914 = vmul.f32 %v1911, %v1913
    %v1915 = vadd.f32 %v1911, %v1914
    %vm1916 = vweird.f32 %v1783
    %vm1917 = vweird.f32 %v1911
    %vm1918 = vmor %vm1916, %vm1917
    %v1919 = vsel %vm1918, %v1911, %v1915
    %v1920 = vand.u32 2147483647, %v1783
    %vm1921 = vcmp.eq.f32.partialorder %v1920, 8.507059e+37
    %v1922 = vand.u32 %v1783, 2147483648
    %v1923 = vor.u32 1.1754944e-38, %v1922
    %v1924 = vsel %vm1921, %v1923, %v1919
    %v1925 = vmul.f32 1.0, %v1924
    %v1926 = vrcp.pop %v1784
    %v1927 = vmul.f32 %v1784, %v1926
    %v1928 = vsub.f32 1.0, %v1927
    %v1929 = vmul.f32 %v1926, %v1928
    %v1930 = vadd.f32 %v1926, %v1929
    %vm1931 = vweird.f32 %v1784
    %vm1932 = vweird.f32 %v1926
    %vm1933 = vmor %vm1931, %vm1932
    %v1934 = vsel %vm1933, %v1926, %v1930
    %v1935 = vand.u32 2147483647, %v1784
    %vm1936 = vcmp.eq.f32.partialorder %v1935, 8.507059e+37
    %v1937 = vand.u32 %v1784, 2147483648
    %v1938 = vor.u32 1.1754944e-38, %v1937
    %v1939 = vsel %vm1936, %v1938, %v1934
    %v1940 = vmul.f32 1.0, %v1939
    %v1941 = vrcp.pop %v1785
    %v1942 = vmul.f32 %v1785, %v1941
    %v1943 = vsub.f32 1.0, %v1942
    %v1944 = vmul.f32 %v1941, %v1943
    %v1945 = vadd.f32 %v1941, %v1944
    %vm1946 = vweird.f32 %v1785
    %vm1947 = vweird.f32 %v1941
    %vm1948 = vmor %vm1946, %vm1947
    %v1949 = vsel %vm1948, %v1941, %v1945
    %v1950 = vand.u32 2147483647, %v1785
    %vm1951 = vcmp.eq.f32.partialorder %v1950, 8.507059e+37
    %v1952 = vand.u32 %v1785, 2147483648
    %v1953 = vor.u32 1.1754944e-38, %v1952
    %v1954 = vsel %vm1951, %v1953, %v1949
    %v1955 = vmul.f32 1.0, %v1954
    %v1956 = vrcp.pop %v1786
    %v1957 = vmul.f32 %v1786, %v1956
    %v1958 = vsub.f32 1.0, %v1957
    %v1959 = vmul.f32 %v1956, %v1958
    %v1960 = vadd.f32 %v1956, %v1959
    %vm1961 = vweird.f32 %v1786
    %vm1962 = vweird.f32 %v1956
    %vm1963 = vmor %vm1961, %vm1962
    %v1964 = vsel %vm1963, %v1956, %v1960
    %v1965 = vand.u32 2147483647, %v1786
    %vm1966 = vcmp.eq.f32.partialorder %v1965, 8.507059e+37
    %v1967 = vand.u32 %v1786, 2147483648
    %v1968 = vor.u32 1.1754944e-38, %v1967
    %v1969 = vsel %vm1966, %v1968, %v1964
    %v1970 = vmul.f32 1.0, %v1969
    %v1971 = vrcp.pop %v1787
    %v1972 = vmul.f32 %v1787, %v1971
    %v1973 = vsub.f32 1.0, %v1972
    %v1974 = vmul.f32 %v1971, %v1973
    %v1975 = vadd.f32 %v1971, %v1974
    %vm1976 = vweird.f32 %v1787
    %vm1977 = vweird.f32 %v1971
    %vm1978 = vmor %vm1976, %vm1977
    %v1979 = vsel %vm1978, %v1971, %v1975
    %v1980 = vand.u32 2147483647, %v1787
    %vm1981 = vcmp.eq.f32.partialorder %v1980, 8.507059e+37
    %v1982 = vand.u32 %v1787, 2147483648
    %v1983 = vor.u32 1.1754944e-38, %v1982
    %v1984 = vsel %vm1981, %v1983, %v1979
    %v1985 = vmul.f32 1.0, %v1984
    %v1986 = vrcp.pop %v1788
    %v1987 = vmul.f32 %v1788, %v1986
    %v1988 = vsub.f32 1.0, %v1987
    %v1989 = vmul.f32 %v1986, %v1988
    %v1990 = vadd.f32 %v1986, %v1989
    %vm1991 = vweird.f32 %v1788
    %vm1992 = vweird.f32 %v1986
    %vm1993 = vmor %vm1991, %vm1992
    %v1994 = vsel %vm1993, %v1986, %v1990
    %v1995 = vand.u32 2147483647, %v1788
    %vm1996 = vcmp.eq.f32.partialorder %v1995, 8.507059e+37
    %v1997 = vand.u32 %v1788, 2147483648
    %v1998 = vor.u32 1.1754944e-38, %v1997
    %v1999 = vsel %vm1996, %v1998, %v1994
    %v2000 = vmul.f32 1.0, %v1999
    %v2001 = vrcp.pop %v1789
    %v2002 = vmul.f32 %v1789, %v2001
    %v2003 = vsub.f32 1.0, %v2002
    %v2004 = vmul.f32 %v2001, %v2003
    %v2005 = vadd.f32 %v2001, %v2004
    %vm2006 = vweird.f32 %v1789
    %vm2007 = vweird.f32 %v2001
    %vm2008 = vmor %vm2006, %vm2007
    %v2009 = vsel %vm2008, %v2001, %v2005
    %v2010 = vand.u32 2147483647, %v1789
    %vm2011 = vcmp.eq.f32.partialorder %v2010, 8.507059e+37
    %v2012 = vand.u32 %v1789, 2147483648
    %v2013 = vor.u32 1.1754944e-38, %v2012
    %v2014 = vsel %vm2011, %v2013, %v2009
    %v2015 = vmul.f32 1.0, %v2014
    %v2016 = vrcp.pop %v1790
    %v2017 = vmul.f32 %v1790, %v2016
    %v2018 = vsub.f32 1.0, %v2017
    %v2019 = vmul.f32 %v2016, %v2018
    %v2020 = vadd.f32 %v2016, %v2019
    %vm2021 = vweird.f32 %v1790
    %vm2022 = vweird.f32 %v2016
    %vm2023 = vmor %vm2021, %vm2022
    %v2024 = vsel %vm2023, %v2016, %v2020
    %v2025 = vand.u32 2147483647, %v1790
    %vm2026 = vcmp.eq.f32.partialorder %v2025, 8.507059e+37
    %v2027 = vand.u32 %v1790, 2147483648
    %v2028 = vor.u32 1.1754944e-38, %v2027
    %v2029 = vsel %vm2026, %v2028, %v2024
    %v2030 = vmul.f32 1.0, %v2029
    %v2031 = vmul.f32 %v1805, %v770
    %v2032 = vmul.f32 %v1820, %v772
    %v2033 = vmul.f32 %v1835, %v775
    %v2034 = vmul.f32 %v1850, %v777
    %v2035 = vmul.f32 %v1865, %v780
    %v2036 = vmul.f32 %v1880, %v782
    %v2037 = vmul.f32 %v1895, %v785
    %v2038 = vmul.f32 %v1910, %v787
    %v2039 = vmul.f32 %v1925, %v790
    %v2040 = vmul.f32 %v1940, %v792
    %v2041 = vmul.f32 %v1955, %v795
    %v2042 = vmul.f32 %v1970, %v797
    %v2043 = vmul.f32 %v1985, %v800
    %v2044 = vmul.f32 %v2000, %v802
    %v2045 = vmul.f32 %v2015, %v805
    %v2046 = vmul.f32 %v2030, %v807
    %v2047 = vsub.f32 1.0, %v1805
    %v2048 = vsub.f32 1.0, %v1820
    %v2049 = vsub.f32 1.0, %v1835
    %v2050 = vsub.f32 1.0, %v1850
    %v2051 = vsub.f32 1.0, %v1865
    %v2052 = vsub.f32 1.0, %v1880
    %v2053 = vsub.f32 1.0, %v1895
    %v2054 = vsub.f32 1.0, %v1910
    %v2055 = vsub.f32 1.0, %v1925
    %v2056 = vsub.f32 1.0, %v1940
    %v2057 = vsub.f32 1.0, %v1955
    %v2058 = vsub.f32 1.0, %v1970
    %v2059 = vsub.f32 1.0, %v1985
    %v2060 = vsub.f32 1.0, %v2000
    %v2061 = vsub.f32 1.0, %v2015
    %v2062 = vsub.f32 1.0, %v2030
    %v2063 = vmul.f32 %v2047, %v809
    %v2064 = vmul.f32 %v2048, %v810
    %v2065 = vmul.f32 %v2049, %v811
    %v2066 = vmul.f32 %v2050, %v812
    %v2067 = vmul.f32 %v2051, %v813
    %v2068 = vmul.f32 %v2052, %v814
    %v2069 = vmul.f32 %v2053, %v815
    %v2070 = vmul.f32 %v2054, %v816
    %v2071 = vmul.f32 %v2055, %v817
    %v2072 = vmul.f32 %v2056, %v818
    %v2073 = vmul.f32 %v2057, %v819
    %v2074 = vmul.f32 %v2058, %v820
    %v2075 = vmul.f32 %v2059, %v821
    %v2076 = vmul.f32 %v2060, %v822
    %v2077 = vmul.f32 %v2061, %v823
    %v2078 = vmul.f32 %v2062, %v824
    %v2079 = vadd.f32 %v2031, %v2063
    %v2080 = vadd.f32 %v2032, %v2064
    %v2081 = vadd.f32 %v2033, %v2065
    %v2082 = vadd.f32 %v2034, %v2066
    %v2083 = vadd.f32 %v2035, %v2067
    %v2084 = vadd.f32 %v2036, %v2068
    %v2085 = vadd.f32 %v2037, %v2069
    %v2086 = vadd.f32 %v2038, %v2070
    %v2087 = vadd.f32 %v2039, %v2071
    %v2088 = vadd.f32 %v2040, %v2072
    %v2089 = vadd.f32 %v2041, %v2073
    %v2090 = vadd.f32 %v2042, %v2074
    %v2091 = vadd.f32 %v2043, %v2075
    %v2092 = vadd.f32 %v2044, %v2076
    %v2093 = vadd.f32 %v2045, %v2077
    %v2094 = vadd.f32 %v2046, %v2078
    %v2095 = vld [vmem:[#allocation8] sm:$0xf]
    %v2096 = vpack.c.bf16 %v2080, %v2079
    %v2097 = vpack.c.bf16 %v2082, %v2081
    %v2098 = vpack.c.bf16 %v2084, %v2083
    %v2099 = vpack.c.bf16 %v2086, %v2085
    %v2100 = vpack.c.bf16 %v2088, %v2087
    %v2101 = vpack.c.bf16 %v2090, %v2089
    %v2102 = vpack.c.bf16 %v2092, %v2091
    %v2103 = vpack.c.bf16 %v2094, %v2093
    %2104 = vmatpush.bf16.msra.mxu0 %v2103
    %2105 = vmatpush.bf16.msra.mxu0 %v2102
    %2106 = vmatpush.bf16.msra.mxu0 %v2101
    %2107 = vmatpush.bf16.msra.mxu0 %v2100
    %2108 = vmatpush.bf16.msra.mxu0 %v2099
    %2109 = vmatpush.bf16.msra.mxu0 %v2098
    %2110 = vmatpush.bf16.msra.mxu0 %v2097
    %2111 = vmatpush.bf16.msra.mxu0 %v2096
    %2112 = vmatmul.bf16.gmra.mxu0 %v2095
    %v2113 = vpop.f32.mrf.mxu0
    %v2114 = vadd.f32 0.0, %v2113
    %v2115 = vpop.f32.mrf.mxu0
    %2116 = vdwg.mxu0
    %v2117 = vpack.c.bf16 %v2114, %v2114
    %v2118 = vld [vmem:[#allocation17] sm:$0xff]
    %v2119 = vld [vmem:[#allocation17 + $0x8] sm:$0xf]
    %v2120 = vld [vmem:[#allocation17 + $0xc] sm:$0xff]
    %v2121 = vld [vmem:[#allocation17 + $0x14] sm:$0xf]
    %v2122 = vld [vmem:[#allocation17 + $0x18] sm:$0xff]
    %v2123 = vld [vmem:[#allocation17 + $0x20] sm:$0xf]
    %v2124 = vld [vmem:[#allocation17 + $0x24] sm:$0xff]
    %v2125 = vld [vmem:[#allocation17 + $0x2c] sm:$0xf]
    %v2126 = vld [vmem:[#allocation17 + $0x30] sm:$0xff]
    %v2127 = vld [vmem:[#allocation17 + $0x38] sm:$0xf]
    %v2128 = vld [vmem:[#allocation17 + $0x3c] sm:$0xff]
    %v2129 = vld [vmem:[#allocation17 + $0x44] sm:$0xf]
    %v2130 = vld [vmem:[#allocation17 + $0x48] sm:$0xff]
    %v2131 = vld [vmem:[#allocation17 + $0x50] sm:$0xf]
    %v2132 = vld [vmem:[#allocation17 + $0x54] sm:$0xff]
    %v2133 = vld [vmem:[#allocation17 + $0x5c] sm:$0xf]
    %v2134 = vld [vmem:[#allocation17 + $0x60] sm:$0xff]
    %v2135 = vld [vmem:[#allocation17 + $0x68] sm:$0xf]
    %v2136 = vld [vmem:[#allocation17 + $0x6c] sm:$0xff]
    %v2137 = vld [vmem:[#allocation17 + $0x74] sm:$0xf]
    %v2138 = vld [vmem:[#allocation17 + $0x78] sm:$0xff]
    %v2139 = vld [vmem:[#allocation17 + $0x80] sm:$0xf]
    %v2140 = vld [vmem:[#allocation17 + $0x84] sm:$0xff]
    %v2141 = vld [vmem:[#allocation17 + $0x8c] sm:$0xf]
    %v2142 = vld [vmem:[#allocation17 + $0x90] sm:$0xff]
    %v2143 = vld [vmem:[#allocation17 + $0x98] sm:$0xf]
    %v2144 = vld [vmem:[#allocation17 + $0x9c] sm:$0xff]
    %v2145 = vld [vmem:[#allocation17 + $0xa4] sm:$0xf]
    %v2146 = vld [vmem:[#allocation17 + $0xa8] sm:$0xff]
    %v2147 = vld [vmem:[#allocation17 + $0xb0] sm:$0xf]
    %v2148 = vld [vmem:[#allocation17 + $0xb4] sm:$0xff]
    %v2149 = vld [vmem:[#allocation17 + $0xbc] sm:$0xf]
    %v2150 = vld [vmem:[%s10] sm:$0x7]
    %v2152 = vperm.slane %v2150, 0
    %v2153 = vperm.slane %v2150, 1
    %v2154 = vperm.slane %v2150, 2
    %v2190 = vunpack.c.l.b16 %v2118
    %v2191 = vunpack.c.h.b16 %v2118
    %v2192 = vunpack.c.l.b16 %v2119
    %v2193 = vunpack.c.l.b16 %v2120
    %v2194 = vunpack.c.h.b16 %v2120
    %v2195 = vunpack.c.l.b16 %v2121
    %v2196 = vunpack.c.l.b16 %v2122
    %v2197 = vunpack.c.h.b16 %v2122
    %v2198 = vunpack.c.l.b16 %v2123
    %v2199 = vunpack.c.l.b16 %v2124
    %v2200 = vunpack.c.h.b16 %v2124
    %v2201 = vunpack.c.l.b16 %v2125
    %v2202 = vunpack.c.l.b16 %v2126
    %v2203 = vunpack.c.h.b16 %v2126
    %v2204 = vunpack.c.l.b16 %v2127
    %v2205 = vunpack.c.l.b16 %v2128
    %v2206 = vunpack.c.h.b16 %v2128
    %v2207 = vunpack.c.l.b16 %v2129
    %v2208 = vunpack.c.l.b16 %v2130
    %v2209 = vunpack.c.h.b16 %v2130
    %v2210 = vunpack.c.l.b16 %v2131
    %v2211 = vunpack.c.l.b16 %v2132
    %v2212 = vunpack.c.h.b16 %v2132
    %v2213 = vunpack.c.l.b16 %v2133
    %v2214 = vunpack.c.l.b16 %v2134
    %v2215 = vunpack.c.h.b16 %v2134
    %v2216 = vunpack.c.l.b16 %v2135
    %v2217 = vunpack.c.l.b16 %v2136
    %v2218 = vunpack.c.h.b16 %v2136
    %v2219 = vunpack.c.l.b16 %v2137
    %v2220 = vunpack.c.l.b16 %v2138
    %v2221 = vunpack.c.h.b16 %v2138
    %v2222 = vunpack.c.l.b16 %v2139
    %v2223 = vunpack.c.l.b16 %v2140
    %v2224 = vunpack.c.h.b16 %v2140
    %v2225 = vunpack.c.l.b16 %v2141
    %v2226 = vunpack.c.l.b16 %v2142
    %v2227 = vunpack.c.h.b16 %v2142
    %v2228 = vunpack.c.l.b16 %v2143
    %v2229 = vunpack.c.l.b16 %v2144
    %v2230 = vunpack.c.h.b16 %v2144
    %v2231 = vunpack.c.l.b16 %v2145
    %v2232 = vunpack.c.l.b16 %v2146
    %v2233 = vunpack.c.h.b16 %v2146
    %v2234 = vunpack.c.l.b16 %v2147
    %v2235 = vunpack.c.l.b16 %v2148
    %v2236 = vunpack.c.h.b16 %v2148
    %v2237 = vunpack.c.l.b16 %v2149
    %v2238 = vpack.c.b16 %v2193, %v2190
    %v2239 = vpack.c.b16 %v2194, %v2191
    %v2240 = vpack.c.b16 %v2195, %v2192
    %v2241 = vpack.c.b16 %v2199, %v2196
    %v2242 = vpack.c.b16 %v2200, %v2197
    %v2243 = vpack.c.b16 %v2201, %v2198
    %v2244 = vpack.c.b16 %v2205, %v2202
    %v2245 = vpack.c.b16 %v2206, %v2203
    %v2246 = vpack.c.b16 %v2207, %v2204
    %v2247 = vpack.c.b16 %v2211, %v2208
    %v2248 = vpack.c.b16 %v2212, %v2209
    %v2249 = vpack.c.b16 %v2213, %v2210
    %v2250 = vpack.c.b16 %v2217, %v2214
    %v2251 = vpack.c.b16 %v2218, %v2215
    %v2252 = vpack.c.b16 %v2219, %v2216
    %v2253 = vpack.c.b16 %v2223, %v2220
    %v2254 = vpack.c.b16 %v2224, %v2221
    %v2255 = vpack.c.b16 %v2225, %v2222
    %v2256 = vpack.c.b16 %v2229, %v2226
    %v2257 = vpack.c.b16 %v2230, %v2227
    %v2258 = vpack.c.b16 %v2231, %v2228
    %v2259 = vpack.c.b16 %v2235, %v2232
    %v2260 = vpack.c.b16 %v2236, %v2233
    %v2261 = vpack.c.b16 %v2237, %v2234
    %2286 = vmatpush.bf16.msra.mxu0 %v2259
    %2287 = vmatpush.bf16.msra.mxu0 %v2256
    %2288 = vmatpush.bf16.msra.mxu0 %v2253
    %2289 = vmatpush.bf16.msra.mxu0 %v2250
    %2290 = vmatpush.bf16.msra.mxu0 %v2247
    %2291 = vmatpush.bf16.msra.mxu0 %v2244
    %2292 = vmatpush.bf16.msra.mxu0 %v2241
    %2293 = vmatpush.bf16.msra.mxu0 %v2238
    %2294 = vmatmul.bf16.gmra.mxu0 %v2117
    %v2295 = vpop.f32.mrf.mxu0
    %v2296 = vadd.f32 %v2152, %v2295
    %v2297 = vpop.f32.mrf.mxu0
    %2298 = vdwg.mxu0
    %2299 = vmatpush.bf16.msra.mxu0 %v2260
    %2300 = vmatpush.bf16.msra.mxu0 %v2257
    %2301 = vmatpush.bf16.msra.mxu0 %v2254
    %2302 = vmatpush.bf16.msra.mxu0 %v2251
    %2303 = vmatpush.bf16.msra.mxu0 %v2248
    %2304 = vmatpush.bf16.msra.mxu0 %v2245
    %2305 = vmatpush.bf16.msra.mxu0 %v2242
    %2306 = vmatpush.bf16.msra.mxu0 %v2239
    %2307 = vmatmul.bf16.gmra.mxu0 %v2117
    %v2308 = vpop.f32.mrf.mxu0
    %v2309 = vadd.f32 %v2153, %v2308
    %v2310 = vpop.f32.mrf.mxu0
    %2311 = vdwg.mxu0
    %2312 = vmatpush.bf16.msra.mxu0 %v2261
    %2313 = vmatpush.bf16.msra.mxu0 %v2258
    %2314 = vmatpush.bf16.msra.mxu0 %v2255
    %2315 = vmatpush.bf16.msra.mxu0 %v2252
    %2316 = vmatpush.bf16.msra.mxu0 %v2249
    %2317 = vmatpush.bf16.msra.mxu0 %v2246
    %2318 = vmatpush.bf16.msra.mxu0 %v2243
    %2319 = vmatpush.bf16.msra.mxu0 %v2240
    %2320 = vmatmul.bf16.gmra.mxu0 %v2117
    %v2321 = vpop.f32.mrf.mxu0
    %v2322 = vadd.f32 %v2154, %v2321
    %v2323 = vpop.f32.mrf.mxu0
    %2324 = vdwg.mxu0
    %v2325 = vld [vmem:[#allocation18] sm:$0xff]
    %v2326 = vld [vmem:[#allocation18 + $0x8] sm:$0xf]
    %v2327 = vld [vmem:[#allocation18 + $0xc] sm:$0xff]
    %v2328 = vld [vmem:[#allocation18 + $0x14] sm:$0xf]
    %v2329 = vld [vmem:[#allocation18 + $0x18] sm:$0xff]
    %v2330 = vld [vmem:[#allocation18 + $0x20] sm:$0xf]
    %v2331 = vld [vmem:[#allocation18 + $0x24] sm:$0xff]
    %v2332 = vld [vmem:[#allocation18 + $0x2c] sm:$0xf]
    %v2333 = vld [vmem:[#allocation18 + $0x30] sm:$0xff]
    %v2334 = vld [vmem:[#allocation18 + $0x38] sm:$0xf]
    %v2335 = vld [vmem:[#allocation18 + $0x3c] sm:$0xff]
    %v2336 = vld [vmem:[#allocation18 + $0x44] sm:$0xf]
    %v2337 = vld [vmem:[#allocation18 + $0x48] sm:$0xff]
    %v2338 = vld [vmem:[#allocation18 + $0x50] sm:$0xf]
    %v2339 = vld [vmem:[#allocation18 + $0x54] sm:$0xff]
    %v2340 = vld [vmem:[#allocation18 + $0x5c] sm:$0xf]
    %v2341 = vld [vmem:[#allocation18 + $0x60] sm:$0xff]
    %v2342 = vld [vmem:[#allocation18 + $0x68] sm:$0xf]
    %v2343 = vld [vmem:[#allocation18 + $0x6c] sm:$0xff]
    %v2344 = vld [vmem:[#allocation18 + $0x74] sm:$0xf]
    %v2345 = vld [vmem:[#allocation18 + $0x78] sm:$0xff]
    %v2346 = vld [vmem:[#allocation18 + $0x80] sm:$0xf]
    %v2347 = vld [vmem:[#allocation18 + $0x84] sm:$0xff]
    %v2348 = vld [vmem:[#allocation18 + $0x8c] sm:$0xf]
    %v2349 = vld [vmem:[#allocation18 + $0x90] sm:$0xff]
    %v2350 = vld [vmem:[#allocation18 + $0x98] sm:$0xf]
    %v2351 = vld [vmem:[#allocation18 + $0x9c] sm:$0xff]
    %v2352 = vld [vmem:[#allocation18 + $0xa4] sm:$0xf]
    %v2353 = vld [vmem:[#allocation18 + $0xa8] sm:$0xff]
    %v2354 = vld [vmem:[#allocation18 + $0xb0] sm:$0xf]
    %v2355 = vld [vmem:[#allocation18 + $0xb4] sm:$0xff]
    %v2356 = vld [vmem:[#allocation18 + $0xbc] sm:$0xf]
    %v2357 = vld [vmem:[%s12] sm:$0x7]
    %v2390 = vunpack.c.l.b16 %v2325
    %v2391 = vunpack.c.h.b16 %v2325
    %v2392 = vunpack.c.l.b16 %v2326
    %v2393 = vunpack.c.l.b16 %v2327
    %v2394 = vunpack.c.h.b16 %v2327
    %v2395 = vunpack.c.l.b16 %v2328
    %v2396 = vunpack.c.l.b16 %v2329
    %v2397 = vunpack.c.h.b16 %v2329
    %v2398 = vunpack.c.l.b16 %v2330
    %v2399 = vunpack.c.l.b16 %v2331
    %v2400 = vunpack.c.h.b16 %v2331
    %v2401 = vunpack.c.l.b16 %v2332
    %v2402 = vunpack.c.l.b16 %v2333
    %v2403 = vunpack.c.h.b16 %v2333
    %v2404 = vunpack.c.l.b16 %v2334
    %v2405 = vunpack.c.l.b16 %v2335
    %v2406 = vunpack.c.h.b16 %v2335
    %v2407 = vunpack.c.l.b16 %v2336
    %v2408 = vunpack.c.l.b16 %v2337
    %v2409 = vunpack.c.h.b16 %v2337
    %v2410 = vunpack.c.l.b16 %v2338
    %v2411 = vunpack.c.l.b16 %v2339
    %v2412 = vunpack.c.h.b16 %v2339
    %v2413 = vunpack.c.l.b16 %v2340
    %v2414 = vunpack.c.l.b16 %v2341
    %v2415 = vunpack.c.h.b16 %v2341
    %v2416 = vunpack.c.l.b16 %v2342
    %v2417 = vunpack.c.l.b16 %v2343
    %v2418 = vunpack.c.h.b16 %v2343
    %v2419 = vunpack.c.l.b16 %v2344
    %v2420 = vunpack.c.l.b16 %v2345
    %v2421 = vunpack.c.h.b16 %v2345
    %v2422 = vunpack.c.l.b16 %v2346
    %v2423 = vunpack.c.l.b16 %v2347
    %v2424 = vunpack.c.h.b16 %v2347
    %v2425 = vunpack.c.l.b16 %v2348
    %v2426 = vunpack.c.l.b16 %v2349
    %v2427 = vunpack.c.h.b16 %v2349
    %v2428 = vunpack.c.l.b16 %v2350
    %v2429 = vunpack.c.l.b16 %v2351
    %v2430 = vunpack.c.h.b16 %v2351
    %v2431 = vunpack.c.l.b16 %v2352
    %v2432 = vunpack.c.l.b16 %v2353
    %v2433 = vunpack.c.h.b16 %v2353
    %v2434 = vunpack.c.l.b16 %v2354
    %v2435 = vunpack.c.l.b16 %v2355
    %v2436 = vunpack.c.h.b16 %v2355
    %v2437 = vunpack.c.l.b16 %v2356
    %v2438 = vpack.c.b16 %v2393, %v2390
    %v2439 = vpack.c.b16 %v2394, %v2391
    %v2440 = vpack.c.b16 %v2395, %v2392
    %v2441 = vpack.c.b16 %v2399, %v2396
    %v2442 = vpack.c.b16 %v2400, %v2397
    %v2443 = vpack.c.b16 %v2401, %v2398
    %v2444 = vpack.c.b16 %v2405, %v2402
    %v2445 = vpack.c.b16 %v2406, %v2403
    %v2446 = vpack.c.b16 %v2407, %v2404
    %v2447 = vpack.c.b16 %v2411, %v2408
    %v2448 = vpack.c.b16 %v2412, %v2409
    %v2449 = vpack.c.b16 %v2413, %v2410
    %v2450 = vpack.c.b16 %v2417, %v2414
    %v2451 = vpack.c.b16 %v2418, %v2415
    %v2452 = vpack.c.b16 %v2419, %v2416
    %v2453 = vpack.c.b16 %v2423, %v2420
    %v2454 = vpack.c.b16 %v2424, %v2421
    %v2455 = vpack.c.b16 %v2425, %v2422
    %v2456 = vpack.c.b16 %v2429, %v2426
    %v2457 = vpack.c.b16 %v2430, %v2427
    %v2458 = vpack.c.b16 %v2431, %v2428
    %v2459 = vpack.c.b16 %v2435, %v2432
    %v2460 = vpack.c.b16 %v2436, %v2433
    %v2461 = vpack.c.b16 %v2437, %v2434
    %v2487 = vperm.slane %v2357, 0
    %v2488 = vperm.slane %v2357, 1
    %v2489 = vperm.slane %v2357, 2
    %2493 = vmatpush.bf16.msra.mxu0 %v2459
    %2494 = vmatpush.bf16.msra.mxu0 %v2456
    %2495 = vmatpush.bf16.msra.mxu0 %v2453
    %2496 = vmatpush.bf16.msra.mxu0 %v2450
    %2497 = vmatpush.bf16.msra.mxu0 %v2447
    %2498 = vmatpush.bf16.msra.mxu0 %v2444
    %2499 = vmatpush.bf16.msra.mxu0 %v2441
    %2500 = vmatpush.bf16.msra.mxu0 %v2438
    %2501 = vmatmul.bf16.gmra.mxu0 0
    %v2502 = vpop.f32.mrf.mxu0
    %v2503 = vadd.f32 %v2487, %v2502
    %v2504 = vpop.f32.mrf.mxu0
    %2505 = vdwg.mxu0
    %2506 = vmatpush.bf16.msra.mxu0 %v2460
    %2507 = vmatpush.bf16.msra.mxu0 %v2457
    %2508 = vmatpush.bf16.msra.mxu0 %v2454
    %2509 = vmatpush.bf16.msra.mxu0 %v2451
    %2510 = vmatpush.bf16.msra.mxu0 %v2448
    %2511 = vmatpush.bf16.msra.mxu0 %v2445
    %2512 = vmatpush.bf16.msra.mxu0 %v2442
    %2513 = vmatpush.bf16.msra.mxu0 %v2439
    %2514 = vmatmul.bf16.gmra.mxu0 0
    %v2515 = vpop.f32.mrf.mxu0
    %v2516 = vadd.f32 %v2488, %v2515
    %v2517 = vpop.f32.mrf.mxu0
    %2518 = vdwg.mxu0
    %2519 = vmatpush.bf16.msra.mxu0 %v2461
    %2520 = vmatpush.bf16.msra.mxu0 %v2458
    %2521 = vmatpush.bf16.msra.mxu0 %v2455
    %2522 = vmatpush.bf16.msra.mxu0 %v2452
    %2523 = vmatpush.bf16.msra.mxu0 %v2449
    %2524 = vmatpush.bf16.msra.mxu0 %v2446
    %2525 = vmatpush.bf16.msra.mxu0 %v2443
    %2526 = vmatpush.bf16.msra.mxu0 %v2440
    %2527 = vmatmul.bf16.gmra.mxu0 0
    %v2528 = vpop.f32.mrf.mxu0
    %v2529 = vadd.f32 %v2489, %v2528
    %v2530 = vpop.f32.mrf.mxu0
    %2531 = vdwg.mxu0
    %v2532 = vadd.f32 %v2296, %v2503
    %v2533 = vxor.u32 %v2532, 2147483648
    %v2534 = vmul.f32 %v2533, 1.442695
    %v2535 = vpow.pop %v2534
    %v2536 = vadd.f32 %v2535, 1.0
    %v2537 = vrcp.pop %v2536
    %v2538 = vmul.f32 %v2536, %v2537
    %v2539 = vsub.f32 1.0, %v2538
    %v2540 = vmul.f32 %v2537, %v2539
    %v2541 = vadd.f32 %v2537, %v2540
    %vm2542 = vweird.f32 %v2536
    %vm2543 = vweird.f32 %v2537
    %vm2544 = vmor %vm2542, %vm2543
    %v2545 = vsel %vm2544, %v2537, %v2541
    %v2546 = vand.u32 2147483647, %v2536
    %vm2547 = vcmp.eq.f32.partialorder %v2546, 8.507059e+37
    %v2548 = vand.u32 %v2536, 2147483648
    %v2549 = vor.u32 1.1754944e-38, %v2548
    %v2550 = vsel %vm2547, %v2549, %v2545
    %v2551 = vmul.f32 1.0, %v2550
    %v2552 = vadd.f32 %v2309, %v2516
    %v2553 = vxor.u32 %v2552, 2147483648
    %v2554 = vmul.f32 %v2553, 1.442695
    %v2555 = vpow.pop %v2554
    %v2556 = vadd.f32 %v2555, 1.0
    %v2557 = vrcp.pop %v2556
    %v2558 = vmul.f32 %v2556, %v2557
    %v2559 = vsub.f32 1.0, %v2558
    %v2560 = vmul.f32 %v2557, %v2559
    %v2561 = vadd.f32 %v2557, %v2560
    %vm2562 = vweird.f32 %v2556
    %vm2563 = vweird.f32 %v2557
    %vm2564 = vmor %vm2562, %vm2563
    %v2565 = vsel %vm2564, %v2557, %v2561
    %v2566 = vand.u32 2147483647, %v2556
    %vm2567 = vcmp.eq.f32.partialorder %v2566, 8.507059e+37
    %v2568 = vand.u32 %v2556, 2147483648
    %v2569 = vor.u32 1.1754944e-38, %v2568
    %v2570 = vsel %vm2567, %v2569, %v2565
    %v2571 = vmul.f32 1.0, %v2570
    %v2572 = vmul.f32 %v2551, %v2529
    %v2573 = vadd.f32 %v2322, %v2572
    %v2574 = vtanh.pop %v2573
    %v2575 = vsub.f32 1.0, %v2571
    %v2576 = vmul.f32 %v2575, %v2574
    %v2577 = vmul.f32 %v2571, 0.0
    %v2578 = vadd.f32 %v2576, %v2577
    %2579 = vst [vmem:[#allocation2] sm:$0x1] %v2578
    %v2580 = vpack.c.bf16 %v2578, %v2578
    %2581 = vmatpush.bf16.msra.mxu0 %v2459
    %2582 = vmatpush.bf16.msra.mxu0 %v2456
    %2583 = vmatpush.bf16.msra.mxu0 %v2453
    %2584 = vmatpush.bf16.msra.mxu0 %v2450
    %2585 = vmatpush.bf16.msra.mxu0 %v2447
    %2586 = vmatpush.bf16.msra.mxu0 %v2444
    %2587 = vmatpush.bf16.msra.mxu0 %v2441
    %2588 = vmatpush.bf16.msra.mxu0 %v2438
    %2589 = vmatmul.bf16.gmra.mxu0 %v2580
    %v2590 = vpop.f32.mrf.mxu0
    %v2591 = vadd.f32 %v2487, %v2590
    %v2592 = vpop.f32.mrf.mxu0
    %2593 = vdwg.mxu0
    %2594 = vmatpush.bf16.msra.mxu0 %v2460
    %2595 = vmatpush.bf16.msra.mxu0 %v2457
    %2596 = vmatpush.bf16.msra.mxu0 %v2454
    %2597 = vmatpush.bf16.msra.mxu0 %v2451
    %2598 = vmatpush.bf16.msra.mxu0 %v2448
    %2599 = vmatpush.bf16.msra.mxu0 %v2445
    %2600 = vmatpush.bf16.msra.mxu0 %v2442
    %2601 = vmatpush.bf16.msra.mxu0 %v2439
    %2602 = vmatmul.bf16.gmra.mxu0 %v2580
    %v2603 = vpop.f32.mrf.mxu0
    %v2604 = vadd.f32 %v2488, %v2603
    %v2605 = vpop.f32.mrf.mxu0
    %2606 = vdwg.mxu0
    %2607 = vmatpush.bf16.msra.mxu0 %v2461
    %2608 = vmatpush.bf16.msra.mxu0 %v2458
    %2609 = vmatpush.bf16.msra.mxu0 %v2455
    %2610 = vmatpush.bf16.msra.mxu0 %v2452
    %2611 = vmatpush.bf16.msra.mxu0 %v2449
    %2612 = vmatpush.bf16.msra.mxu0 %v2446
    %2613 = vmatpush.bf16.msra.mxu0 %v2443
    %2614 = vmatpush.bf16.msra.mxu0 %v2440
    %2615 = vmatmul.bf16.gmra.mxu0 %v2580
    %v2616 = vpop.f32.mrf.mxu0
    %v2617 = vadd.f32 %v2489, %v2616
    %v2618 = vpop.f32.mrf.mxu0
    %2619 = vdwg.mxu0
    %v2621 = vrot.slane %v2591, 7
    %v2623 = vadd.f32 %v2296, %v2621
    %v2624 = vxor.u32 %v2623, 2147483648
    %v2625 = vmul.f32 %v2624, 1.442695
    %v2626 = vpow.pop %v2625
    %v2627 = vadd.f32 %v2626, 1.0
    %v2628 = vrcp.pop %v2627
    %v2629 = vmul.f32 %v2627, %v2628
    %v2630 = vsub.f32 1.0, %v2629
    %v2631 = vmul.f32 %v2628, %v2630
    %v2632 = vadd.f32 %v2628, %v2631
    %vm2633 = vweird.f32 %v2627
    %vm2634 = vweird.f32 %v2628
    %vm2635 = vmor %vm2633, %vm2634
    %v2636 = vsel %vm2635, %v2628, %v2632
    %v2637 = vand.u32 2147483647, %v2627
    %vm2638 = vcmp.eq.f32.partialorder %v2637, 8.507059e+37
    %v2639 = vand.u32 %v2627, 2147483648
    %v2640 = vor.u32 1.1754944e-38, %v2639
    %v2641 = vsel %vm2638, %v2640, %v2636
    %v2642 = vmul.f32 1.0, %v2641
    %v2644 = vrot.slane %v2604, 7
    %v2646 = vadd.f32 %v2309, %v2644
    %v2647 = vxor.u32 %v2646, 2147483648
    %v2648 = vmul.f32 %v2647, 1.442695
    %v2649 = vpow.pop %v2648
    %v2650 = vadd.f32 %v2649, 1.0
    %v2651 = vrcp.pop %v2650
    %v2652 = vmul.f32 %v2650, %v2651
    %v2653 = vsub.f32 1.0, %v2652
    %v2654 = vmul.f32 %v2651, %v2653
    %v2655 = vadd.f32 %v2651, %v2654
    %vm2656 = vweird.f32 %v2650
    %vm2657 = vweird.f32 %v2651
    %vm2658 = vmor %vm2656, %vm2657
    %v2659 = vsel %vm2658, %v2651, %v2655
    %v2660 = vand.u32 2147483647, %v2650
    %vm2661 = vcmp.eq.f32.partialorder %v2660, 8.507059e+37
    %v2662 = vand.u32 %v2650, 2147483648
    %v2663 = vor.u32 1.1754944e-38, %v2662
    %v2664 = vsel %vm2661, %v2663, %v2659
    %v2665 = vmul.f32 1.0, %v2664
    %v2667 = vrot.slane %v2617, 7
    %v2669 = vmul.f32 %v2642, %v2667
    %v2670 = vadd.f32 %v2322, %v2669
    %v2671 = vtanh.pop %v2670
    %v2672 = vsub.f32 1.0, %v2665
    %v2673 = vmul.f32 %v2672, %v2671
    %v2675 = vrot.slane %v2578, 7
    %v2677 = vmul.f32 %v2665, %v2675
    %v2678 = vadd.f32 %v2673, %v2677
    %2679 = vst [vmem:[#allocation2] sm:$0x2] %v2678
    %v2680 = vpack.c.bf16 %v2678, %v2678
    %v2682 = vshrl.u32 %v2680, 16
    %2685 = vmatpush.bf16.msra.mxu0 %v2459
    %2686 = vmatpush.bf16.msra.mxu0 %v2456
    %2687 = vmatpush.bf16.msra.mxu0 %v2453
    %2688 = vmatpush.bf16.msra.mxu0 %v2450
    %2689 = vmatpush.bf16.msra.mxu0 %v2447
    %2690 = vmatpush.bf16.msra.mxu0 %v2444
    %2691 = vmatpush.bf16.msra.mxu0 %v2441
    %2692 = vmatpush.bf16.msra.mxu0 %v2438
    %2693 = vmatmul.bf16.gmra.mxu0 %v2682
    %v2694 = vpop.f32.mrf.mxu0
    %v2695 = vadd.f32 %v2487, %v2694
    %v2696 = vpop.f32.mrf.mxu0
    %2697 = vdwg.mxu0
    %2698 = vmatpush.bf16.msra.mxu0 %v2460
    %2699 = vmatpush.bf16.msra.mxu0 %v2457
    %2700 = vmatpush.bf16.msra.mxu0 %v2454
    %2701 = vmatpush.bf16.msra.mxu0 %v2451
    %2702 = vmatpush.bf16.msra.mxu0 %v2448
    %2703 = vmatpush.bf16.msra.mxu0 %v2445
    %2704 = vmatpush.bf16.msra.mxu0 %v2442
    %2705 = vmatpush.bf16.msra.mxu0 %v2439
    %2706 = vmatmul.bf16.gmra.mxu0 %v2682
    %v2707 = vpop.f32.mrf.mxu0
    %v2708 = vadd.f32 %v2488, %v2707
    %v2709 = vpop.f32.mrf.mxu0
    %2710 = vdwg.mxu0
    %2711 = vmatpush.bf16.msra.mxu0 %v2461
    %2712 = vmatpush.bf16.msra.mxu0 %v2458
    %2713 = vmatpush.bf16.msra.mxu0 %v2455
    %2714 = vmatpush.bf16.msra.mxu0 %v2452
    %2715 = vmatpush.bf16.msra.mxu0 %v2449
    %2716 = vmatpush.bf16.msra.mxu0 %v2446
    %2717 = vmatpush.bf16.msra.mxu0 %v2443
    %2718 = vmatpush.bf16.msra.mxu0 %v2440
    %2719 = vmatmul.bf16.gmra.mxu0 %v2682
    %v2720 = vpop.f32.mrf.mxu0
    %v2721 = vadd.f32 %v2489, %v2720
    %v2722 = vpop.f32.mrf.mxu0
    %2723 = vdwg.mxu0
    %v2725 = vrot.slane %v2695, 6
    %v2727 = vadd.f32 %v2296, %v2725
    %v2728 = vxor.u32 %v2727, 2147483648
    %v2729 = vmul.f32 %v2728, 1.442695
    %v2730 = vpow.pop %v2729
    %v2731 = vadd.f32 %v2730, 1.0
    %v2732 = vrcp.pop %v2731
    %v2733 = vmul.f32 %v2731, %v2732
    %v2734 = vsub.f32 1.0, %v2733
    %v2735 = vmul.f32 %v2732, %v2734
    %v2736 = vadd.f32 %v2732, %v2735
    %vm2737 = vweird.f32 %v2731
    %vm2738 = vweird.f32 %v2732
    %vm2739 = vmor %vm2737, %vm2738
    %v2740 = vsel %vm2739, %v2732, %v2736
    %v2741 = vand.u32 2147483647, %v2731
    %vm2742 = vcmp.eq.f32.partialorder %v2741, 8.507059e+37
    %v2743 = vand.u32 %v2731, 2147483648
    %v2744 = vor.u32 1.1754944e-38, %v2743
    %v2745 = vsel %vm2742, %v2744, %v2740
    %v2746 = vmul.f32 1.0, %v2745
    %v2748 = vrot.slane %v2708, 6
    %v2750 = vadd.f32 %v2309, %v2748
    %v2751 = vxor.u32 %v2750, 2147483648
    %v2752 = vmul.f32 %v2751, 1.442695
    %v2753 = vpow.pop %v2752
    %v2754 = vadd.f32 %v2753, 1.0
    %v2755 = vrcp.pop %v2754
    %v2756 = vmul.f32 %v2754, %v2755
    %v2757 = vsub.f32 1.0, %v2756
    %v2758 = vmul.f32 %v2755, %v2757
    %v2759 = vadd.f32 %v2755, %v2758
    %vm2760 = vweird.f32 %v2754
    %vm2761 = vweird.f32 %v2755
    %vm2762 = vmor %vm2760, %vm2761
    %v2763 = vsel %vm2762, %v2755, %v2759
    %v2764 = vand.u32 2147483647, %v2754
    %vm2765 = vcmp.eq.f32.partialorder %v2764, 8.507059e+37
    %v2766 = vand.u32 %v2754, 2147483648
    %v2767 = vor.u32 1.1754944e-38, %v2766
    %v2768 = vsel %vm2765, %v2767, %v2763
    %v2769 = vmul.f32 1.0, %v2768
    %v2771 = vrot.slane %v2721, 6
    %v2773 = vmul.f32 %v2746, %v2771
    %v2774 = vadd.f32 %v2322, %v2773
    %v2775 = vtanh.pop %v2774
    %v2776 = vsub.f32 1.0, %v2769
    %v2777 = vmul.f32 %v2776, %v2775
    %v2779 = vrot.slane %v2678, 7
    %v2781 = vmul.f32 %v2769, %v2779
    %v2782 = vadd.f32 %v2777, %v2781
    %2783 = vst [vmem:[#allocation2] sm:$0x4] %v2782
    %v2784 = vpack.c.bf16 %v2782, %v2782
    %v2786 = vrot.slane %v2784, 1
    %2788 = vmatpush.bf16.msra.mxu0 %v2459
    %2789 = vmatpush.bf16.msra.mxu0 %v2456
    %2790 = vmatpush.bf16.msra.mxu0 %v2453
    %2791 = vmatpush.bf16.msra.mxu0 %v2450
    %2792 = vmatpush.bf16.msra.mxu0 %v2447
    %2793 = vmatpush.bf16.msra.mxu0 %v2444
    %2794 = vmatpush.bf16.msra.mxu0 %v2441
    %2795 = vmatpush.bf16.msra.mxu0 %v2438
    %2796 = vmatmul.bf16.gmra.mxu0 %v2786
    %v2797 = vpop.f32.mrf.mxu0
    %v2798 = vadd.f32 %v2487, %v2797
    %v2799 = vpop.f32.mrf.mxu0
    %2800 = vdwg.mxu0
    %2801 = vmatpush.bf16.msra.mxu0 %v2460
    %2802 = vmatpush.bf16.msra.mxu0 %v2457
    %2803 = vmatpush.bf16.msra.mxu0 %v2454
    %2804 = vmatpush.bf16.msra.mxu0 %v2451
    %2805 = vmatpush.bf16.msra.mxu0 %v2448
    %2806 = vmatpush.bf16.msra.mxu0 %v2445
    %2807 = vmatpush.bf16.msra.mxu0 %v2442
    %2808 = vmatpush.bf16.msra.mxu0 %v2439
    %2809 = vmatmul.bf16.gmra.mxu0 %v2786
    %v2810 = vpop.f32.mrf.mxu0
    %v2811 = vadd.f32 %v2488, %v2810
    %v2812 = vpop.f32.mrf.mxu0
    %2813 = vdwg.mxu0
    %2814 = vmatpush.bf16.msra.mxu0 %v2461
    %2815 = vmatpush.bf16.msra.mxu0 %v2458
    %2816 = vmatpush.bf16.msra.mxu0 %v2455
    %2817 = vmatpush.bf16.msra.mxu0 %v2452
    %2818 = vmatpush.bf16.msra.mxu0 %v2449
    %2819 = vmatpush.bf16.msra.mxu0 %v2446
    %2820 = vmatpush.bf16.msra.mxu0 %v2443
    %2821 = vmatpush.bf16.msra.mxu0 %v2440
    %2822 = vmatmul.bf16.gmra.mxu0 %v2786
    %v2823 = vpop.f32.mrf.mxu0
    %v2824 = vadd.f32 %v2489, %v2823
    %v2825 = vpop.f32.mrf.mxu0
    %2826 = vdwg.mxu0
    %v2828 = vrot.slane %v2798, 5
    %v2830 = vadd.f32 %v2296, %v2828
    %v2831 = vxor.u32 %v2830, 2147483648
    %v2832 = vmul.f32 %v2831, 1.442695
    %v2833 = vpow.pop %v2832
    %v2834 = vadd.f32 %v2833, 1.0
    %v2835 = vrcp.pop %v2834
    %v2836 = vmul.f32 %v2834, %v2835
    %v2837 = vsub.f32 1.0, %v2836
    %v2838 = vmul.f32 %v2835, %v2837
    %v2839 = vadd.f32 %v2835, %v2838
    %vm2840 = vweird.f32 %v2834
    %vm2841 = vweird.f32 %v2835
    %vm2842 = vmor %vm2840, %vm2841
    %v2843 = vsel %vm2842, %v2835, %v2839
    %v2844 = vand.u32 2147483647, %v2834
    %vm2845 = vcmp.eq.f32.partialorder %v2844, 8.507059e+37
    %v2846 = vand.u32 %v2834, 2147483648
    %v2847 = vor.u32 1.1754944e-38, %v2846
    %v2848 = vsel %vm2845, %v2847, %v2843
    %v2849 = vmul.f32 1.0, %v2848
    %v2851 = vrot.slane %v2811, 5
    %v2853 = vadd.f32 %v2309, %v2851
    %v2854 = vxor.u32 %v2853, 2147483648
    %v2855 = vmul.f32 %v2854, 1.442695
    %v2856 = vpow.pop %v2855
    %v2857 = vadd.f32 %v2856, 1.0
    %v2858 = vrcp.pop %v2857
    %v2859 = vmul.f32 %v2857, %v2858
    %v2860 = vsub.f32 1.0, %v2859
    %v2861 = vmul.f32 %v2858, %v2860
    %v2862 = vadd.f32 %v2858, %v2861
    %vm2863 = vweird.f32 %v2857
    %vm2864 = vweird.f32 %v2858
    %vm2865 = vmor %vm2863, %vm2864
    %v2866 = vsel %vm2865, %v2858, %v2862
    %v2867 = vand.u32 2147483647, %v2857
    %vm2868 = vcmp.eq.f32.partialorder %v2867, 8.507059e+37
    %v2869 = vand.u32 %v2857, 2147483648
    %v2870 = vor.u32 1.1754944e-38, %v2869
    %v2871 = vsel %vm2868, %v2870, %v2866
    %v2872 = vmul.f32 1.0, %v2871
    %v2874 = vrot.slane %v2824, 5
    %v2876 = vmul.f32 %v2849, %v2874
    %v2877 = vadd.f32 %v2322, %v2876
    %v2878 = vtanh.pop %v2877
    %v2879 = vsub.f32 1.0, %v2872
    %v2880 = vmul.f32 %v2879, %v2878
    %v2882 = vrot.slane %v2782, 7
    %v2884 = vmul.f32 %v2872, %v2882
    %v2885 = vadd.f32 %v2880, %v2884
    %2886 = vst [vmem:[#allocation2] sm:$0x8] %v2885
    %v2887 = vpack.c.bf16 %v2885, %v2885
    %v2889 = vshrl.u32 %v2887, 16
    %v2891 = vrot.slane %v2889, 1
    %2893 = vmatpush.bf16.msra.mxu0 %v2459
    %2894 = vmatpush.bf16.msra.mxu0 %v2456
    %2895 = vmatpush.bf16.msra.mxu0 %v2453
    %2896 = vmatpush.bf16.msra.mxu0 %v2450
    %2897 = vmatpush.bf16.msra.mxu0 %v2447
    %2898 = vmatpush.bf16.msra.mxu0 %v2444
    %2899 = vmatpush.bf16.msra.mxu0 %v2441
    %2900 = vmatpush.bf16.msra.mxu0 %v2438
    %2901 = vmatmul.bf16.gmra.mxu0 %v2891
    %v2902 = vpop.f32.mrf.mxu0
    %v2903 = vadd.f32 %v2487, %v2902
    %v2904 = vpop.f32.mrf.mxu0
    %2905 = vdwg.mxu0
    %2906 = vmatpush.bf16.msra.mxu0 %v2460
    %2907 = vmatpush.bf16.msra.mxu0 %v2457
    %2908 = vmatpush.bf16.msra.mxu0 %v2454
    %2909 = vmatpush.bf16.msra.mxu0 %v2451
    %2910 = vmatpush.bf16.msra.mxu0 %v2448
    %2911 = vmatpush.bf16.msra.mxu0 %v2445
    %2912 = vmatpush.bf16.msra.mxu0 %v2442
    %2913 = vmatpush.bf16.msra.mxu0 %v2439
    %2914 = vmatmul.bf16.gmra.mxu0 %v2891
    %v2915 = vpop.f32.mrf.mxu0
    %v2916 = vadd.f32 %v2488, %v2915
    %v2917 = vpop.f32.mrf.mxu0
    %2918 = vdwg.mxu0
    %2919 = vmatpush.bf16.msra.mxu0 %v2461
    %2920 = vmatpush.bf16.msra.mxu0 %v2458
    %2921 = vmatpush.bf16.msra.mxu0 %v2455
    %2922 = vmatpush.bf16.msra.mxu0 %v2452
    %2923 = vmatpush.bf16.msra.mxu0 %v2449
    %2924 = vmatpush.bf16.msra.mxu0 %v2446
    %2925 = vmatpush.bf16.msra.mxu0 %v2443
    %2926 = vmatpush.bf16.msra.mxu0 %v2440
    %2927 = vmatmul.bf16.gmra.mxu0 %v2891
    %v2928 = vpop.f32.mrf.mxu0
    %v2929 = vadd.f32 %v2489, %v2928
    %v2930 = vpop.f32.mrf.mxu0
    %2931 = vdwg.mxu0
    %v2933 = vrot.slane %v2903, 4
    %v2935 = vadd.f32 %v2296, %v2933
    %v2936 = vxor.u32 %v2935, 2147483648
    %v2937 = vmul.f32 %v2936, 1.442695
    %v2938 = vpow.pop %v2937
    %v2939 = vadd.f32 %v2938, 1.0
    %v2940 = vrcp.pop %v2939
    %v2941 = vmul.f32 %v2939, %v2940
    %v2942 = vsub.f32 1.0, %v2941
    %v2943 = vmul.f32 %v2940, %v2942
    %v2944 = vadd.f32 %v2940, %v2943
    %vm2945 = vweird.f32 %v2939
    %vm2946 = vweird.f32 %v2940
    %vm2947 = vmor %vm2945, %vm2946
    %v2948 = vsel %vm2947, %v2940, %v2944
    %v2949 = vand.u32 2147483647, %v2939
    %vm2950 = vcmp.eq.f32.partialorder %v2949, 8.507059e+37
    %v2951 = vand.u32 %v2939, 2147483648
    %v2952 = vor.u32 1.1754944e-38, %v2951
    %v2953 = vsel %vm2950, %v2952, %v2948
    %v2954 = vmul.f32 1.0, %v2953
    %v2956 = vrot.slane %v2916, 4
    %v2958 = vadd.f32 %v2309, %v2956
    %v2959 = vxor.u32 %v2958, 2147483648
    %v2960 = vmul.f32 %v2959, 1.442695
    %v2961 = vpow.pop %v2960
    %v2962 = vadd.f32 %v2961, 1.0
    %v2963 = vrcp.pop %v2962
    %v2964 = vmul.f32 %v2962, %v2963
    %v2965 = vsub.f32 1.0, %v2964
    %v2966 = vmul.f32 %v2963, %v2965
    %v2967 = vadd.f32 %v2963, %v2966
    %vm2968 = vweird.f32 %v2962
    %vm2969 = vweird.f32 %v2963
    %vm2970 = vmor %vm2968, %vm2969
    %v2971 = vsel %vm2970, %v2963, %v2967
    %v2972 = vand.u32 2147483647, %v2962
    %vm2973 = vcmp.eq.f32.partialorder %v2972, 8.507059e+37
    %v2974 = vand.u32 %v2962, 2147483648
    %v2975 = vor.u32 1.1754944e-38, %v2974
    %v2976 = vsel %vm2973, %v2975, %v2971
    %v2977 = vmul.f32 1.0, %v2976
    %v2979 = vrot.slane %v2929, 4
    %v2981 = vmul.f32 %v2954, %v2979
    %v2982 = vadd.f32 %v2322, %v2981
    %v2983 = vtanh.pop %v2982
    %v2984 = vsub.f32 1.0, %v2977
    %v2985 = vmul.f32 %v2984, %v2983
    %v2987 = vrot.slane %v2885, 7
    %v2989 = vmul.f32 %v2977, %v2987
    %v2990 = vadd.f32 %v2985, %v2989
    %2991 = vst [vmem:[#allocation2] sm:$0x10] %v2990
    %v2992 = vpack.c.bf16 %v2990, %v2990
    %v2994 = vrot.slane %v2992, 2
    %2996 = vmatpush.bf16.msra.mxu0 %v2459
    %2997 = vmatpush.bf16.msra.mxu0 %v2456
    %2998 = vmatpush.bf16.msra.mxu0 %v2453
    %2999 = vmatpush.bf16.msra.mxu0 %v2450
    %3000 = vmatpush.bf16.msra.mxu0 %v2447
    %3001 = vmatpush.bf16.msra.mxu0 %v2444
    %3002 = vmatpush.bf16.msra.mxu0 %v2441
    %3003 = vmatpush.bf16.msra.mxu0 %v2438
    %3004 = vmatmul.bf16.gmra.mxu0 %v2994
    %v3005 = vpop.f32.mrf.mxu0
    %v3006 = vadd.f32 %v2487, %v3005
    %v3007 = vpop.f32.mrf.mxu0
    %3008 = vdwg.mxu0
    %3009 = vmatpush.bf16.msra.mxu0 %v2460
    %3010 = vmatpush.bf16.msra.mxu0 %v2457
    %3011 = vmatpush.bf16.msra.mxu0 %v2454
    %3012 = vmatpush.bf16.msra.mxu0 %v2451
    %3013 = vmatpush.bf16.msra.mxu0 %v2448
    %3014 = vmatpush.bf16.msra.mxu0 %v2445
    %3015 = vmatpush.bf16.msra.mxu0 %v2442
    %3016 = vmatpush.bf16.msra.mxu0 %v2439
    %3017 = vmatmul.bf16.gmra.mxu0 %v2994
    %v3018 = vpop.f32.mrf.mxu0
    %v3019 = vadd.f32 %v2488, %v3018
    %v3020 = vpop.f32.mrf.mxu0
    %3021 = vdwg.mxu0
    %3022 = vmatpush.bf16.msra.mxu0 %v2461
    %3023 = vmatpush.bf16.msra.mxu0 %v2458
    %3024 = vmatpush.bf16.msra.mxu0 %v2455
    %3025 = vmatpush.bf16.msra.mxu0 %v2452
    %3026 = vmatpush.bf16.msra.mxu0 %v2449
    %3027 = vmatpush.bf16.msra.mxu0 %v2446
    %3028 = vmatpush.bf16.msra.mxu0 %v2443
    %3029 = vmatpush.bf16.msra.mxu0 %v2440
    %3030 = vmatmul.bf16.gmra.mxu0 %v2994
    %v3031 = vpop.f32.mrf.mxu0
    %v3032 = vadd.f32 %v2489, %v3031
    %v3033 = vpop.f32.mrf.mxu0
    %3034 = vdwg.mxu0
    %v3036 = vrot.slane %v3006, 3
    %v3038 = vadd.f32 %v2296, %v3036
    %v3039 = vxor.u32 %v3038, 2147483648
    %v3040 = vmul.f32 %v3039, 1.442695
    %v3041 = vpow.pop %v3040
    %v3042 = vadd.f32 %v3041, 1.0
    %v3043 = vrcp.pop %v3042
    %v3044 = vmul.f32 %v3042, %v3043
    %v3045 = vsub.f32 1.0, %v3044
    %v3046 = vmul.f32 %v3043, %v3045
    %v3047 = vadd.f32 %v3043, %v3046
    %vm3048 = vweird.f32 %v3042
    %vm3049 = vweird.f32 %v3043
    %vm3050 = vmor %vm3048, %vm3049
    %v3051 = vsel %vm3050, %v3043, %v3047
    %v3052 = vand.u32 2147483647, %v3042
    %vm3053 = vcmp.eq.f32.partialorder %v3052, 8.507059e+37
    %v3054 = vand.u32 %v3042, 2147483648
    %v3055 = vor.u32 1.1754944e-38, %v3054
    %v3056 = vsel %vm3053, %v3055, %v3051
    %v3057 = vmul.f32 1.0, %v3056
    %v3059 = vrot.slane %v3019, 3
    %v3061 = vadd.f32 %v2309, %v3059
    %v3062 = vxor.u32 %v3061, 2147483648
    %v3063 = vmul.f32 %v3062, 1.442695
    %v3064 = vpow.pop %v3063
    %v3065 = vadd.f32 %v3064, 1.0
    %v3066 = vrcp.pop %v3065
    %v3067 = vmul.f32 %v3065, %v3066
    %v3068 = vsub.f32 1.0, %v3067
    %v3069 = vmul.f32 %v3066, %v3068
    %v3070 = vadd.f32 %v3066, %v3069
    %vm3071 = vweird.f32 %v3065
    %vm3072 = vweird.f32 %v3066
    %vm3073 = vmor %vm3071, %vm3072
    %v3074 = vsel %vm3073, %v3066, %v3070
    %v3075 = vand.u32 2147483647, %v3065
    %vm3076 = vcmp.eq.f32.partialorder %v3075, 8.507059e+37
    %v3077 = vand.u32 %v3065, 2147483648
    %v3078 = vor.u32 1.1754944e-38, %v3077
    %v3079 = vsel %vm3076, %v3078, %v3074
    %v3080 = vmul.f32 1.0, %v3079
    %v3082 = vrot.slane %v3032, 3
    %v3084 = vmul.f32 %v3057, %v3082
    %v3085 = vadd.f32 %v2322, %v3084
    %v3086 = vtanh.pop %v3085
    %v3087 = vsub.f32 1.0, %v3080
    %v3088 = vmul.f32 %v3087, %v3086
    %v3090 = vrot.slane %v2990, 7
    %v3092 = vmul.f32 %v3080, %v3090
    %v3093 = vadd.f32 %v3088, %v3092
    %3094 = vst [vmem:[#allocation2] sm:$0x20] %v3093
    %v3095 = vpack.c.bf16 %v3093, %v3093
    %v3097 = vshrl.u32 %v3095, 16
    %v3099 = vrot.slane %v3097, 2
    %3101 = vmatpush.bf16.msra.mxu0 %v2459
    %3102 = vmatpush.bf16.msra.mxu0 %v2456
    %3103 = vmatpush.bf16.msra.mxu0 %v2453
    %3104 = vmatpush.bf16.msra.mxu0 %v2450
    %3105 = vmatpush.bf16.msra.mxu0 %v2447
    %3106 = vmatpush.bf16.msra.mxu0 %v2444
    %3107 = vmatpush.bf16.msra.mxu0 %v2441
    %3108 = vmatpush.bf16.msra.mxu0 %v2438
    %3109 = vmatmul.bf16.gmra.mxu0 %v3099
    %v3110 = vpop.f32.mrf.mxu0
    %v3111 = vadd.f32 %v2487, %v3110
    %v3112 = vpop.f32.mrf.mxu0
    %3113 = vdwg.mxu0
    %3114 = vmatpush.bf16.msra.mxu0 %v2460
    %3115 = vmatpush.bf16.msra.mxu0 %v2457
    %3116 = vmatpush.bf16.msra.mxu0 %v2454
    %3117 = vmatpush.bf16.msra.mxu0 %v2451
    %3118 = vmatpush.bf16.msra.mxu0 %v2448
    %3119 = vmatpush.bf16.msra.mxu0 %v2445
    %3120 = vmatpush.bf16.msra.mxu0 %v2442
    %3121 = vmatpush.bf16.msra.mxu0 %v2439
    %3122 = vmatmul.bf16.gmra.mxu0 %v3099
    %v3123 = vpop.f32.mrf.mxu0
    %v3124 = vadd.f32 %v2488, %v3123
    %v3125 = vpop.f32.mrf.mxu0
    %3126 = vdwg.mxu0
    %3127 = vmatpush.bf16.msra.mxu0 %v2461
    %3128 = vmatpush.bf16.msra.mxu0 %v2458
    %3129 = vmatpush.bf16.msra.mxu0 %v2455
    %3130 = vmatpush.bf16.msra.mxu0 %v2452
    %3131 = vmatpush.bf16.msra.mxu0 %v2449
    %3132 = vmatpush.bf16.msra.mxu0 %v2446
    %3133 = vmatpush.bf16.msra.mxu0 %v2443
    %3134 = vmatpush.bf16.msra.mxu0 %v2440
    %3135 = vmatmul.bf16.gmra.mxu0 %v3099
    %v3136 = vpop.f32.mrf.mxu0
    %v3137 = vadd.f32 %v2489, %v3136
    %v3138 = vpop.f32.mrf.mxu0
    %3139 = vdwg.mxu0
    %v3141 = vrot.slane %v3111, 2
    %v3143 = vadd.f32 %v2296, %v3141
    %v3144 = vxor.u32 %v3143, 2147483648
    %v3145 = vmul.f32 %v3144, 1.442695
    %v3146 = vpow.pop %v3145
    %v3147 = vadd.f32 %v3146, 1.0
    %v3148 = vrcp.pop %v3147
    %v3149 = vmul.f32 %v3147, %v3148
    %v3150 = vsub.f32 1.0, %v3149
    %v3151 = vmul.f32 %v3148, %v3150
    %v3152 = vadd.f32 %v3148, %v3151
    %vm3153 = vweird.f32 %v3147
    %vm3154 = vweird.f32 %v3148
    %vm3155 = vmor %vm3153, %vm3154
    %v3156 = vsel %vm3155, %v3148, %v3152
    %v3157 = vand.u32 2147483647, %v3147
    %vm3158 = vcmp.eq.f32.partialorder %v3157, 8.507059e+37
    %v3159 = vand.u32 %v3147, 2147483648
    %v3160 = vor.u32 1.1754944e-38, %v3159
    %v3161 = vsel %vm3158, %v3160, %v3156
    %v3162 = vmul.f32 1.0, %v3161
    %v3164 = vrot.slane %v3124, 2
    %v3166 = vadd.f32 %v2309, %v3164
    %v3167 = vxor.u32 %v3166, 2147483648
    %v3168 = vmul.f32 %v3167, 1.442695
    %v3169 = vpow.pop %v3168
    %v3170 = vadd.f32 %v3169, 1.0
    %v3171 = vrcp.pop %v3170
    %v3172 = vmul.f32 %v3170, %v3171
    %v3173 = vsub.f32 1.0, %v3172
    %v3174 = vmul.f32 %v3171, %v3173
    %v3175 = vadd.f32 %v3171, %v3174
    %vm3176 = vweird.f32 %v3170
    %vm3177 = vweird.f32 %v3171
    %vm3178 = vmor %vm3176, %vm3177
    %v3179 = vsel %vm3178, %v3171, %v3175
    %v3180 = vand.u32 2147483647, %v3170
    %vm3181 = vcmp.eq.f32.partialorder %v3180, 8.507059e+37
    %v3182 = vand.u32 %v3170, 2147483648
    %v3183 = vor.u32 1.1754944e-38, %v3182
    %v3184 = vsel %vm3181, %v3183, %v3179
    %v3185 = vmul.f32 1.0, %v3184
    %v3187 = vrot.slane %v3137, 2
    %v3189 = vmul.f32 %v3162, %v3187
    %v3190 = vadd.f32 %v2322, %v3189
    %v3191 = vtanh.pop %v3190
    %v3192 = vsub.f32 1.0, %v3185
    %v3193 = vmul.f32 %v3192, %v3191
    %v3195 = vrot.slane %v3093, 7
    %v3197 = vmul.f32 %v3185, %v3195
    %v3198 = vadd.f32 %v3193, %v3197
    %3199 = vst [vmem:[#allocation2] sm:$0x40] %v3198
    %v3200 = vpack.c.bf16 %v3198, %v3198
    %v3202 = vrot.slane %v3200, 3
    %3204 = vmatpush.bf16.msra.mxu0 %v2459
    %3205 = vmatpush.bf16.msra.mxu0 %v2456
    %3206 = vmatpush.bf16.msra.mxu0 %v2453
    %3207 = vmatpush.bf16.msra.mxu0 %v2450
    %3208 = vmatpush.bf16.msra.mxu0 %v2447
    %3209 = vmatpush.bf16.msra.mxu0 %v2444
    %3210 = vmatpush.bf16.msra.mxu0 %v2441
    %3211 = vmatpush.bf16.msra.mxu0 %v2438
    %3212 = vmatmul.bf16.gmra.mxu0 %v3202
    %v3213 = vpop.f32.mrf.mxu0
    %v3214 = vadd.f32 %v2487, %v3213
    %v3215 = vpop.f32.mrf.mxu0
    %3216 = vdwg.mxu0
    %3217 = vmatpush.bf16.msra.mxu0 %v2460
    %3218 = vmatpush.bf16.msra.mxu0 %v2457
    %3219 = vmatpush.bf16.msra.mxu0 %v2454
    %3220 = vmatpush.bf16.msra.mxu0 %v2451
    %3221 = vmatpush.bf16.msra.mxu0 %v2448
    %3222 = vmatpush.bf16.msra.mxu0 %v2445
    %3223 = vmatpush.bf16.msra.mxu0 %v2442
    %3224 = vmatpush.bf16.msra.mxu0 %v2439
    %3225 = vmatmul.bf16.gmra.mxu0 %v3202
    %v3226 = vpop.f32.mrf.mxu0
    %v3227 = vadd.f32 %v2488, %v3226
    %v3228 = vpop.f32.mrf.mxu0
    %3229 = vdwg.mxu0
    %3230 = vmatpush.bf16.msra.mxu0 %v2461
    %3231 = vmatpush.bf16.msra.mxu0 %v2458
    %3232 = vmatpush.bf16.msra.mxu0 %v2455
    %3233 = vmatpush.bf16.msra.mxu0 %v2452
    %3234 = vmatpush.bf16.msra.mxu0 %v2449
    %3235 = vmatpush.bf16.msra.mxu0 %v2446
    %3236 = vmatpush.bf16.msra.mxu0 %v2443
    %3237 = vmatpush.bf16.msra.mxu0 %v2440
    %3238 = vmatmul.bf16.gmra.mxu0 %v3202
    %v3239 = vpop.f32.mrf.mxu0
    %v3240 = vadd.f32 %v2489, %v3239
    %v3241 = vpop.f32.mrf.mxu0
    %3242 = vdwg.mxu0
    %v3244 = vrot.slane %v3214, 1
    %v3246 = vadd.f32 %v2296, %v3244
    %v3247 = vxor.u32 %v3246, 2147483648
    %v3248 = vmul.f32 %v3247, 1.442695
    %v3249 = vpow.pop %v3248
    %v3250 = vadd.f32 %v3249, 1.0
    %v3251 = vrcp.pop %v3250
    %v3252 = vmul.f32 %v3250, %v3251
    %v3253 = vsub.f32 1.0, %v3252
    %v3254 = vmul.f32 %v3251, %v3253
    %v3255 = vadd.f32 %v3251, %v3254
    %vm3256 = vweird.f32 %v3250
    %vm3257 = vweird.f32 %v3251
    %vm3258 = vmor %vm3256, %vm3257
    %v3259 = vsel %vm3258, %v3251, %v3255
    %v3260 = vand.u32 2147483647, %v3250
    %vm3261 = vcmp.eq.f32.partialorder %v3260, 8.507059e+37
    %v3262 = vand.u32 %v3250, 2147483648
    %v3263 = vor.u32 1.1754944e-38, %v3262
    %v3264 = vsel %vm3261, %v3263, %v3259
    %v3265 = vmul.f32 1.0, %v3264
    %v3267 = vrot.slane %v3227, 1
    %v3269 = vadd.f32 %v2309, %v3267
    %v3270 = vxor.u32 %v3269, 2147483648
    %v3271 = vmul.f32 %v3270, 1.442695
    %v3272 = vpow.pop %v3271
    %v3273 = vadd.f32 %v3272, 1.0
    %v3274 = vrcp.pop %v3273
    %v3275 = vmul.f32 %v3273, %v3274
    %v3276 = vsub.f32 1.0, %v3275
    %v3277 = vmul.f32 %v3274, %v3276
    %v3278 = vadd.f32 %v3274, %v3277
    %vm3279 = vweird.f32 %v3273
    %vm3280 = vweird.f32 %v3274
    %vm3281 = vmor %vm3279, %vm3280
    %v3282 = vsel %vm3281, %v3274, %v3278
    %v3283 = vand.u32 2147483647, %v3273
    %vm3284 = vcmp.eq.f32.partialorder %v3283, 8.507059e+37
    %v3285 = vand.u32 %v3273, 2147483648
    %v3286 = vor.u32 1.1754944e-38, %v3285
    %v3287 = vsel %vm3284, %v3286, %v3282
    %v3288 = vmul.f32 1.0, %v3287
    %v3290 = vrot.slane %v3240, 1
    %v3292 = vmul.f32 %v3265, %v3290
    %v3293 = vadd.f32 %v2322, %v3292
    %v3294 = vtanh.pop %v3293
    %v3295 = vsub.f32 1.0, %v3288
    %v3296 = vmul.f32 %v3295, %v3294
    %v3298 = vrot.slane %v3198, 7
    %v3300 = vmul.f32 %v3288, %v3298
    %v3301 = vadd.f32 %v3296, %v3300
    %3302 = vst [vmem:[#allocation2] sm:$0x80] %v3301
    %v3303 = vld [vmem:[#allocation2] sm:$0xff]
    %v3304 = vld [vmem:[%s13] sm:$0x1]
    %v3306 = vperm.slane %v3304, 0
    %v3308 = vmul.f32 %v3303, %v3306
    %3309 = vadd.xlane.f32.xlu0 %v3308
    %v3310 = vpop.xlane.xlu0 %3309
    %v3311 = vrot.slane %v3310, 4
    %v3312 = vmax.f32 %v3310, %v3311
    %v3313 = vrot.slane %v3312, 2
    %v3314 = vmax.f32 %v3312, %v3313
    %v3315 = vrot.slane %v3314, 1
    %v3316 = vmax.f32 %v3314, %v3315
    %v3317 = vsub.f32 %v3310, %v3316
    %v3318 = vmul.f32 %v3317, 1.442695
    %v3319 = vpow.pop %v3318
    %v3320 = vrot.slane %v3319, 4
    %v3321 = vadd.f32 %v3319, %v3320
    %v3322 = vrot.slane %v3321, 2
    %v3323 = vadd.f32 %v3321, %v3322
    %v3324 = vrot.slane %v3323, 1
    %v3325 = vadd.f32 %v3323, %v3324
    %v3326 = vrcp.pop %v3325
    %v3327 = vmul.f32 %v3319, %v3326
    %v3328 = vmul.f32 %v3327, %v3303
    %v3329 = vrot.slane %v3328, 4
    %v3330 = vadd.f32 %v3328, %v3329
    %v3331 = vrot.slane %v3330, 2
    %v3332 = vadd.f32 %v3330, %v3331
    %v3333 = vrot.slane %v3332, 1
    %v3334 = vadd.f32 %v3332, %v3333
    %3335 = vst [vmem:[#allocation20] sm:$0x1] %v3334
    // Predicated region
    $region98: #{tpu_custom_call.1} parent=1 // pred_check
      _
    $region99: #{tpu_custom_call.1} parent=1 // pred_check_branch
      %3337 = sbr.rel (0) target = $region101
    $region100: #{tpu_custom_call.1} parent=1 // pred_region
      %3339 = vsyncadd [#allocation5], 0
      %s3341 = sshll.u32 [#allocation20], 4
      %s3342 = int_to_ptr.vmem [resolvable:$true] %s3341
      %s3343 = sshll.u32 %s14, 4
      %s3344 = int_to_ptr.hbm [resolvable:$true] %s3343
      %3346 = dma.vmem_to_hbm [thread:$0]  %s3342, 16, %s3344, [#allocation5]
    $region101: #{tpu_custom_call.1} parent=1 // pred_fallthru
      _
    // Predicated region
    $region102: #{tpu_custom_call.1} parent=1 // pred_check
      _
    $region103: #{tpu_custom_call.1} parent=1 // pred_check_branch
      %3348 = sbr.rel (0) target = $region105
    $region104: #{tpu_custom_call.1} parent=1 // pred_region
      %3350 = dma.done [#allocation5], 16
    $region105: #{tpu_custom_call.1} parent=1 // pred_fallthru
      _
    %3351 = vsyncpa [#allocation4], 1
    %3352 = vsyncpa [#allocation7], 1
    %3353 = vsyncpa [#allocation10], 1
    %3354 = vsyncpa [#allocation13], 1
    %3355 = vsyncpa [#allocation16], 1
    %3356 = vsyncpa [#allocation19], 1
    %3357 = vsyncpa [#allocation5], 1

</llo_original>
